<compile_context>
chip_gen: v7x
topology: tpu7x:2x2x1
jax: 0.10.0
libtpu: 0.0.40
codegen_flags: <defaults>
</compile_context>

<pallas_src>
import functools

import jax
import jax.numpy as jnp
from jax import lax
from jax.experimental import pallas as pl
from jax.experimental.pallas import tpu as pltpu

# ---------------- configuration ----------------
D = 8
W = 32
INPUT_CH = 3
INPUT_CH_VIEWS = 3
INPUT_CH_LATENT_T = 2
OUTPUT_CH = 4
SKIPS = (4,)
C_IN = INPUT_CH + INPUT_CH_VIEWS + INPUT_CH_LATENT_T

SUB = 256            # samples per matmul (lane axis); 256 fills the v6e/v7x MXU
OUT_PAD = 8          # output rows padded to a full f32 sublane group

NUM_W32 = (D - 1) + 1 + 2 + 1   # pts[1..D-1], fused feat->views0, views[1..2], rgb
NUM_B = D + 1 + 2 + 1           # pts biases, fused views0 bias, views[1..2], rgb


# ---------------- parameter init (deterministic, torch nn.Linear style) -----
def _linear_init(key, fan_in, fan_out):
    kw, kb = jax.random.split(key)
    bound = 1.0 / jnp.sqrt(jnp.float32(fan_in))
    w = jax.random.uniform(kw, (fan_in, fan_out), jnp.float32, -bound, bound)
    b = jax.random.uniform(kb, (fan_out,), jnp.float32, -bound, bound)
    return w, b


def init_params(key):
    keys = jax.random.split(key, D + 8)
    params = {}
    pts = []
    in_dim = INPUT_CH
    for i in range(D):
        pts.append(_linear_init(keys[i], in_dim, W))
        # after layer i, forward concatenates [input_pts, h] iff i in skips,
        # so layer i+1 has input dim W + input_ch
        in_dim = W + INPUT_CH if i in SKIPS else W
    params["pts"] = pts
    params["feat_w"], params["feat_b"] = _linear_init(keys[D], W, W)
    views = [
        _linear_init(keys[D + 1], W + INPUT_CH_VIEWS + INPUT_CH_LATENT_T, W),
        _linear_init(keys[D + 2], W, W),
        _linear_init(keys[D + 3], W, W),
    ]
    params["views"] = views
    params["rgb_w"], params["rgb_b"] = _linear_init(keys[D + 4], W, OUTPUT_CH)
    return params


# ---------------- pure-JAX reference (mirrors torch forward exactly) --------
def ref_forward(x, params):
    pts = x[:, :INPUT_CH]
    views = x[:, INPUT_CH:INPUT_CH + INPUT_CH_VIEWS]
    lat = x[:, INPUT_CH + INPUT_CH_VIEWS:]
    h = pts
    for i in range(D):
        w, b = params["pts"][i]
        h = jnp.maximum(h @ w + b, 0.0)
        if i in SKIPS:
            h = jnp.concatenate([pts, h], axis=-1)
    feature = h @ params["feat_w"] + params["feat_b"]
    h = jnp.concatenate([feature, views, lat], axis=-1)
    for j in range(3):
        w, b = params["views"][j]
        h = jnp.maximum(h @ w + b, 0.0)
    return h @ params["rgb_w"] + params["rgb_b"]


# ---------------- pack params into kernel-friendly slabs --------------------
def pack_params(params, compute_dtype=jnp.float32):
    """compute_dtype: jnp.float32 (exact) or jnp.bfloat16 (bf16 end-to-end,
    recommended on v6e/v7x; on v5e prefer float32)."""
    assert len(SKIPS) <= 1, "weight packing assumes at most one skip connection"

    # ---- x-side weights, fused into ONE (3W, C_IN) slab (stored (out, in)):
    #   rows  0:W   -> pts_linears[0]            (acts on the pts columns)
    #   rows  W:2W  -> pts part of the skip layer (acts on the pts columns)
    #   rows 2W:3W  -> views/latent part of views_linears[0]
    w0 = params["pts"][0][0]                                   # (INPUT_CH, W)
    w0_pad = jnp.zeros((C_IN, W), jnp.float32).at[:INPUT_CH].set(w0)

    if SKIPS:
        w_skip_layer = params["pts"][SKIPS[0] + 1][0]          # (W+INPUT_CH, W)
        wskip_pad = jnp.zeros((C_IN, W), jnp.float32).at[:INPUT_CH].set(
            w_skip_layer[:INPUT_CH])
    else:
        wskip_pad = jnp.zeros((C_IN, W), jnp.float32)

    vw0 = params["views"][0][0]                                # (W+views+lat, W)
    vw0_feat = vw0[:W]                                         # (W, W)
    vw0_x_pad = (jnp.zeros((C_IN, W), jnp.float32)
                 .at[INPUT_CH:INPUT_CH + INPUT_CH_VIEWS]
                 .set(vw0[W:W + INPUT_CH_VIEWS])
                 .at[INPUT_CH + INPUT_CH_VIEWS:]
                 .set(vw0[W + INPUT_CH_VIEWS:]))

    wx = jnp.concatenate([w0_pad.T, wskip_pad.T, vw0_x_pad.T], axis=0)  # (3W, C_IN)

    # ---- (W, W) weights, stored (out, in)
    w32_list = []
    for i in range(1, D):
        wi = params["pts"][i][0]
        if (i - 1) in SKIPS:
            wi = wi[INPUT_CH:]                                 # h-side part of skip layer
        w32_list.append(wi.T)
    # feature_linear fused into views_linears[0] (no relu between them):
    #   z = h @ (feat_w @ vw0_feat) + x @ vw0_x_pad + (feat_b @ vw0_feat + vb0)
    w_fused = params["feat_w"] @ vw0_feat                      # (W, W), (in, out)
    w32_list.append(w_fused.T)
    w32_list.append(params["views"][1][0].T)
    w32_list.append(params["views"][2][0].T)
    rgb_pad = jnp.zeros((W, W), jnp.float32).at[:, :OUTPUT_CH].set(params["rgb_w"])
    w32_list.append(rgb_pad.T)                                 # rows 0..OUTPUT_CH-1 valid
    w32 = jnp.stack(w32_list)                                  # (NUM_W32, W, W)

    # ---- biases, pre-broadcast to lane width: (NUM_B, W, SUB)
    b_list = [params["pts"][i][1] for i in range(D)]
    b_list.append(params["feat_b"] @ vw0_feat + params["views"][0][1])  # fused bias
    b_list.append(params["views"][1][1])
    b_list.append(params["views"][2][1])
    b_list.append(jnp.zeros((W,), jnp.float32).at[:OUTPUT_CH].set(params["rgb_b"]))
    b = jnp.broadcast_to(jnp.stack(b_list)[:, :, None], (NUM_B, W, SUB))

    return dict(wx=wx.astype(compute_dtype),
                w32=w32.astype(compute_dtype),
                b=b.astype(compute_dtype))


# ---------------- Pallas kernel ----------------------------------------------
def texture_mlp_kernel(x_ref, wx_ref, w32_ref, b_ref, out_ref):
    # x_ref  : (tm_chunks, C_IN, SUB)     compute dtype (samples on lanes)
    # wx_ref : (3*W, C_IN)                compute dtype (fused x-side weights)
    # w32_ref: (NUM_W32, W, W)            compute dtype
    # b_ref  : (NUM_B, W, SUB)            compute dtype (pre-broadcast biases)
    # out_ref: (tm_chunks, OUT_PAD, SUB)  float32
    act_dt = wx_ref.dtype
    dot = functools.partial(jnp.dot, preferred_element_type=act_dt)
    n_chunks = x_ref.shape[0]

    def one_chunk(c):
        xc = x_ref[c]                                           # (C_IN, SUB)

        # Single fused x-side matmul: layer0 / skip / views0 contributions.
        xproj = dot(wx_ref[...], xc)                            # (3W, SUB)
        x0 = xproj[0 * W:1 * W]
        xskip = xproj[1 * W:2 * W]
        xviews = xproj[2 * W:3 * W]

        # pts_linears[0]
        h = jnp.maximum(x0 + b_ref[0], 0)                       # (W, SUB)

        # pts_linears[1 .. D-1]; skip concat expressed as a split matmul
        for i in range(1, D):
            z = dot(w32_ref[i - 1], h) + b_ref[i]
            if (i - 1) in SKIPS:
                z = z + xskip
            h = jnp.maximum(z, 0)

        # feature_linear fused into views_linears[0]
        h = jnp.maximum(dot(w32_ref[D - 1], h) + xviews + b_ref[D], 0)

        # views_linears[1 .. 2]
        for j in range(2):
            h = jnp.maximum(dot(w32_ref[D + j], h) + b_ref[D + 1 + j], 0)

        # rgb_linear (output rows padded to W; wrapper keeps the first OUTPUT_CH)
        z = dot(w32_ref[D + 2], h) + b_ref[D + 3]
        return z.astype(out_ref.dtype)[:OUT_PAD, :]

    # Two independent chunks per iteration: the LLO scheduler interleaves the
    # two serial matmul chains, hiding MXU fill/drain under VPU bias/ReLU work.
    def pair_body(p, carry):
        c0 = 2 * p
        out_ref[c0] = one_chunk(c0)
        out_ref[c0 + 1] = one_chunk(c0 + 1)
        return carry

    lax.fori_loop(0, n_chunks // 2, pair_body, 0)


# ---------------- wrapper -----------------------------------------------------
@functools.partial(jax.jit, static_argnames=("tm_chunks",))
def texture_mlp_pallas(x, packed, *, tm_chunks=32):
    """x: (N, C_IN) -> (N, OUTPUT_CH). tm_chunks*SUB samples per grid step."""
    n, c_in = x.shape
    assert c_in == C_IN
    assert tm_chunks % 2 == 0, "kernel interleaves chunk pairs"
    tm = tm_chunks * SUB
    n_pad = pl.cdiv(n, tm) * tm
    if n_pad != n:
        x = jnp.pad(x, ((0, n_pad - n), (0, 0)))
    nch = n_pad // SUB

    wx, w32, b = packed["wx"], packed["w32"], packed["b"]
    # samples -> lane axis: (nch, C_IN, SUB)
    # TODO(synk): an upstream producer emitting this layout directly would
    # remove this extra XLA transpose pass (one HBM round-trip of x).
    x_k = x.astype(wx.dtype).reshape(nch, SUB, C_IN).transpose(0, 2, 1)

    out = pl.pallas_call(
        texture_mlp_kernel,
        out_shape=jax.ShapeDtypeStruct((nch, OUT_PAD, SUB), jnp.float32),
        grid_spec=pltpu.PrefetchScalarGridSpec(
            num_scalar_prefetch=0,
            grid=(nch // tm_chunks,),
            in_specs=[
                pl.BlockSpec((tm_chunks, C_IN, SUB), lambda i: (i, 0, 0)),
                pl.BlockSpec(wx.shape, lambda i: (0, 0)),
                pl.BlockSpec(w32.shape, lambda i: (0, 0, 0)),
                pl.BlockSpec(b.shape, lambda i: (0, 0, 0)),
            ],
            out_specs=pl.BlockSpec((tm_chunks, OUT_PAD, SUB), lambda i: (i, 0, 0)),
        ),
        compiler_params=pltpu.CompilerParams(
            dimension_semantics=("parallel",),   # v7x: switch to CORE_PARALLEL if 1 TC idle
            vmem_limit_bytes=32 * 1024 * 1024,   # safe on v5e's 16 MiB scoped default
        ),
    )(x_k, wx, w32, b)

    # (nch, OUT_PAD, SUB) -> (N, OUTPUT_CH)
    out = out[:, :OUTPUT_CH, :].transpose(0, 2, 1).reshape(n_pad, OUTPUT_CH)
    return out[:n]


# ---------------- main --------------------------------------------------------
if __name__ == "__main__":
    key = jax.random.PRNGKey(0)
    k_param, k_x = jax.random.split(key)

    params = init_params(k_param)

    # 8 grid steps of tm_chunks*SUB = 8192 samples each: amortizes per-step
    # overhead and gives an even grid >= 8 for the two v7x TensorCores.
    N = 65536
    x = jax.random.normal(k_x, (N, C_IN), dtype=jnp.float32)

    ref = jax.block_until_ready(ref_forward(x, params))

    # f32 path: exact (up to rounding from the feature/views0 algebraic fusion)
    out_f32 = texture_mlp_pallas(x, pack_params(params, jnp.float32), tm_chunks=32)
    out_f32 = jax.block_until_ready(out_f32)
    assert out_f32.shape == (N, OUTPUT_CH)
    assert jnp.allclose(out_f32, ref, atol=1e-4, rtol=1e-4), "f32 mismatch vs reference"

    # bf16 end-to-end path (weights + activations + biases in bf16, f32 MXU
    # accumulation inside the MXU): looser tolerance.
    out_bf16 = texture_mlp_pallas(x, pack_params(params, jnp.bfloat16), tm_chunks=32)
    out_bf16 = jax.block_until_ready(out_bf16)
    assert out_bf16.shape == (N, OUTPUT_CH)
    assert jnp.allclose(out_bf16, ref, atol=1e-1, rtol=1e-1), "bf16 mismatch vs reference"

    print("KERNEL_OK")
</pallas_src>

<mosaic_0001>
module attributes {stable_mosaic.version = 11 : i64} {
  func.func @texture_mlp_kernel(%arg0: i32, %arg1: memref<32x8x256xf32, #tpu.memory_space<vmem>>, %arg2: memref<96x8xf32, #tpu.memory_space<vmem>>, %arg3: memref<11x32x32xf32, #tpu.memory_space<vmem>>, %arg4: memref<12x32x256xf32, #tpu.memory_space<vmem>>, %arg5: memref<32x8x256xf32, #tpu.memory_space<vmem>>) attributes {dimension_semantics = [#tpu.dimension_semantics<parallel>], iteration_bounds = array<i64: 8>, scalar_prefetch = 0 : i64, scratch_operands = 0 : i64, tpu.core_type = #tpu.core_type<tc>, window_params = [{transform_indices = @transform_0, window_bounds = array<i64: 32, 8, 256>}, {pipeline_mode = #tpu.pipeline_mode<synchronous>, transform_indices = @transform_1, window_bounds = array<i64: 96, 8>}, {pipeline_mode = #tpu.pipeline_mode<synchronous>, transform_indices = @transform_2, window_bounds = array<i64: 11, 32, 32>}, {pipeline_mode = #tpu.pipeline_mode<synchronous>, transform_indices = @transform_3, window_bounds = array<i64: 12, 32, 256>}, {transform_indices = @transform_4, window_bounds = array<i64: 32, 8, 256>}]} {
    %c0_i32 = arith.constant 0 : i32
    %c16_i32 = arith.constant 16 : i32
    %0 = arith.addi %c0_i32, %c16_i32 : i32
    %c1_i32 = arith.constant 1 : i32
    scf.for %arg6 = %c0_i32 to %0 step %c1_i32  : i32 {
      %c2_i32 = arith.constant 2 : i32
      %1 = arith.muli %c2_i32, %arg6 : i32
      %2 = arith.index_cast %1 : i32 to index
      %c0 = arith.constant 0 : index
      %c0_1 = arith.constant 0 : index
      %3 = vector.load %arg1[%2, %c0, %c0_1] : memref<32x8x256xf32, #tpu.memory_space<vmem>>, vector<1x8x256xf32>
      %4 = vector.shape_cast %3 : vector<1x8x256xf32> to vector<8x256xf32>
      %c0_2 = arith.constant 0 : index
      %c0_3 = arith.constant 0 : index
      %5 = vector.load %arg2[%c0_2, %c0_3] : memref<96x8xf32, #tpu.memory_space<vmem>>, vector<96x8xf32>
      %cst = arith.constant dense<0.000000e+00> : vector<96x256xf32>
      %6 = tpu.matmul %5, %4, %cst {dimension_numbers = #tpu.dot_dimension_numbers<[1], [0], [0], [1], [0, 0, 1, 1], [], []>} : vector<96x8xf32>, vector<8x256xf32>, vector<96x256xf32> -> vector<96x256xf32>
      %7 = vector.extract_strided_slice %6 {offsets = [0, 0], sizes = [32, 256], strides = [1, 1]} : vector<96x256xf32> to vector<32x256xf32>
      %8 = vector.extract_strided_slice %6 {offsets = [32, 0], sizes = [32, 256], strides = [1, 1]} : vector<96x256xf32> to vector<32x256xf32>
      %9 = vector.extract_strided_slice %6 {offsets = [64, 0], sizes = [32, 256], strides = [1, 1]} : vector<96x256xf32> to vector<32x256xf32>
      %c0_4 = arith.constant 0 : index
      %c0_5 = arith.constant 0 : index
      %c0_6 = arith.constant 0 : index
      %10 = vector.load %arg4[%c0_4, %c0_5, %c0_6] : memref<12x32x256xf32, #tpu.memory_space<vmem>>, vector<1x32x256xf32>
      %11 = vector.shape_cast %10 : vector<1x32x256xf32> to vector<32x256xf32>
      %12 = arith.addf %7, %11 : vector<32x256xf32>
      %cst_7 = arith.constant 0.000000e+00 : f32
      %13 = vector.broadcast %cst_7 : f32 to vector<32x256xf32>
      %14 = arith.maximumf %12, %13 : vector<32x256xf32>
      %c0_8 = arith.constant 0 : index
      %c0_9 = arith.constant 0 : index
      %c0_10 = arith.constant 0 : index
      %15 = vector.load %arg3[%c0_8, %c0_9, %c0_10] : memref<11x32x32xf32, #tpu.memory_space<vmem>>, vector<1x32x32xf32>
      %16 = vector.shape_cast %15 : vector<1x32x32xf32> to vector<32x32xf32>
      %cst_11 = arith.constant dense<0.000000e+00> : vector<32x256xf32>
      %17 = tpu.matmul %16, %14, %cst_11 {dimension_numbers = #tpu.dot_dimension_numbers<[1], [0], [0], [1], [0, 0, 1, 1], [], []>} : vector<32x32xf32>, vector<32x256xf32>, vector<32x256xf32> -> vector<32x256xf32>
      %c1 = arith.constant 1 : index
      %c0_12 = arith.constant 0 : index
      %c0_13 = arith.constant 0 : index
      %18 = vector.load %arg4[%c1, %c0_12, %c0_13] : memref<12x32x256xf32, #tpu.memory_space<vmem>>, vector<1x32x256xf32>
      %19 = vector.shape_cast %18 : vector<1x32x256xf32> to vector<32x256xf32>
      %20 = arith.addf %17, %19 : vector<32x256xf32>
      %cst_14 = arith.constant 0.000000e+00 : f32
      %21 = vector.broadcast %cst_14 : f32 to vector<32x256xf32>
      %22 = arith.maximumf %20, %21 : vector<32x256xf32>
      %c1_15 = arith.constant 1 : index
      %c0_16 = arith.constant 0 : index
      %c0_17 = arith.constant 0 : index
      %23 = vector.load %arg3[%c1_15, %c0_16, %c0_17] : memref<11x32x32xf32, #tpu.memory_space<vmem>>, vector<1x32x32xf32>
      %24 = vector.shape_cast %23 : vector<1x32x32xf32> to vector<32x32xf32>
      %cst_18 = arith.constant dense<0.000000e+00> : vector<32x256xf32>
      %25 = tpu.matmul %24, %22, %cst_18 {dimension_numbers = #tpu.dot_dimension_numbers<[1], [0], [0], [1], [0, 0, 1, 1], [], []>} : vector<32x32xf32>, vector<32x256xf32>, vector<32x256xf32> -> vector<32x256xf32>
      %c2 = arith.constant 2 : index
      %c0_19 = arith.constant 0 : index
      %c0_20 = arith.constant 0 : index
      %26 = vector.load %arg4[%c2, %c0_19, %c0_20] : memref<12x32x256xf32, #tpu.memory_space<vmem>>, vector<1x32x256xf32>
      %27 = vector.shape_cast %26 : vector<1x32x256xf32> to vector<32x256xf32>
      %28 = arith.addf %25, %27 : vector<32x256xf32>
      %cst_21 = arith.constant 0.000000e+00 : f32
      %29 = vector.broadcast %cst_21 : f32 to vector<32x256xf32>
      %30 = arith.maximumf %28, %29 : vector<32x256xf32>
      %c2_22 = arith.constant 2 : index
      %c0_23 = arith.constant 0 : index
      %c0_24 = arith.constant 0 : index
      %31 = vector.load %arg3[%c2_22, %c0_23, %c0_24] : memref<11x32x32xf32, #tpu.memory_space<vmem>>, vector<1x32x32xf32>
      %32 = vector.shape_cast %31 : vector<1x32x32xf32> to vector<32x32xf32>
      %cst_25 = arith.constant dense<0.000000e+00> : vector<32x256xf32>
      %33 = tpu.matmul %32, %30, %cst_25 {dimension_numbers = #tpu.dot_dimension_numbers<[1], [0], [0], [1], [0, 0, 1, 1], [], []>} : vector<32x32xf32>, vector<32x256xf32>, vector<32x256xf32> -> vector<32x256xf32>
      %c3 = arith.constant 3 : index
      %c0_26 = arith.constant 0 : index
      %c0_27 = arith.constant 0 : index
      %34 = vector.load %arg4[%c3, %c0_26, %c0_27] : memref<12x32x256xf32, #tpu.memory_space<vmem>>, vector<1x32x256xf32>
      %35 = vector.shape_cast %34 : vector<1x32x256xf32> to vector<32x256xf32>
      %36 = arith.addf %33, %35 : vector<32x256xf32>
      %cst_28 = arith.constant 0.000000e+00 : f32
      %37 = vector.broadcast %cst_28 : f32 to vector<32x256xf32>
      %38 = arith.maximumf %36, %37 : vector<32x256xf32>
      %c3_29 = arith.constant 3 : index
      %c0_30 = arith.constant 0 : index
      %c0_31 = arith.constant 0 : index
      %39 = vector.load %arg3[%c3_29, %c0_30, %c0_31] : memref<11x32x32xf32, #tpu.memory_space<vmem>>, vector<1x32x32xf32>
      %40 = vector.shape_cast %39 : vector<1x32x32xf32> to vector<32x32xf32>
      %cst_32 = arith.constant dense<0.000000e+00> : vector<32x256xf32>
      %41 = tpu.matmul %40, %38, %cst_32 {dimension_numbers = #tpu.dot_dimension_numbers<[1], [0], [0], [1], [0, 0, 1, 1], [], []>} : vector<32x32xf32>, vector<32x256xf32>, vector<32x256xf32> -> vector<32x256xf32>
      %c4 = arith.constant 4 : index
      %c0_33 = arith.constant 0 : index
      %c0_34 = arith.constant 0 : index
      %42 = vector.load %arg4[%c4, %c0_33, %c0_34] : memref<12x32x256xf32, #tpu.memory_space<vmem>>, vector<1x32x256xf32>
      %43 = vector.shape_cast %42 : vector<1x32x256xf32> to vector<32x256xf32>
      %44 = arith.addf %41, %43 : vector<32x256xf32>
      %cst_35 = arith.constant 0.000000e+00 : f32
      %45 = vector.broadcast %cst_35 : f32 to vector<32x256xf32>
      %46 = arith.maximumf %44, %45 : vector<32x256xf32>
      %c4_36 = arith.constant 4 : index
      %c0_37 = arith.constant 0 : index
      %c0_38 = arith.constant 0 : index
      %47 = vector.load %arg3[%c4_36, %c0_37, %c0_38] : memref<11x32x32xf32, #tpu.memory_space<vmem>>, vector<1x32x32xf32>
      %48 = vector.shape_cast %47 : vector<1x32x32xf32> to vector<32x32xf32>
      %cst_39 = arith.constant dense<0.000000e+00> : vector<32x256xf32>
      %49 = tpu.matmul %48, %46, %cst_39 {dimension_numbers = #tpu.dot_dimension_numbers<[1], [0], [0], [1], [0, 0, 1, 1], [], []>} : vector<32x32xf32>, vector<32x256xf32>, vector<32x256xf32> -> vector<32x256xf32>
      %c5 = arith.constant 5 : index
      %c0_40 = arith.constant 0 : index
      %c0_41 = arith.constant 0 : index
      %50 = vector.load %arg4[%c5, %c0_40, %c0_41] : memref<12x32x256xf32, #tpu.memory_space<vmem>>, vector<1x32x256xf32>
      %51 = vector.shape_cast %50 : vector<1x32x256xf32> to vector<32x256xf32>
      %52 = arith.addf %49, %51 : vector<32x256xf32>
      %53 = arith.addf %52, %8 : vector<32x256xf32>
      %cst_42 = arith.constant 0.000000e+00 : f32
      %54 = vector.broadcast %cst_42 : f32 to vector<32x256xf32>
      %55 = arith.maximumf %53, %54 : vector<32x256xf32>
      %c5_43 = arith.constant 5 : index
      %c0_44 = arith.constant 0 : index
      %c0_45 = arith.constant 0 : index
      %56 = vector.load %arg3[%c5_43, %c0_44, %c0_45] : memref<11x32x32xf32, #tpu.memory_space<vmem>>, vector<1x32x32xf32>
      %57 = vector.shape_cast %56 : vector<1x32x32xf32> to vector<32x32xf32>
      %cst_46 = arith.constant dense<0.000000e+00> : vector<32x256xf32>
      %58 = tpu.matmul %57, %55, %cst_46 {dimension_numbers = #tpu.dot_dimension_numbers<[1], [0], [0], [1], [0, 0, 1, 1], [], []>} : vector<32x32xf32>, vector<32x256xf32>, vector<32x256xf32> -> vector<32x256xf32>
      %c6 = arith.constant 6 : index
      %c0_47 = arith.constant 0 : index
      %c0_48 = arith.constant 0 : index
      %59 = vector.load %arg4[%c6, %c0_47, %c0_48] : memref<12x32x256xf32, #tpu.memory_space<vmem>>, vector<1x32x256xf32>
      %60 = vector.shape_cast %59 : vector<1x32x256xf32> to vector<32x256xf32>
      %61 = arith.addf %58, %60 : vector<32x256xf32>
      %cst_49 = arith.constant 0.000000e+00 : f32
      %62 = vector.broadcast %cst_49 : f32 to vector<32x256xf32>
      %63 = arith.maximumf %61, %62 : vector<32x256xf32>
      %c6_50 = arith.constant 6 : index
      %c0_51 = arith.constant 0 : index
      %c0_52 = arith.constant 0 : index
      %64 = vector.load %arg3[%c6_50, %c0_51, %c0_52] : memref<11x32x32xf32, #tpu.memory_space<vmem>>, vector<1x32x32xf32>
      %65 = vector.shape_cast %64 : vector<1x32x32xf32> to vector<32x32xf32>
      %cst_53 = arith.constant dense<0.000000e+00> : vector<32x256xf32>
      %66 = tpu.matmul %65, %63, %cst_53 {dimension_numbers = #tpu.dot_dimension_numbers<[1], [0], [0], [1], [0, 0, 1, 1], [], []>} : vector<32x32xf32>, vector<32x256xf32>, vector<32x256xf32> -> vector<32x256xf32>
      %c7 = arith.constant 7 : index
      %c0_54 = arith.constant 0 : index
      %c0_55 = arith.constant 0 : index
      %67 = vector.load %arg4[%c7, %c0_54, %c0_55] : memref<12x32x256xf32, #tpu.memory_space<vmem>>, vector<1x32x256xf32>
      %68 = vector.shape_cast %67 : vector<1x32x256xf32> to vector<32x256xf32>
      %69 = arith.addf %66, %68 : vector<32x256xf32>
      %cst_56 = arith.constant 0.000000e+00 : f32
      %70 = vector.broadcast %cst_56 : f32 to vector<32x256xf32>
      %71 = arith.maximumf %69, %70 : vector<32x256xf32>
      %c7_57 = arith.constant 7 : index
      %c0_58 = arith.constant 0 : index
      %c0_59 = arith.constant 0 : index
      %72 = vector.load %arg3[%c7_57, %c0_58, %c0_59] : memref<11x32x32xf32, #tpu.memory_space<vmem>>, vector<1x32x32xf32>
      %73 = vector.shape_cast %72 : vector<1x32x32xf32> to vector<32x32xf32>
      %cst_60 = arith.constant dense<0.000000e+00> : vector<32x256xf32>
      %74 = tpu.matmul %73, %71, %cst_60 {dimension_numbers = #tpu.dot_dimension_numbers<[1], [0], [0], [1], [0, 0, 1, 1], [], []>} : vector<32x32xf32>, vector<32x256xf32>, vector<32x256xf32> -> vector<32x256xf32>
      %75 = arith.addf %74, %9 : vector<32x256xf32>
      %c8 = arith.constant 8 : index
      %c0_61 = arith.constant 0 : index
      %c0_62 = arith.constant 0 : index
      %76 = vector.load %arg4[%c8, %c0_61, %c0_62] : memref<12x32x256xf32, #tpu.memory_space<vmem>>, vector<1x32x256xf32>
      %77 = vector.shape_cast %76 : vector<1x32x256xf32> to vector<32x256xf32>
      %78 = arith.addf %75, %77 : vector<32x256xf32>
      %cst_63 = arith.constant 0.000000e+00 : f32
      %79 = vector.broadcast %cst_63 : f32 to vector<32x256xf32>
      %80 = arith.maximumf %78, %79 : vector<32x256xf32>
      %c8_64 = arith.constant 8 : index
      %c0_65 = arith.constant 0 : index
      %c0_66 = arith.constant 0 : index
      %81 = vector.load %arg3[%c8_64, %c0_65, %c0_66] : memref<11x32x32xf32, #tpu.memory_space<vmem>>, vector<1x32x32xf32>
      %82 = vector.shape_cast %81 : vector<1x32x32xf32> to vector<32x32xf32>
      %cst_67 = arith.constant dense<0.000000e+00> : vector<32x256xf32>
      %83 = tpu.matmul %82, %80, %cst_67 {dimension_numbers = #tpu.dot_dimension_numbers<[1], [0], [0], [1], [0, 0, 1, 1], [], []>} : vector<32x32xf32>, vector<32x256xf32>, vector<32x256xf32> -> vector<32x256xf32>
      %c9 = arith.constant 9 : index
      %c0_68 = arith.constant 0 : index
      %c0_69 = arith.constant 0 : index
      %84 = vector.load %arg4[%c9, %c0_68, %c0_69] : memref<12x32x256xf32, #tpu.memory_space<vmem>>, vector<1x32x256xf32>
      %85 = vector.shape_cast %84 : vector<1x32x256xf32> to vector<32x256xf32>
      %86 = arith.addf %83, %85 : vector<32x256xf32>
      %cst_70 = arith.constant 0.000000e+00 : f32
      %87 = vector.broadcast %cst_70 : f32 to vector<32x256xf32>
      %88 = arith.maximumf %86, %87 : vector<32x256xf32>
      %c9_71 = arith.constant 9 : index
      %c0_72 = arith.constant 0 : index
      %c0_73 = arith.constant 0 : index
      %89 = vector.load %arg3[%c9_71, %c0_72, %c0_73] : memref<11x32x32xf32, #tpu.memory_space<vmem>>, vector<1x32x32xf32>
      %90 = vector.shape_cast %89 : vector<1x32x32xf32> to vector<32x32xf32>
      %cst_74 = arith.constant dense<0.000000e+00> : vector<32x256xf32>
      %91 = tpu.matmul %90, %88, %cst_74 {dimension_numbers = #tpu.dot_dimension_numbers<[1], [0], [0], [1], [0, 0, 1, 1], [], []>} : vector<32x32xf32>, vector<32x256xf32>, vector<32x256xf32> -> vector<32x256xf32>
      %c10 = arith.constant 10 : index
      %c0_75 = arith.constant 0 : index
      %c0_76 = arith.constant 0 : index
      %92 = vector.load %arg4[%c10, %c0_75, %c0_76] : memref<12x32x256xf32, #tpu.memory_space<vmem>>, vector<1x32x256xf32>
      %93 = vector.shape_cast %92 : vector<1x32x256xf32> to vector<32x256xf32>
      %94 = arith.addf %91, %93 : vector<32x256xf32>
      %cst_77 = arith.constant 0.000000e+00 : f32
      %95 = vector.broadcast %cst_77 : f32 to vector<32x256xf32>
      %96 = arith.maximumf %94, %95 : vector<32x256xf32>
      %c10_78 = arith.constant 10 : index
      %c0_79 = arith.constant 0 : index
      %c0_80 = arith.constant 0 : index
      %97 = vector.load %arg3[%c10_78, %c0_79, %c0_80] : memref<11x32x32xf32, #tpu.memory_space<vmem>>, vector<1x32x32xf32>
      %98 = vector.shape_cast %97 : vector<1x32x32xf32> to vector<32x32xf32>
      %cst_81 = arith.constant dense<0.000000e+00> : vector<32x256xf32>
      %99 = tpu.matmul %98, %96, %cst_81 {dimension_numbers = #tpu.dot_dimension_numbers<[1], [0], [0], [1], [0, 0, 1, 1], [], []>} : vector<32x32xf32>, vector<32x256xf32>, vector<32x256xf32> -> vector<32x256xf32>
      %c11 = arith.constant 11 : index
      %c0_82 = arith.constant 0 : index
      %c0_83 = arith.constant 0 : index
      %100 = vector.load %arg4[%c11, %c0_82, %c0_83] : memref<12x32x256xf32, #tpu.memory_space<vmem>>, vector<1x32x256xf32>
      %101 = vector.shape_cast %100 : vector<1x32x256xf32> to vector<32x256xf32>
      %102 = arith.addf %99, %101 : vector<32x256xf32>
      %103 = vector.extract_strided_slice %102 {offsets = [0, 0], sizes = [8, 256], strides = [1, 1]} : vector<32x256xf32> to vector<8x256xf32>
      %104 = arith.index_cast %1 : i32 to index
      %c0_84 = arith.constant 0 : index
      %c0_85 = arith.constant 0 : index
      %105 = vector.load %arg5[%104, %c0_84, %c0_85] : memref<32x8x256xf32, #tpu.memory_space<vmem>>, vector<1x8x256xf32>
      %106 = vector.shape_cast %105 : vector<1x8x256xf32> to vector<8x256xf32>
      %107 = vector.shape_cast %103 : vector<8x256xf32> to vector<1x8x256xf32>
      tpu.vector_store %arg5[%104, %c0_84, %c0_85], %107 {strides = array<i32>} : memref<32x8x256xf32, #tpu.memory_space<vmem>>, vector<1x8x256xf32>,
      %c1_i32_86 = arith.constant 1 : i32
      %108 = arith.addi %1, %c1_i32_86 : i32
      %109 = arith.index_cast %108 : i32 to index
      %c0_87 = arith.constant 0 : index
      %c0_88 = arith.constant 0 : index
      %110 = vector.load %arg1[%109, %c0_87, %c0_88] : memref<32x8x256xf32, #tpu.memory_space<vmem>>, vector<1x8x256xf32>
      %111 = vector.shape_cast %110 : vector<1x8x256xf32> to vector<8x256xf32>
      %c0_89 = arith.constant 0 : index
      %c0_90 = arith.constant 0 : index
      %112 = vector.load %arg2[%c0_89, %c0_90] : memref<96x8xf32, #tpu.memory_space<vmem>>, vector<96x8xf32>
      %cst_91 = arith.constant dense<0.000000e+00> : vector<96x256xf32>
      %113 = tpu.matmul %112, %111, %cst_91 {dimension_numbers = #tpu.dot_dimension_numbers<[1], [0], [0], [1], [0, 0, 1, 1], [], []>} : vector<96x8xf32>, vector<8x256xf32>, vector<96x256xf32> -> vector<96x256xf32>
      %114 = vector.extract_strided_slice %113 {offsets = [0, 0], sizes = [32, 256], strides = [1, 1]} : vector<96x256xf32> to vector<32x256xf32>
      %115 = vector.extract_strided_slice %113 {offsets = [32, 0], sizes = [32, 256], strides = [1, 1]} : vector<96x256xf32> to vector<32x256xf32>
      %116 = vector.extract_strided_slice %113 {offsets = [64, 0], sizes = [32, 256], strides = [1, 1]} : vector<96x256xf32> to vector<32x256xf32>
      %c0_92 = arith.constant 0 : index
      %c0_93 = arith.constant 0 : index
      %c0_94 = arith.constant 0 : index
      %117 = vector.load %arg4[%c0_92, %c0_93, %c0_94] : memref<12x32x256xf32, #tpu.memory_space<vmem>>, vector<1x32x256xf32>
      %118 = vector.shape_cast %117 : vector<1x32x256xf32> to vector<32x256xf32>
      %119 = arith.addf %114, %118 : vector<32x256xf32>
      %cst_95 = arith.constant 0.000000e+00 : f32
      %120 = vector.broadcast %cst_95 : f32 to vector<32x256xf32>
      %121 = arith.maximumf %119, %120 : vector<32x256xf32>
      %c0_96 = arith.constant 0 : index
      %c0_97 = arith.constant 0 : index
      %c0_98 = arith.constant 0 : index
      %122 = vector.load %arg3[%c0_96, %c0_97, %c0_98] : memref<11x32x32xf32, #tpu.memory_space<vmem>>, vector<1x32x32xf32>
      %123 = vector.shape_cast %122 : vector<1x32x32xf32> to vector<32x32xf32>
      %cst_99 = arith.constant dense<0.000000e+00> : vector<32x256xf32>
      %124 = tpu.matmul %123, %121, %cst_99 {dimension_numbers = #tpu.dot_dimension_numbers<[1], [0], [0], [1], [0, 0, 1, 1], [], []>} : vector<32x32xf32>, vector<32x256xf32>, vector<32x256xf32> -> vector<32x256xf32>
      %c1_100 = arith.constant 1 : index
      %c0_101 = arith.constant 0 : index
      %c0_102 = arith.constant 0 : index
      %125 = vector.load %arg4[%c1_100, %c0_101, %c0_102] : memref<12x32x256xf32, #tpu.memory_space<vmem>>, vector<1x32x256xf32>
      %126 = vector.shape_cast %125 : vector<1x32x256xf32> to vector<32x256xf32>
      %127 = arith.addf %124, %126 : vector<32x256xf32>
      %cst_103 = arith.constant 0.000000e+00 : f32
      %128 = vector.broadcast %cst_103 : f32 to vector<32x256xf32>
      %129 = arith.maximumf %127, %128 : vector<32x256xf32>
      %c1_104 = arith.constant 1 : index
      %c0_105 = arith.constant 0 : index
      %c0_106 = arith.constant 0 : index
      %130 = vector.load %arg3[%c1_104, %c0_105, %c0_106] : memref<11x32x32xf32, #tpu.memory_space<vmem>>, vector<1x32x32xf32>
      %131 = vector.shape_cast %130 : vector<1x32x32xf32> to vector<32x32xf32>
      %cst_107 = arith.constant dense<0.000000e+00> : vector<32x256xf32>
      %132 = tpu.matmul %131, %129, %cst_107 {dimension_numbers = #tpu.dot_dimension_numbers<[1], [0], [0], [1], [0, 0, 1, 1], [], []>} : vector<32x32xf32>, vector<32x256xf32>, vector<32x256xf32> -> vector<32x256xf32>
      %c2_108 = arith.constant 2 : index
      %c0_109 = arith.constant 0 : index
      %c0_110 = arith.constant 0 : index
      %133 = vector.load %arg4[%c2_108, %c0_109, %c0_110] : memref<12x32x256xf32, #tpu.memory_space<vmem>>, vector<1x32x256xf32>
      %134 = vector.shape_cast %133 : vector<1x32x256xf32> to vector<32x256xf32>
      %135 = arith.addf %132, %134 : vector<32x256xf32>
      %cst_111 = arith.constant 0.000000e+00 : f32
      %136 = vector.broadcast %cst_111 : f32 to vector<32x256xf32>
      %137 = arith.maximumf %135, %136 : vector<32x256xf32>
      %c2_112 = arith.constant 2 : index
      %c0_113 = arith.constant 0 : index
      %c0_114 = arith.constant 0 : index
      %138 = vector.load %arg3[%c2_112, %c0_113, %c0_114] : memref<11x32x32xf32, #tpu.memory_space<vmem>>, vector<1x32x32xf32>
      %139 = vector.shape_cast %138 : vector<1x32x32xf32> to vector<32x32xf32>
      %cst_115 = arith.constant dense<0.000000e+00> : vector<32x256xf32>
      %140 = tpu.matmul %139, %137, %cst_115 {dimension_numbers = #tpu.dot_dimension_numbers<[1], [0], [0], [1], [0, 0, 1, 1], [], []>} : vector<32x32xf32>, vector<32x256xf32>, vector<32x256xf32> -> vector<32x256xf32>
      %c3_116 = arith.constant 3 : index
      %c0_117 = arith.constant 0 : index
      %c0_118 = arith.constant 0 : index
      %141 = vector.load %arg4[%c3_116, %c0_117, %c0_118] : memref<12x32x256xf32, #tpu.memory_space<vmem>>, vector<1x32x256xf32>
      %142 = vector.shape_cast %141 : vector<1x32x256xf32> to vector<32x256xf32>
      %143 = arith.addf %140, %142 : vector<32x256xf32>
      %cst_119 = arith.constant 0.000000e+00 : f32
      %144 = vector.broadcast %cst_119 : f32 to vector<32x256xf32>
      %145 = arith.maximumf %143, %144 : vector<32x256xf32>
      %c3_120 = arith.constant 3 : index
      %c0_121 = arith.constant 0 : index
      %c0_122 = arith.constant 0 : index
      %146 = vector.load %arg3[%c3_120, %c0_121, %c0_122] : memref<11x32x32xf32, #tpu.memory_space<vmem>>, vector<1x32x32xf32>
      %147 = vector.shape_cast %146 : vector<1x32x32xf32> to vector<32x32xf32>
      %cst_123 = arith.constant dense<0.000000e+00> : vector<32x256xf32>
      %148 = tpu.matmul %147, %145, %cst_123 {dimension_numbers = #tpu.dot_dimension_numbers<[1], [0], [0], [1], [0, 0, 1, 1], [], []>} : vector<32x32xf32>, vector<32x256xf32>, vector<32x256xf32> -> vector<32x256xf32>
      %c4_124 = arith.constant 4 : index
      %c0_125 = arith.constant 0 : index
      %c0_126 = arith.constant 0 : index
      %149 = vector.load %arg4[%c4_124, %c0_125, %c0_126] : memref<12x32x256xf32, #tpu.memory_space<vmem>>, vector<1x32x256xf32>
      %150 = vector.shape_cast %149 : vector<1x32x256xf32> to vector<32x256xf32>
      %151 = arith.addf %148, %150 : vector<32x256xf32>
      %cst_127 = arith.constant 0.000000e+00 : f32
      %152 = vector.broadcast %cst_127 : f32 to vector<32x256xf32>
      %153 = arith.maximumf %151, %152 : vector<32x256xf32>
      %c4_128 = arith.constant 4 : index
      %c0_129 = arith.constant 0 : index
      %c0_130 = arith.constant 0 : index
      %154 = vector.load %arg3[%c4_128, %c0_129, %c0_130] : memref<11x32x32xf32, #tpu.memory_space<vmem>>, vector<1x32x32xf32>
      %155 = vector.shape_cast %154 : vector<1x32x32xf32> to vector<32x32xf32>
      %cst_131 = arith.constant dense<0.000000e+00> : vector<32x256xf32>
      %156 = tpu.matmul %155, %153, %cst_131 {dimension_numbers = #tpu.dot_dimension_numbers<[1], [0], [0], [1], [0, 0, 1, 1], [], []>} : vector<32x32xf32>, vector<32x256xf32>, vector<32x256xf32> -> vector<32x256xf32>
      %c5_132 = arith.constant 5 : index
      %c0_133 = arith.constant 0 : index
      %c0_134 = arith.constant 0 : index
      %157 = vector.load %arg4[%c5_132, %c0_133, %c0_134] : memref<12x32x256xf32, #tpu.memory_space<vmem>>, vector<1x32x256xf32>
      %158 = vector.shape_cast %157 : vector<1x32x256xf32> to vector<32x256xf32>
      %159 = arith.addf %156, %158 : vector<32x256xf32>
      %160 = arith.addf %159, %115 : vector<32x256xf32>
      %cst_135 = arith.constant 0.000000e+00 : f32
      %161 = vector.broadcast %cst_135 : f32 to vector<32x256xf32>
      %162 = arith.maximumf %160, %161 : vector<32x256xf32>
      %c5_136 = arith.constant 5 : index
      %c0_137 = arith.constant 0 : index
      %c0_138 = arith.constant 0 : index
      %163 = vector.load %arg3[%c5_136, %c0_137, %c0_138] : memref<11x32x32xf32, #tpu.memory_space<vmem>>, vector<1x32x32xf32>
      %164 = vector.shape_cast %163 : vector<1x32x32xf32> to vector<32x32xf32>
      %cst_139 = arith.constant dense<0.000000e+00> : vector<32x256xf32>
      %165 = tpu.matmul %164, %162, %cst_139 {dimension_numbers = #tpu.dot_dimension_numbers<[1], [0], [0], [1], [0, 0, 1, 1], [], []>} : vector<32x32xf32>, vector<32x256xf32>, vector<32x256xf32> -> vector<32x256xf32>
      %c6_140 = arith.constant 6 : index
      %c0_141 = arith.constant 0 : index
      %c0_142 = arith.constant 0 : index
      %166 = vector.load %arg4[%c6_140, %c0_141, %c0_142] : memref<12x32x256xf32, #tpu.memory_space<vmem>>, vector<1x32x256xf32>
      %167 = vector.shape_cast %166 : vector<1x32x256xf32> to vector<32x256xf32>
      %168 = arith.addf %165, %167 : vector<32x256xf32>
      %cst_143 = arith.constant 0.000000e+00 : f32
      %169 = vector.broadcast %cst_143 : f32 to vector<32x256xf32>
      %170 = arith.maximumf %168, %169 : vector<32x256xf32>
      %c6_144 = arith.constant 6 : index
      %c0_145 = arith.constant 0 : index
      %c0_146 = arith.constant 0 : index
      %171 = vector.load %arg3[%c6_144, %c0_145, %c0_146] : memref<11x32x32xf32, #tpu.memory_space<vmem>>, vector<1x32x32xf32>
      %172 = vector.shape_cast %171 : vector<1x32x32xf32> to vector<32x32xf32>
      %cst_147 = arith.constant dense<0.000000e+00> : vector<32x256xf32>
      %173 = tpu.matmul %172, %170, %cst_147 {dimension_numbers = #tpu.dot_dimension_numbers<[1], [0], [0], [1], [0, 0, 1, 1], [], []>} : vector<32x32xf32>, vector<32x256xf32>, vector<32x256xf32> -> vector<32x256xf32>
      %c7_148 = arith.constant 7 : index
      %c0_149 = arith.constant 0 : index
      %c0_150 = arith.constant 0 : index
      %174 = vector.load %arg4[%c7_148, %c0_149, %c0_150] : memref<12x32x256xf32, #tpu.memory_space<vmem>>, vector<1x32x256xf32>
      %175 = vector.shape_cast %174 : vector<1x32x256xf32> to vector<32x256xf32>
      %176 = arith.addf %173, %175 : vector<32x256xf32>
      %cst_151 = arith.constant 0.000000e+00 : f32
      %177 = vector.broadcast %cst_151 : f32 to vector<32x256xf32>
      %178 = arith.maximumf %176, %177 : vector<32x256xf32>
      %c7_152 = arith.constant 7 : index
      %c0_153 = arith.constant 0 : index
      %c0_154 = arith.constant 0 : index
      %179 = vector.load %arg3[%c7_152, %c0_153, %c0_154] : memref<11x32x32xf32, #tpu.memory_space<vmem>>, vector<1x32x32xf32>
      %180 = vector.shape_cast %179 : vector<1x32x32xf32> to vector<32x32xf32>
      %cst_155 = arith.constant dense<0.000000e+00> : vector<32x256xf32>
      %181 = tpu.matmul %180, %178, %cst_155 {dimension_numbers = #tpu.dot_dimension_numbers<[1], [0], [0], [1], [0, 0, 1, 1], [], []>} : vector<32x32xf32>, vector<32x256xf32>, vector<32x256xf32> -> vector<32x256xf32>
      %182 = arith.addf %181, %116 : vector<32x256xf32>
      %c8_156 = arith.constant 8 : index
      %c0_157 = arith.constant 0 : index
      %c0_158 = arith.constant 0 : index
      %183 = vector.load %arg4[%c8_156, %c0_157, %c0_158] : memref<12x32x256xf32, #tpu.memory_space<vmem>>, vector<1x32x256xf32>
      %184 = vector.shape_cast %183 : vector<1x32x256xf32> to vector<32x256xf32>
      %185 = arith.addf %182, %184 : vector<32x256xf32>
      %cst_159 = arith.constant 0.000000e+00 : f32
      %186 = vector.broadcast %cst_159 : f32 to vector<32x256xf32>
      %187 = arith.maximumf %185, %186 : vector<32x256xf32>
      %c8_160 = arith.constant 8 : index
      %c0_161 = arith.constant 0 : index
      %c0_162 = arith.constant 0 : index
      %188 = vector.load %arg3[%c8_160, %c0_161, %c0_162] : memref<11x32x32xf32, #tpu.memory_space<vmem>>, vector<1x32x32xf32>
      %189 = vector.shape_cast %188 : vector<1x32x32xf32> to vector<32x32xf32>
      %cst_163 = arith.constant dense<0.000000e+00> : vector<32x256xf32>
      %190 = tpu.matmul %189, %187, %cst_163 {dimension_numbers = #tpu.dot_dimension_numbers<[1], [0], [0], [1], [0, 0, 1, 1], [], []>} : vector<32x32xf32>, vector<32x256xf32>, vector<32x256xf32> -> vector<32x256xf32>
      %c9_164 = arith.constant 9 : index
      %c0_165 = arith.constant 0 : index
      %c0_166 = arith.constant 0 : index
      %191 = vector.load %arg4[%c9_164, %c0_165, %c0_166] : memref<12x32x256xf32, #tpu.memory_space<vmem>>, vector<1x32x256xf32>
      %192 = vector.shape_cast %191 : vector<1x32x256xf32> to vector<32x256xf32>
      %193 = arith.addf %190, %192 : vector<32x256xf32>
      %cst_167 = arith.constant 0.000000e+00 : f32
      %194 = vector.broadcast %cst_167 : f32 to vector<32x256xf32>
      %195 = arith.maximumf %193, %194 : vector<32x256xf32>
      %c9_168 = arith.constant 9 : index
      %c0_169 = arith.constant 0 : index
      %c0_170 = arith.constant 0 : index
      %196 = vector.load %arg3[%c9_168, %c0_169, %c0_170] : memref<11x32x32xf32, #tpu.memory_space<vmem>>, vector<1x32x32xf32>
      %197 = vector.shape_cast %196 : vector<1x32x32xf32> to vector<32x32xf32>
      %cst_171 = arith.constant dense<0.000000e+00> : vector<32x256xf32>
      %198 = tpu.matmul %197, %195, %cst_171 {dimension_numbers = #tpu.dot_dimension_numbers<[1], [0], [0], [1], [0, 0, 1, 1], [], []>} : vector<32x32xf32>, vector<32x256xf32>, vector<32x256xf32> -> vector<32x256xf32>
      %c10_172 = arith.constant 10 : index
      %c0_173 = arith.constant 0 : index
      %c0_174 = arith.constant 0 : index
      %199 = vector.load %arg4[%c10_172, %c0_173, %c0_174] : memref<12x32x256xf32, #tpu.memory_space<vmem>>, vector<1x32x256xf32>
      %200 = vector.shape_cast %199 : vector<1x32x256xf32> to vector<32x256xf32>
      %201 = arith.addf %198, %200 : vector<32x256xf32>
      %cst_175 = arith.constant 0.000000e+00 : f32
      %202 = vector.broadcast %cst_175 : f32 to vector<32x256xf32>
      %203 = arith.maximumf %201, %202 : vector<32x256xf32>
      %c10_176 = arith.constant 10 : index
      %c0_177 = arith.constant 0 : index
      %c0_178 = arith.constant 0 : index
      %204 = vector.load %arg3[%c10_176, %c0_177, %c0_178] : memref<11x32x32xf32, #tpu.memory_space<vmem>>, vector<1x32x32xf32>
      %205 = vector.shape_cast %204 : vector<1x32x32xf32> to vector<32x32xf32>
      %cst_179 = arith.constant dense<0.000000e+00> : vector<32x256xf32>
      %206 = tpu.matmul %205, %203, %cst_179 {dimension_numbers = #tpu.dot_dimension_numbers<[1], [0], [0], [1], [0, 0, 1, 1], [], []>} : vector<32x32xf32>, vector<32x256xf32>, vector<32x256xf32> -> vector<32x256xf32>
      %c11_180 = arith.constant 11 : index
      %c0_181 = arith.constant 0 : index
      %c0_182 = arith.constant 0 : index
      %207 = vector.load %arg4[%c11_180, %c0_181, %c0_182] : memref<12x32x256xf32, #tpu.memory_space<vmem>>, vector<1x32x256xf32>
      %208 = vector.shape_cast %207 : vector<1x32x256xf32> to vector<32x256xf32>
      %209 = arith.addf %206, %208 : vector<32x256xf32>
      %210 = vector.extract_strided_slice %209 {offsets = [0, 0], sizes = [8, 256], strides = [1, 1]} : vector<32x256xf32> to vector<8x256xf32>
      %c1_i32_183 = arith.constant 1 : i32
      %211 = arith.addi %1, %c1_i32_183 : i32
      %212 = arith.index_cast %211 : i32 to index
      %c0_184 = arith.constant 0 : index
      %c0_185 = arith.constant 0 : index
      %213 = vector.load %arg5[%212, %c0_184, %c0_185] : memref<32x8x256xf32, #tpu.memory_space<vmem>>, vector<1x8x256xf32>
      %214 = vector.shape_cast %213 : vector<1x8x256xf32> to vector<8x256xf32>
      %215 = vector.shape_cast %210 : vector<8x256xf32> to vector<1x8x256xf32>
      tpu.vector_store %arg5[%212, %c0_184, %c0_185], %215 {strides = array<i32>} : memref<32x8x256xf32, #tpu.memory_space<vmem>>, vector<1x8x256xf32>,
    }
    %c16_i32_0 = arith.constant 16 : i32
    return
  }
  func.func @transform_0(%arg0: i32) -> (i32, i32, i32) {
    %c0_i32 = arith.constant 0 : i32
    %c0_i32_0 = arith.constant 0 : i32
    %c0_i32_1 = arith.constant 0 : i32
    return %arg0, %c0_i32, %c0_i32_0 : i32, i32, i32
  }
  func.func @transform_1(%arg0: i32) -> (i32, i32) {
    %c0_i32 = arith.constant 0 : i32
    %c0_i32_0 = arith.constant 0 : i32
    %c0_i32_1 = arith.constant 0 : i32
    return %c0_i32, %c0_i32_0 : i32, i32
  }
  func.func @transform_2(%arg0: i32) -> (i32, i32, i32) {
    %c0_i32 = arith.constant 0 : i32
    %c0_i32_0 = arith.constant 0 : i32
    %c0_i32_1 = arith.constant 0 : i32
    %c0_i32_2 = arith.constant 0 : i32
    return %c0_i32, %c0_i32_0, %c0_i32_1 : i32, i32, i32
  }
  func.func @transform_3(%arg0: i32) -> (i32, i32, i32) {
    %c0_i32 = arith.constant 0 : i32
    %c0_i32_0 = arith.constant 0 : i32
    %c0_i32_1 = arith.constant 0 : i32
    %c0_i32_2 = arith.constant 0 : i32
    return %c0_i32, %c0_i32_0, %c0_i32_1 : i32, i32, i32
  }
  func.func @transform_4(%arg0: i32) -> (i32, i32, i32) {
    %c0_i32 = arith.constant 0 : i32
    %c0_i32_0 = arith.constant 0 : i32
    %c0_i32_1 = arith.constant 0 : i32
    return %arg0, %c0_i32, %c0_i32_0 : i32, i32, i32
  }
}

</mosaic_0001>

<llo_original>
// kernel: texture_mlp_pallas.1
$region0: #{texture_mlp_pallas.1}
  #allocation0 [shape = 'u32[]', space=smem, size = 0x4, offset = 0x4, fixed_abs, tag = 'smem constant byte address 0x4 - core index']
  #allocation1 [shape = 'u32[144,128]{1,0:T(1,128)}', space=vmem, size = 0x12000, scoped, tag = 'internal scratch']
  %s0 = inlined_call_operand.hbm [shape: f32[256,8,256], index: 0, kind: input, shape index: {}]
  %s1 = inlined_call_operand.vmem [shape: f32[96,8], index: 1, kind: input, shape index: {}]
  %s2 = inlined_call_operand.hbm [shape: f32[11,32,32], index: 2, kind: input, shape index: {}]
  %s3 = inlined_call_operand.hbm [shape: f32[12,32,256], index: 3, kind: input, shape index: {}]
  %s4 = inlined_call_operand.vmem [shape: f32[256,8,256], index: 4, kind: output, shape index: {}]
  %s5 = sld [smem:[#allocation0]]
  $region68: #{texture_mlp_pallas.1} parent=0
    _
  %s7 = ssub.s32 1, %s5
  %s8 = scalar_select 0, %s7, %s5
  $region1: #{texture_mlp_pallas.1} parent=0
    #allocation2 [shape = 'u8[524288]{0}', space=vmem, size = 0x80000, scoped, tag = 'input window, operand 0']
    #allocation3 [shape = 's32[2]{0}', space=sflag, size = 0x8, scoped, tag = 'scoped memory for texture_mlp_pallas.1']
    #allocation4 [shape = 'u8[180224]{0}', space=vmem, size = 0x2c000, scoped, tag = 'input window, operand 2, single buffered']
    #allocation5 [shape = 's32[1]{0}', space=sflag, size = 0x4, scoped, tag = 'scoped memory for texture_mlp_pallas.1']
    #allocation6 [shape = 'u8[393216]{0}', space=vmem, size = 0x60000, scoped, tag = 'input window, operand 3, single buffered']
    %9 = vsyncpa [#allocation3], 0
    %s10 = scalar_lea.sflag [#allocation3], 1
    %11 = vsyncpa %s10, 0
    %12 = vsyncpa [#allocation5], 0
    loop: start=0, step=1, limit=10
    $region2: #{texture_mlp_pallas.1} parent=1 // loop_pre_header
      _
    $region3: #{texture_mlp_pallas.1} parent=1 // loop_header
      %s14 = sphi 0, %s18
      %p15 = scmp.ge.s32.totalorder %s14, 10
      %s24 = sphi 0, %s26
      %s27 = sphi 0, %s24
      %s28 = sphi 0, %s27
      %s44 = sphi 0, %s28
      %s48 = sphi 0, %s48
      %s50 = sphi 0, %s48
      %s51 = sphi 0, %s50
      %s65 = sphi 0, %s51
      %s69 = sphi 0, %s69
      %s71 = sphi 0, %s69
      %s72 = sphi 0, %s71
      %s86 = sphi 0, %s72
      %s90 = sphi 0, %s90
      %s92 = sphi 0, %s90
      %s93 = sphi 0, %s92
      %s107 = sphi 0, %s93
      %s113 = sphi 0, %s115
      %s116 = sphi 0, %s113
      %s117 = sphi 0, %s116
      %s133 = sphi 0, %s117
    $region4: #{texture_mlp_pallas.1} parent=1 // loop_header_branch
      %17 = sbr.rel (%p15) target = $region8
    $region5: #{texture_mlp_pallas.1} parent=1 // loop_body
      %s19 = ssub.s32 %s14, 1
      %s20 = ssub.s32 %s14, 2
      %s21 = sadd.s32 %s14, 1
      %s22 = ssub.s32 %s14, %s21
      %p23 = scmp.eq.s32.totalorder %s22, 0
      %s25 = sadd.s32 %s24, 1
      %s26 = scalar_select %p23, %s24, %s25
      %p29 = pneg %p23
      %p30 = scmp.eq.s32.totalorder %s14, 7
      %p31 = por %p29, %p30
      %p32 = scmp.ne.s32.totalorder %s24, %s27
      %p33 = scmp.eq.s32.totalorder %s14, 0
      %p34 = por %p32, %p33
      %p35 = scmp.ne.s32.totalorder %s24, %s27
      %p36 = scmp.eq.s32.totalorder %s19, 7
      %p37 = por %p35, %p36
      %p38 = scmp.ne.s32.totalorder %s27, %s28
      %p39 = scmp.eq.s32.totalorder %s19, 0
      %p40 = por %p38, %p39
      %p41 = scmp.ne.s32.totalorder %s27, %s28
      %p42 = scmp.eq.s32.totalorder %s20, 7
      %p43 = por %p41, %p42
      %p45 = scmp.ne.s32.totalorder %s28, %s44
      %p46 = scmp.eq.s32.totalorder %s20, 0
      %p47 = por %p45, %p46
      %s49 = sadd.s32 %s48, 1
      %p52 = scmp.eq.s32.totalorder %s14, 7
      %p53 = scmp.ne.s32.totalorder %s48, %s50
      %p54 = scmp.eq.s32.totalorder %s14, 0
      %p55 = por %p53, %p54
      %p56 = scmp.ne.s32.totalorder %s48, %s50
      %p57 = scmp.eq.s32.totalorder %s19, 7
      %p58 = por %p56, %p57
      %p59 = scmp.ne.s32.totalorder %s50, %s51
      %p60 = scmp.eq.s32.totalorder %s19, 0
      %p61 = por %p59, %p60
      %p62 = scmp.ne.s32.totalorder %s50, %s51
      %p63 = scmp.eq.s32.totalorder %s20, 7
      %p64 = por %p62, %p63
      %p66 = scmp.ne.s32.totalorder %s51, %s65
      %p67 = scmp.eq.s32.totalorder %s20, 0
      %p68 = por %p66, %p67
      %s70 = sadd.s32 %s69, 1
      %p73 = scmp.eq.s32.totalorder %s14, 7
      %p74 = scmp.ne.s32.totalorder %s69, %s71
      %p75 = scmp.eq.s32.totalorder %s14, 0
      %p76 = por %p74, %p75
      %p77 = scmp.ne.s32.totalorder %s69, %s71
      %p78 = scmp.eq.s32.totalorder %s19, 7
      %p79 = por %p77, %p78
      %p80 = scmp.ne.s32.totalorder %s71, %s72
      %p81 = scmp.eq.s32.totalorder %s19, 0
      %p82 = por %p80, %p81
      %p83 = scmp.ne.s32.totalorder %s71, %s72
      %p84 = scmp.eq.s32.totalorder %s20, 7
      %p85 = por %p83, %p84
      %p87 = scmp.ne.s32.totalorder %s72, %s86
      %p88 = scmp.eq.s32.totalorder %s20, 0
      %p89 = por %p87, %p88
      %s91 = sadd.s32 %s90, 1
      %p94 = scmp.eq.s32.totalorder %s14, 7
      %p95 = scmp.ne.s32.totalorder %s90, %s92
      %p96 = scmp.eq.s32.totalorder %s14, 0
      %p97 = por %p95, %p96
      %p98 = scmp.ne.s32.totalorder %s90, %s92
      %p99 = scmp.eq.s32.totalorder %s19, 7
      %p100 = por %p98, %p99
      %p101 = scmp.ne.s32.totalorder %s92, %s93
      %p102 = scmp.eq.s32.totalorder %s19, 0
      %p103 = por %p101, %p102
      %p104 = scmp.ne.s32.totalorder %s92, %s93
      %p105 = scmp.eq.s32.totalorder %s20, 7
      %p106 = por %p104, %p105
      %p108 = scmp.ne.s32.totalorder %s93, %s107
      %p109 = scmp.eq.s32.totalorder %s20, 0
      %p110 = por %p108, %p109
      %s111 = ssub.s32 %s14, %s21
      %p112 = scmp.eq.s32.totalorder %s111, 0
      %s114 = sadd.s32 %s113, 1
      %s115 = scalar_select %p112, %s113, %s114
      %p118 = pneg %p112
      %p119 = scmp.eq.s32.totalorder %s14, 7
      %p120 = por %p118, %p119
      %p121 = scmp.ne.s32.totalorder %s113, %s116
      %p122 = scmp.eq.s32.totalorder %s14, 0
      %p123 = por %p121, %p122
      %p124 = scmp.ne.s32.totalorder %s113, %s116
      %p125 = scmp.eq.s32.totalorder %s19, 7
      %p126 = por %p124, %p125
      %p127 = scmp.ne.s32.totalorder %s116, %s117
      %p128 = scmp.eq.s32.totalorder %s19, 0
      %p129 = por %p127, %p128
      %p130 = scmp.ne.s32.totalorder %s116, %s117
      %p131 = scmp.eq.s32.totalorder %s20, 7
      %p132 = por %p130, %p131
      %p134 = scmp.ne.s32.totalorder %s117, %s133
      %p135 = scmp.eq.s32.totalorder %s20, 0
      %p136 = por %p134, %p135
      %p137 = scmp.le.s32.totalorder 1, %s14
      %p138 = scmp.lt.s32.totalorder %s14, 9
      %p139 = pnand %p137, %p138
      %p140 = pneg %p139
      // Predicated region
      $region9: #{texture_mlp_pallas.1} parent=5 // pred_check
        _
      $region10: #{texture_mlp_pallas.1} parent=5 // pred_check_branch
        %142 = sbr.rel (%p139) target = $region12
      $region11: #{texture_mlp_pallas.1} parent=5 // pred_region
        %s143 = ssub.s32 %s14, 1
        // Predicated region
        $region13: #{texture_mlp_pallas.1} parent=11 // pred_check
          %p144 = pneg %p61
        $region14: #{texture_mlp_pallas.1} parent=11 // pred_check_branch
          %146 = sbr.rel (%p144) target = $region16
        $region15: #{texture_mlp_pallas.1} parent=11 // pred_region
          _
        $region16: #{texture_mlp_pallas.1} parent=11 // pred_fallthru
          _
        // Predicated region
        $region17: #{texture_mlp_pallas.1} parent=11 // pred_check
          %p147 = pneg %p82
        $region18: #{texture_mlp_pallas.1} parent=11 // pred_check_branch
          %149 = sbr.rel (%p147) target = $region20
        $region19: #{texture_mlp_pallas.1} parent=11 // pred_region
          %s151 = ssub.s32 5632, 5632
          %152 = vsyncadd [#allocation5], %s151
          %s153 = sshll.u32 [#allocation4], 4
          %s154 = int_to_ptr.vmem [resolvable:$true] %s153
          %159 = dma.hbm_to_vmem [thread:$0]  %s2, 5632, %s154, [#allocation5], 128, 128, 8
        $region20: #{texture_mlp_pallas.1} parent=11 // pred_fallthru
          _
        // Predicated region
        $region21: #{texture_mlp_pallas.1} parent=11 // pred_check
          %p160 = pneg %p103
        $region22: #{texture_mlp_pallas.1} parent=11 // pred_check_branch
          %162 = sbr.rel (%p160) target = $region24
        $region23: #{texture_mlp_pallas.1} parent=11 // pred_region
          %s164 = ssub.s32 12288, 12288
          %165 = vsyncadd [#allocation5], %s164
          %s166 = sshll.u32 [#allocation6], 4
          %s167 = int_to_ptr.vmem [resolvable:$true] %s166
          %172 = dma.hbm_to_vmem [thread:$0]  %s3, 12288, %s167, [#allocation5], 256, 256, 16
        $region24: #{texture_mlp_pallas.1} parent=11 // pred_fallthru
          _
      $region12: #{texture_mlp_pallas.1} parent=5 // pred_fallthru
        _
      %p173 = scmp.lt.s32.totalorder %s14, 8
      // Predicated region
      $region25: #{texture_mlp_pallas.1} parent=5 // pred_check
        %p174 = pneg %p173
      $region26: #{texture_mlp_pallas.1} parent=5 // pred_check_branch
        %176 = sbr.rel (%p174) target = $region28
      $region27: #{texture_mlp_pallas.1} parent=5 // pred_region
        // Predicated region
        $region29: #{texture_mlp_pallas.1} parent=27 // pred_check
          %p177 = pneg %p34
        $region30: #{texture_mlp_pallas.1} parent=27 // pred_check_branch
          %179 = sbr.rel (%p177) target = $region32
        $region31: #{texture_mlp_pallas.1} parent=27 // pred_region
          %s180 = sand.u32 %s24, 1
          %s181 = scalar_lea.sflag [#allocation3], %s180
          %s182 = sand.u32 %s24, 1
          %s183 = smul.addr %s182, 512
          %s184 = scalar_lea.vmem [#allocation2], %s183
          %s185 = smul.u32 32, %s14
          %s187 = ssub.s32 8192, 8192
          %188 = vsyncadd %s181, %s187
          %s189 = smul.addr %s185, 2
          %s190 = smul.addr %s189, 128
          %s191 = scalar_lea.hbm %s0, %s190
          %s192 = sshll.u32 %s184, 4
          %s193 = int_to_ptr.vmem [resolvable:$true] %s192
          %198 = dma.hbm_to_vmem [thread:$0]  %s191, 8192, %s193, %s181, 256, 256, 16
        $region32: #{texture_mlp_pallas.1} parent=27 // pred_fallthru
          _
      $region28: #{texture_mlp_pallas.1} parent=5 // pred_fallthru
        _
      %p199 = scmp.le.s32.totalorder 1, %s14
      %p200 = scmp.lt.s32.totalorder %s14, 9
      %p201 = pnand %p199, %p200
      %p202 = pneg %p201
      // Predicated region
      $region33: #{texture_mlp_pallas.1} parent=5 // pred_check
        _
      $region34: #{texture_mlp_pallas.1} parent=5 // pred_check_branch
        %204 = sbr.rel (%p201) target = $region36
      $region35: #{texture_mlp_pallas.1} parent=5 // pred_region
        %s205 = ssub.s32 %s14, 1
        %s206 = sand.u32 %s27, 1
        %s207 = scalar_lea.sflag [#allocation3], %s206
        %s208 = sand.u32 %s27, 1
        %s209 = smul.addr %s208, 512
        %s210 = scalar_lea.vmem [#allocation2], %s209
        // Predicated region
        $region37: #{texture_mlp_pallas.1} parent=35 // pred_check
          %p211 = pneg %p40
        $region38: #{texture_mlp_pallas.1} parent=35 // pred_check_branch
          %213 = sbr.rel (%p211) target = $region40
        $region39: #{texture_mlp_pallas.1} parent=35 // pred_region
          %214 = dma.done %s207, 8192
        $region40: #{texture_mlp_pallas.1} parent=35 // pred_fallthru
          _
        // Predicated region
        $region41: #{texture_mlp_pallas.1} parent=35 // pred_check
          %p215 = pneg %p82
        $region42: #{texture_mlp_pallas.1} parent=35 // pred_check_branch
          %217 = sbr.rel (%p215) target = $region44
        $region43: #{texture_mlp_pallas.1} parent=35 // pred_region
          %218 = dma.done [#allocation5], 5632
        $region44: #{texture_mlp_pallas.1} parent=35 // pred_fallthru
          _
        // Predicated region
        $region45: #{texture_mlp_pallas.1} parent=35 // pred_check
          %p219 = pneg %p103
        $region46: #{texture_mlp_pallas.1} parent=35 // pred_check_branch
          %221 = sbr.rel (%p219) target = $region48
        $region47: #{texture_mlp_pallas.1} parent=35 // pred_region
          %222 = dma.done [#allocation5], 12288
        $region48: #{texture_mlp_pallas.1} parent=35 // pred_fallthru
          _
        %s223 = sand.u32 %s27, 1
        %s224 = scalar_lea.sflag [#allocation3], %s223
        %s225 = sand.u32 %s27, 1
        %s226 = smul.addr %s225, 512
        %s227 = scalar_lea.vmem [#allocation2], %s226
        %p228 = pneg %p40
        %p229 = pneg %p37
        %p230 = pneg %p61
        %p231 = pneg %p58
        %p232 = pneg %p82
        %p233 = pneg %p79
        %p234 = pneg %p103
        %p235 = pneg %p100
        %p236 = pneg %p129
        %p237 = pneg %p126
        %s238 = smul.u32 32, %s19
        %p239 = scmp.lt.s32.totalorder %s238, 255
        %s240 = scalar_select %p239, %s238, 255
        %s241 = smul.addr %s240, 2
        %s242 = smul.addr %s241, 8
        %s243 = scalar_lea.vmem %s4, %s242
        %s244 = smul.u32 32, %s19
        %s245 = smul.u32 32, %s19
        %p246 = scmp.lt.s32.totalorder %s245, 255
        %s247 = scalar_select %p246, %s245, 255
        %s248 = smul.addr %s247, 2
        %s249 = smul.addr %s248, 8
        %s250 = scalar_lea.vmem %s4, %s249
        %s251 = smul.u32 32, %s19
        loop: start=0, step=1, limit=16
        $region49: #{texture_mlp_pallas.1} parent=35 // loop_pre_header
          _
        $region50: #{texture_mlp_pallas.1} parent=35 // loop_header
          %s253 = sphi 0, %s257
          %p254 = scmp.ge.s32.totalorder %s253, 16
        $region51: #{texture_mlp_pallas.1} parent=35 // loop_header_branch
          %256 = sbr.rel (%p254) target = $region55
        $region52: #{texture_mlp_pallas.1} parent=35 // loop_body
          %s258 = smul.u32 %s253, 2
          %s259 = smul.u32 %s258, 2
          %s260 = smul.addr %s259, 8
          %s261 = scalar_lea.vmem %s210, %s260 [#allocation2]
          %v262 = vld [vmem:[%s261] sm:$0xff]
          %v263 = vld [vmem:[%s261 + $0x8] sm:$0xff]
          %v264 = vld [vmem:[%s1] sm:$0xff]
          %v265 = vld [vmem:[%s1 + $0x8] sm:$0xff]
          %v266 = vld [vmem:[%s1 + $0x10] sm:$0xff]
          %v267 = vld [vmem:[%s1 + $0x18] sm:$0xff]
          %v268 = vld [vmem:[%s1 + $0x20] sm:$0xff]
          %v269 = vld [vmem:[%s1 + $0x28] sm:$0xff]
          %v270 = vld [vmem:[%s1 + $0x30] sm:$0xff]
          %v271 = vld [vmem:[%s1 + $0x38] sm:$0xff]
          %v272 = vld [vmem:[%s1 + $0x40] sm:$0xff]
          %v273 = vld [vmem:[%s1 + $0x48] sm:$0xff]
          %v274 = vld [vmem:[%s1 + $0x50] sm:$0xff]
          %v275 = vld [vmem:[%s1 + $0x58] sm:$0xff]
          %vm276 = vcmask 64512
          %v278 = vsel %vm276, %v264, 0
          %v281 = vsel %vm276, %v265, 0
          %v284 = vsel %vm276, %v266, 0
          %v287 = vsel %vm276, %v267, 0
          %v290 = vsel %vm276, %v268, 0
          %v293 = vsel %vm276, %v269, 0
          %v296 = vsel %vm276, %v270, 0
          %v299 = vsel %vm276, %v271, 0
          %v302 = vsel %vm276, %v272, 0
          %v305 = vsel %vm276, %v273, 0
          %v308 = vsel %vm276, %v274, 0
          %v311 = vsel %vm276, %v275, 0
          %313 = vmatprep.subr.mxu0 %v263
          %314 = vmatpush1.msra.mxu0 %v262
          %315 = vmatprep.subr.mxu0 0.0
          %316 = vmatpush1.msra.mxu0 0.0
          %317 = vmatprep.subr.mxu0 0.0
          %318 = vmatpush1.msra.mxu0 0.0
          %319 = vmatprep.subr.mxu0 0.0
          %320 = vmatpush1.msra.mxu0 0.0
          %321 = vmatprep.subr.mxu0 0.0
          %322 = vmatpush1.msra.mxu0 0.0
          %323 = vmatprep.subr.mxu0 0.0
          %324 = vmatpush1.msra.mxu0 0.0
          %325 = vmatprep.subr.mxu0 0.0
          %326 = vmatpush1.msra.mxu0 0.0
          %327 = vmatprep.subr.mxu0 0.0
          %328 = vmatpush1.msra.mxu0 0.0
          %329 = vmatprep.subr.mxu0 0.0
          %330 = vmatpush1.msra.mxu0 0.0
          %331 = vmatprep.subr.mxu0 0.0
          %332 = vmatpush1.msra.mxu0 0.0
          %333 = vmatprep.subr.mxu0 0.0
          %334 = vmatpush1.msra.mxu0 0.0
          %335 = vmatprep.subr.mxu0 0.0
          %336 = vmatpush1.msra.mxu0 0.0
          %337 = vmatprep.subr.mxu0 0.0
          %338 = vmatpush1.msra.mxu0 0.0
          %339 = vmatprep.subr.mxu0 0.0
          %340 = vmatpush1.msra.mxu0 0.0
          %341 = vmatprep.subr.mxu0 0.0
          %342 = vmatpush1.msra.mxu0 0.0
          %343 = vmatprep.subr.mxu0 0.0
          %344 = vmatpush1.msra.mxu0 0.0
          %345 = vmatprep.subr.mxu0 0.0
          %346 = vmatpush1.msra.mxu0 0.0
          %347 = vmatprep.subr.mxu0 0.0
          %348 = vmatpush1.msra.mxu0 0.0
          %349 = vmatprep.subr.mxu0 0.0
          %350 = vmatpush1.msra.mxu0 0.0
          %351 = vmatprep.subr.mxu0 0.0
          %352 = vmatpush1.msra.mxu0 0.0
          %353 = vmatprep.subr.mxu0 0.0
          %354 = vmatpush1.msra.mxu0 0.0
          %355 = vmatprep.subr.mxu0 0.0
          %356 = vmatpush1.msra.mxu0 0.0
          %357 = vmatprep.subr.mxu0 0.0
          %358 = vmatpush1.msra.mxu0 0.0
          %359 = vmatprep.subr.mxu0 0.0
          %360 = vmatpush1.msra.mxu0 0.0
          %361 = vmatprep.subr.mxu0 0.0
          %362 = vmatpush1.msra.mxu0 0.0
          %363 = vmatprep.subr.mxu0 0.0
          %364 = vmatpush1.msra.mxu0 0.0
          %365 = vmatprep.subr.mxu0 0.0
          %366 = vmatpush1.msra.mxu0 0.0
          %367 = vmatprep.subr.mxu0 0.0
          %368 = vmatpush1.msra.mxu0 0.0
          %369 = vmatprep.subr.mxu0 0.0
          %370 = vmatpush1.msra.mxu0 0.0
          %371 = vmatprep.subr.mxu0 0.0
          %372 = vmatpush1.msra.mxu0 0.0
          %373 = vmatprep.subr.mxu0 0.0
          %374 = vmatpush1.msra.mxu0 0.0
          %375 = vmatprep.subr.mxu0 0.0
          %376 = vmatpush1.msra.mxu0 0.0
          %377 = vmatprep.mubr.f32.mxu0 0.0
          %378 = vmatmul.mubr.f32.gmra.mrb[0].mxu0 %v278
          %v379 = vpop.f32.mrb[0].mxu0
          %v380 = vadd.f32 0.0, %v379
          %v381 = vpop.f32.mrb[0].mxu0
          %v382 = vadd.f32 0.0, %v381
          %383 = vmatprep.mubr.f32.mxu0 0.0
          %384 = vmatmul.mubr.f32.gmra.mrb[0].mxu0 %v281
          %v385 = vpop.f32.mrb[0].mxu0
          %v386 = vadd.f32 0.0, %v385
          %v387 = vpop.f32.mrb[0].mxu0
          %v388 = vadd.f32 0.0, %v387
          %389 = vmatprep.mubr.f32.mxu0 0.0
          %390 = vmatmul.mubr.f32.gmra.mrb[0].mxu0 %v284
          %v391 = vpop.f32.mrb[0].mxu0
          %v392 = vadd.f32 0.0, %v391
          %v393 = vpop.f32.mrb[0].mxu0
          %v394 = vadd.f32 0.0, %v393
          %395 = vmatprep.mubr.f32.mxu0 0.0
          %396 = vmatmul.mubr.f32.gmra.mrb[0].mxu0 %v287
          %v397 = vpop.f32.mrb[0].mxu0
          %v398 = vadd.f32 0.0, %v397
          %v399 = vpop.f32.mrb[0].mxu0
          %v400 = vadd.f32 0.0, %v399
          %401 = vmatprep.mubr.f32.mxu0 0.0
          %402 = vmatmul.mubr.f32.gmra.mrb[0].mxu0 %v290
          %v403 = vpop.f32.mrb[0].mxu0
          %v404 = vadd.f32 0.0, %v403
          %v405 = vpop.f32.mrb[0].mxu0
          %v406 = vadd.f32 0.0, %v405
          %407 = vmatprep.mubr.f32.mxu0 0.0
          %408 = vmatmul.mubr.f32.gmra.mrb[0].mxu0 %v293
          %v409 = vpop.f32.mrb[0].mxu0
          %v410 = vadd.f32 0.0, %v409
          %v411 = vpop.f32.mrb[0].mxu0
          %v412 = vadd.f32 0.0, %v411
          %413 = vmatprep.mubr.f32.mxu0 0.0
          %414 = vmatmul.mubr.f32.gmra.mrb[0].mxu0 %v296
          %v415 = vpop.f32.mrb[0].mxu0
          %v416 = vadd.f32 0.0, %v415
          %v417 = vpop.f32.mrb[0].mxu0
          %v418 = vadd.f32 0.0, %v417
          %419 = vmatprep.mubr.f32.mxu0 0.0
          %420 = vmatmul.mubr.f32.gmra.mrb[0].mxu0 %v299
          %v421 = vpop.f32.mrb[0].mxu0
          %v422 = vadd.f32 0.0, %v421
          %v423 = vpop.f32.mrb[0].mxu0
          %v424 = vadd.f32 0.0, %v423
          %425 = vmatprep.mubr.f32.mxu0 0.0
          %426 = vmatmul.mubr.f32.gmra.mrb[0].mxu0 %v302
          %v427 = vpop.f32.mrb[0].mxu0
          %v428 = vadd.f32 0.0, %v427
          %v429 = vpop.f32.mrb[0].mxu0
          %v430 = vadd.f32 0.0, %v429
          %431 = vmatprep.mubr.f32.mxu0 0.0
          %432 = vmatmul.mubr.f32.gmra.mrb[0].mxu0 %v305
          %v433 = vpop.f32.mrb[0].mxu0
          %v434 = vadd.f32 0.0, %v433
          %v435 = vpop.f32.mrb[0].mxu0
          %v436 = vadd.f32 0.0, %v435
          %437 = vmatprep.mubr.f32.mxu0 0.0
          %438 = vmatmul.mubr.f32.gmra.mrb[0].mxu0 %v308
          %v439 = vpop.f32.mrb[0].mxu0
          %v440 = vadd.f32 0.0, %v439
          %v441 = vpop.f32.mrb[0].mxu0
          %v442 = vadd.f32 0.0, %v441
          %443 = vmatprep.mubr.f32.mxu0 0.0
          %444 = vmatmul.mubr.f32.gmra.mrb[0].mxu0 %v311
          %v445 = vpop.f32.mrb[0].mxu0
          %v446 = vadd.f32 0.0, %v445
          %v447 = vpop.f32.mrb[0].mxu0
          %v448 = vadd.f32 0.0, %v447
          %449 = vdwg.mxu0
          %v450 = vld [vmem:[#allocation6] sm:$0xff]
          %v451 = vld [vmem:[#allocation6 + $0x8] sm:$0xff]
          %v452 = vld [vmem:[#allocation6 + $0x10] sm:$0xff]
          %v453 = vld [vmem:[#allocation6 + $0x18] sm:$0xff]
          %v454 = vld [vmem:[#allocation6 + $0x20] sm:$0xff]
          %v455 = vld [vmem:[#allocation6 + $0x28] sm:$0xff]
          %v456 = vld [vmem:[#allocation6 + $0x30] sm:$0xff]
          %v457 = vld [vmem:[#allocation6 + $0x38] sm:$0xff]
          %v458 = vadd.f32 %v380, %v450
          %v459 = vadd.f32 %v382, %v451
          %v460 = vadd.f32 %v386, %v452
          %v461 = vadd.f32 %v388, %v453
          %v462 = vadd.f32 %v392, %v454
          %v463 = vadd.f32 %v394, %v455
          %v464 = vadd.f32 %v398, %v456
          %v465 = vadd.f32 %v400, %v457
          %v466 = vmax.f32 %v458, 0.0
          %v467 = vmax.f32 %v459, 0.0
          %v468 = vmax.f32 %v460, 0.0
          %v469 = vmax.f32 %v461, 0.0
          %v470 = vmax.f32 %v462, 0.0
          %v471 = vmax.f32 %v463, 0.0
          %v472 = vmax.f32 %v464, 0.0
          %v473 = vmax.f32 %v465, 0.0
          %v474 = vld [vmem:[#allocation4] sm:$0xff]
          %v475 = vld [vmem:[#allocation4 + $0x8] sm:$0xff]
          %v476 = vld [vmem:[#allocation4 + $0x10] sm:$0xff]
          %v477 = vld [vmem:[#allocation4 + $0x18] sm:$0xff]
          %s478 = scalar_lea.vmem [#allocation6], 64
          %v479 = vld [vmem:[%s478] sm:$0xff]
          %v480 = vld [vmem:[%s478 + $0x8] sm:$0xff]
          %v481 = vld [vmem:[%s478 + $0x10] sm:$0xff]
          %v482 = vld [vmem:[%s478 + $0x18] sm:$0xff]
          %v483 = vld [vmem:[%s478 + $0x20] sm:$0xff]
          %v484 = vld [vmem:[%s478 + $0x28] sm:$0xff]
          %v485 = vld [vmem:[%s478 + $0x30] sm:$0xff]
          %v486 = vld [vmem:[%s478 + $0x38] sm:$0xff]
          %vm487 = vcmask 261120
          %v489 = vsel %vm487, %v474, 0
          %v492 = vsel %vm487, %v475, 0
          %v495 = vsel %vm487, %v476, 0
          %v498 = vsel %vm487, %v477, 0
          %500 = vmatprep.subr.mxu0 %v467
          %501 = vmatpush1.msra.mxu0 %v466
          %502 = vmatprep.subr.mxu0 %v469
          %503 = vmatpush1.msra.mxu0 %v468
          %504 = vmatprep.subr.mxu0 %v471
          %505 = vmatpush1.msra.mxu0 %v470
          %506 = vmatprep.subr.mxu0 %v473
          %507 = vmatpush1.msra.mxu0 %v472
          %508 = vmatprep.subr.mxu0 0.0
          %509 = vmatpush1.msra.mxu0 0.0
          %510 = vmatprep.subr.mxu0 0.0
          %511 = vmatpush1.msra.mxu0 0.0
          %512 = vmatprep.subr.mxu0 0.0
          %513 = vmatpush1.msra.mxu0 0.0
          %514 = vmatprep.subr.mxu0 0.0
          %515 = vmatpush1.msra.mxu0 0.0
          %516 = vmatprep.subr.mxu0 0.0
          %517 = vmatpush1.msra.mxu0 0.0
          %518 = vmatprep.subr.mxu0 0.0
          %519 = vmatpush1.msra.mxu0 0.0
          %520 = vmatprep.subr.mxu0 0.0
          %521 = vmatpush1.msra.mxu0 0.0
          %522 = vmatprep.subr.mxu0 0.0
          %523 = vmatpush1.msra.mxu0 0.0
          %524 = vmatprep.subr.mxu0 0.0
          %525 = vmatpush1.msra.mxu0 0.0
          %526 = vmatprep.subr.mxu0 0.0
          %527 = vmatpush1.msra.mxu0 0.0
          %528 = vmatprep.subr.mxu0 0.0
          %529 = vmatpush1.msra.mxu0 0.0
          %530 = vmatprep.subr.mxu0 0.0
          %531 = vmatpush1.msra.mxu0 0.0
          %532 = vmatprep.subr.mxu0 0.0
          %533 = vmatpush1.msra.mxu0 0.0
          %534 = vmatprep.subr.mxu0 0.0
          %535 = vmatpush1.msra.mxu0 0.0
          %536 = vmatprep.subr.mxu0 0.0
          %537 = vmatpush1.msra.mxu0 0.0
          %538 = vmatprep.subr.mxu0 0.0
          %539 = vmatpush1.msra.mxu0 0.0
          %540 = vmatprep.subr.mxu0 0.0
          %541 = vmatpush1.msra.mxu0 0.0
          %542 = vmatprep.subr.mxu0 0.0
          %543 = vmatpush1.msra.mxu0 0.0
          %544 = vmatprep.subr.mxu0 0.0
          %545 = vmatpush1.msra.mxu0 0.0
          %546 = vmatprep.subr.mxu0 0.0
          %547 = vmatpush1.msra.mxu0 0.0
          %548 = vmatprep.subr.mxu0 0.0
          %549 = vmatpush1.msra.mxu0 0.0
          %550 = vmatprep.subr.mxu0 0.0
          %551 = vmatpush1.msra.mxu0 0.0
          %552 = vmatprep.subr.mxu0 0.0
          %553 = vmatpush1.msra.mxu0 0.0
          %554 = vmatprep.subr.mxu0 0.0
          %555 = vmatpush1.msra.mxu0 0.0
          %556 = vmatprep.subr.mxu0 0.0
          %557 = vmatpush1.msra.mxu0 0.0
          %558 = vmatprep.subr.mxu0 0.0
          %559 = vmatpush1.msra.mxu0 0.0
          %560 = vmatprep.subr.mxu0 0.0
          %561 = vmatpush1.msra.mxu0 0.0
          %562 = vmatprep.subr.mxu0 0.0
          %563 = vmatpush1.msra.mxu0 0.0
          %564 = vmatprep.mubr.f32.mxu0 0.0
          %565 = vmatmul.mubr.f32.gmra.mrb[0].mxu0 %v489
          %v566 = vpop.f32.mrb[0].mxu0
          %v567 = vadd.f32 %v479, %v566
          %v568 = vpop.f32.mrb[0].mxu0
          %v569 = vadd.f32 %v480, %v568
          %570 = vmatprep.mubr.f32.mxu0 0.0
          %571 = vmatmul.mubr.f32.gmra.mrb[0].mxu0 %v492
          %v572 = vpop.f32.mrb[0].mxu0
          %v573 = vadd.f32 %v481, %v572
          %v574 = vpop.f32.mrb[0].mxu0
          %v575 = vadd.f32 %v482, %v574
          %576 = vmatprep.mubr.f32.mxu0 0.0
          %577 = vmatmul.mubr.f32.gmra.mrb[0].mxu0 %v495
          %v578 = vpop.f32.mrb[0].mxu0
          %v579 = vadd.f32 %v483, %v578
          %v580 = vpop.f32.mrb[0].mxu0
          %v581 = vadd.f32 %v484, %v580
          %582 = vmatprep.mubr.f32.mxu0 0.0
          %583 = vmatmul.mubr.f32.gmra.mrb[0].mxu0 %v498
          %v584 = vpop.f32.mrb[0].mxu0
          %v585 = vadd.f32 %v485, %v584
          %v586 = vpop.f32.mrb[0].mxu0
          %v587 = vadd.f32 %v486, %v586
          %588 = vdwg.mxu0
          %v589 = vmax.f32 %v567, 0.0
          %v590 = vmax.f32 %v569, 0.0
          %v591 = vmax.f32 %v573, 0.0
          %v592 = vmax.f32 %v575, 0.0
          %v593 = vmax.f32 %v579, 0.0
          %v594 = vmax.f32 %v581, 0.0
          %v595 = vmax.f32 %v585, 0.0
          %v596 = vmax.f32 %v587, 0.0
          %s597 = scalar_lea.vmem [#allocation4], 32
          %v598 = vld [vmem:[%s597] sm:$0xff]
          %v599 = vld [vmem:[%s597 + $0x8] sm:$0xff]
          %v600 = vld [vmem:[%s597 + $0x10] sm:$0xff]
          %v601 = vld [vmem:[%s597 + $0x18] sm:$0xff]
          %s602 = scalar_lea.vmem [#allocation6], 128
          %v603 = vld [vmem:[%s602] sm:$0xff]
          %v604 = vld [vmem:[%s602 + $0x8] sm:$0xff]
          %v605 = vld [vmem:[%s602 + $0x10] sm:$0xff]
          %v606 = vld [vmem:[%s602 + $0x18] sm:$0xff]
          %v607 = vld [vmem:[%s602 + $0x20] sm:$0xff]
          %v608 = vld [vmem:[%s602 + $0x28] sm:$0xff]
          %v609 = vld [vmem:[%s602 + $0x30] sm:$0xff]
          %v610 = vld [vmem:[%s602 + $0x38] sm:$0xff]
          %v612 = vsel %vm487, %v598, 0
          %v615 = vsel %vm487, %v599, 0
          %v618 = vsel %vm487, %v600, 0
          %v621 = vsel %vm487, %v601, 0
          %623 = vmatprep.subr.mxu0 %v590
          %624 = vmatpush1.msra.mxu0 %v589
          %625 = vmatprep.subr.mxu0 %v592
          %626 = vmatpush1.msra.mxu0 %v591
          %627 = vmatprep.subr.mxu0 %v594
          %628 = vmatpush1.msra.mxu0 %v593
          %629 = vmatprep.subr.mxu0 %v596
          %630 = vmatpush1.msra.mxu0 %v595
          %631 = vmatprep.subr.mxu0 0.0
          %632 = vmatpush1.msra.mxu0 0.0
          %633 = vmatprep.subr.mxu0 0.0
          %634 = vmatpush1.msra.mxu0 0.0
          %635 = vmatprep.subr.mxu0 0.0
          %636 = vmatpush1.msra.mxu0 0.0
          %637 = vmatprep.subr.mxu0 0.0
          %638 = vmatpush1.msra.mxu0 0.0
          %639 = vmatprep.subr.mxu0 0.0
          %640 = vmatpush1.msra.mxu0 0.0
          %641 = vmatprep.subr.mxu0 0.0
          %642 = vmatpush1.msra.mxu0 0.0
          %643 = vmatprep.subr.mxu0 0.0
          %644 = vmatpush1.msra.mxu0 0.0
          %645 = vmatprep.subr.mxu0 0.0
          %646 = vmatpush1.msra.mxu0 0.0
          %647 = vmatprep.subr.mxu0 0.0
          %648 = vmatpush1.msra.mxu0 0.0
          %649 = vmatprep.subr.mxu0 0.0
          %650 = vmatpush1.msra.mxu0 0.0
          %651 = vmatprep.subr.mxu0 0.0
          %652 = vmatpush1.msra.mxu0 0.0
          %653 = vmatprep.subr.mxu0 0.0
          %654 = vmatpush1.msra.mxu0 0.0
          %655 = vmatprep.subr.mxu0 0.0
          %656 = vmatpush1.msra.mxu0 0.0
          %657 = vmatprep.subr.mxu0 0.0
          %658 = vmatpush1.msra.mxu0 0.0
          %659 = vmatprep.subr.mxu0 0.0
          %660 = vmatpush1.msra.mxu0 0.0
          %661 = vmatprep.subr.mxu0 0.0
          %662 = vmatpush1.msra.mxu0 0.0
          %663 = vmatprep.subr.mxu0 0.0
          %664 = vmatpush1.msra.mxu0 0.0
          %665 = vmatprep.subr.mxu0 0.0
          %666 = vmatpush1.msra.mxu0 0.0
          %667 = vmatprep.subr.mxu0 0.0
          %668 = vmatpush1.msra.mxu0 0.0
          %669 = vmatprep.subr.mxu0 0.0
          %670 = vmatpush1.msra.mxu0 0.0
          %671 = vmatprep.subr.mxu0 0.0
          %672 = vmatpush1.msra.mxu0 0.0
          %673 = vmatprep.subr.mxu0 0.0
          %674 = vmatpush1.msra.mxu0 0.0
          %675 = vmatprep.subr.mxu0 0.0
          %676 = vmatpush1.msra.mxu0 0.0
          %677 = vmatprep.subr.mxu0 0.0
          %678 = vmatpush1.msra.mxu0 0.0
          %679 = vmatprep.subr.mxu0 0.0
          %680 = vmatpush1.msra.mxu0 0.0
          %681 = vmatprep.subr.mxu0 0.0
          %682 = vmatpush1.msra.mxu0 0.0
          %683 = vmatprep.subr.mxu0 0.0
          %684 = vmatpush1.msra.mxu0 0.0
          %685 = vmatprep.subr.mxu0 0.0
          %686 = vmatpush1.msra.mxu0 0.0
          %687 = vmatprep.mubr.f32.mxu0 0.0
          %688 = vmatmul.mubr.f32.gmra.mrb[0].mxu0 %v612
          %v689 = vpop.f32.mrb[0].mxu0
          %v690 = vadd.f32 %v603, %v689
          %v691 = vpop.f32.mrb[0].mxu0
          %v692 = vadd.f32 %v604, %v691
          %693 = vmatprep.mubr.f32.mxu0 0.0
          %694 = vmatmul.mubr.f32.gmra.mrb[0].mxu0 %v615
          %v695 = vpop.f32.mrb[0].mxu0
          %v696 = vadd.f32 %v605, %v695
          %v697 = vpop.f32.mrb[0].mxu0
          %v698 = vadd.f32 %v606, %v697
          %699 = vmatprep.mubr.f32.mxu0 0.0
          %700 = vmatmul.mubr.f32.gmra.mrb[0].mxu0 %v618
          %v701 = vpop.f32.mrb[0].mxu0
          %v702 = vadd.f32 %v607, %v701
          %v703 = vpop.f32.mrb[0].mxu0
          %v704 = vadd.f32 %v608, %v703
          %705 = vmatprep.mubr.f32.mxu0 0.0
          %706 = vmatmul.mubr.f32.gmra.mrb[0].mxu0 %v621
          %v707 = vpop.f32.mrb[0].mxu0
          %v708 = vadd.f32 %v609, %v707
          %v709 = vpop.f32.mrb[0].mxu0
          %v710 = vadd.f32 %v610, %v709
          %711 = vdwg.mxu0
          %v712 = vmax.f32 %v690, 0.0
          %v713 = vmax.f32 %v692, 0.0
          %v714 = vmax.f32 %v696, 0.0
          %v715 = vmax.f32 %v698, 0.0
          %v716 = vmax.f32 %v702, 0.0
          %v717 = vmax.f32 %v704, 0.0
          %v718 = vmax.f32 %v708, 0.0
          %v719 = vmax.f32 %v710, 0.0
          %s720 = scalar_lea.vmem [#allocation4], 64
          %v721 = vld [vmem:[%s720] sm:$0xff]
          %v722 = vld [vmem:[%s720 + $0x8] sm:$0xff]
          %v723 = vld [vmem:[%s720 + $0x10] sm:$0xff]
          %v724 = vld [vmem:[%s720 + $0x18] sm:$0xff]
          %s725 = scalar_lea.vmem [#allocation6], 192
          %v726 = vld [vmem:[%s725] sm:$0xff]
          %v727 = vld [vmem:[%s725 + $0x8] sm:$0xff]
          %v728 = vld [vmem:[%s725 + $0x10] sm:$0xff]
          %v729 = vld [vmem:[%s725 + $0x18] sm:$0xff]
          %v730 = vld [vmem:[%s725 + $0x20] sm:$0xff]
          %v731 = vld [vmem:[%s725 + $0x28] sm:$0xff]
          %v732 = vld [vmem:[%s725 + $0x30] sm:$0xff]
          %v733 = vld [vmem:[%s725 + $0x38] sm:$0xff]
          %v735 = vsel %vm487, %v721, 0
          %v738 = vsel %vm487, %v722, 0
          %v741 = vsel %vm487, %v723, 0
          %v744 = vsel %vm487, %v724, 0
          %746 = vmatprep.subr.mxu0 %v713
          %747 = vmatpush1.msra.mxu0 %v712
          %748 = vmatprep.subr.mxu0 %v715
          %749 = vmatpush1.msra.mxu0 %v714
          %750 = vmatprep.subr.mxu0 %v717
          %751 = vmatpush1.msra.mxu0 %v716
          %752 = vmatprep.subr.mxu0 %v719
          %753 = vmatpush1.msra.mxu0 %v718
          %754 = vmatprep.subr.mxu0 0.0
          %755 = vmatpush1.msra.mxu0 0.0
          %756 = vmatprep.subr.mxu0 0.0
          %757 = vmatpush1.msra.mxu0 0.0
          %758 = vmatprep.subr.mxu0 0.0
          %759 = vmatpush1.msra.mxu0 0.0
          %760 = vmatprep.subr.mxu0 0.0
          %761 = vmatpush1.msra.mxu0 0.0
          %762 = vmatprep.subr.mxu0 0.0
          %763 = vmatpush1.msra.mxu0 0.0
          %764 = vmatprep.subr.mxu0 0.0
          %765 = vmatpush1.msra.mxu0 0.0
          %766 = vmatprep.subr.mxu0 0.0
          %767 = vmatpush1.msra.mxu0 0.0
          %768 = vmatprep.subr.mxu0 0.0
          %769 = vmatpush1.msra.mxu0 0.0
          %770 = vmatprep.subr.mxu0 0.0
          %771 = vmatpush1.msra.mxu0 0.0
          %772 = vmatprep.subr.mxu0 0.0
          %773 = vmatpush1.msra.mxu0 0.0
          %774 = vmatprep.subr.mxu0 0.0
          %775 = vmatpush1.msra.mxu0 0.0
          %776 = vmatprep.subr.mxu0 0.0
          %777 = vmatpush1.msra.mxu0 0.0
          %778 = vmatprep.subr.mxu0 0.0
          %779 = vmatpush1.msra.mxu0 0.0
          %780 = vmatprep.subr.mxu0 0.0
          %781 = vmatpush1.msra.mxu0 0.0
          %782 = vmatprep.subr.mxu0 0.0
          %783 = vmatpush1.msra.mxu0 0.0
          %784 = vmatprep.subr.mxu0 0.0
          %785 = vmatpush1.msra.mxu0 0.0
          %786 = vmatprep.subr.mxu0 0.0
          %787 = vmatpush1.msra.mxu0 0.0
          %788 = vmatprep.subr.mxu0 0.0
          %789 = vmatpush1.msra.mxu0 0.0
          %790 = vmatprep.subr.mxu0 0.0
          %791 = vmatpush1.msra.mxu0 0.0
          %792 = vmatprep.subr.mxu0 0.0
          %793 = vmatpush1.msra.mxu0 0.0
          %794 = vmatprep.subr.mxu0 0.0
          %795 = vmatpush1.msra.mxu0 0.0
          %796 = vmatprep.subr.mxu0 0.0
          %797 = vmatpush1.msra.mxu0 0.0
          %798 = vmatprep.subr.mxu0 0.0
          %799 = vmatpush1.msra.mxu0 0.0
          %800 = vmatprep.subr.mxu0 0.0
          %801 = vmatpush1.msra.mxu0 0.0
          %802 = vmatprep.subr.mxu0 0.0
          %803 = vmatpush1.msra.mxu0 0.0
          %804 = vmatprep.subr.mxu0 0.0
          %805 = vmatpush1.msra.mxu0 0.0
          %806 = vmatprep.subr.mxu0 0.0
          %807 = vmatpush1.msra.mxu0 0.0
          %808 = vmatprep.subr.mxu0 0.0
          %809 = vmatpush1.msra.mxu0 0.0
          %810 = vmatprep.mubr.f32.mxu0 0.0
          %811 = vmatmul.mubr.f32.gmra.mrb[0].mxu0 %v735
          %v812 = vpop.f32.mrb[0].mxu0
          %v813 = vadd.f32 %v726, %v812
          %v814 = vpop.f32.mrb[0].mxu0
          %v815 = vadd.f32 %v727, %v814
          %816 = vmatprep.mubr.f32.mxu0 0.0
          %817 = vmatmul.mubr.f32.gmra.mrb[0].mxu0 %v738
          %v818 = vpop.f32.mrb[0].mxu0
          %v819 = vadd.f32 %v728, %v818
          %v820 = vpop.f32.mrb[0].mxu0
          %v821 = vadd.f32 %v729, %v820
          %822 = vmatprep.mubr.f32.mxu0 0.0
          %823 = vmatmul.mubr.f32.gmra.mrb[0].mxu0 %v741
          %v824 = vpop.f32.mrb[0].mxu0
          %v825 = vadd.f32 %v730, %v824
          %v826 = vpop.f32.mrb[0].mxu0
          %v827 = vadd.f32 %v731, %v826
          %828 = vmatprep.mubr.f32.mxu0 0.0
          %829 = vmatmul.mubr.f32.gmra.mrb[0].mxu0 %v744
          %v830 = vpop.f32.mrb[0].mxu0
          %v831 = vadd.f32 %v732, %v830
          %v832 = vpop.f32.mrb[0].mxu0
          %v833 = vadd.f32 %v733, %v832
          %834 = vdwg.mxu0
          %v835 = vmax.f32 %v813, 0.0
          %v836 = vmax.f32 %v815, 0.0
          %v837 = vmax.f32 %v819, 0.0
          %v838 = vmax.f32 %v821, 0.0
          %v839 = vmax.f32 %v825, 0.0
          %v840 = vmax.f32 %v827, 0.0
          %v841 = vmax.f32 %v831, 0.0
          %v842 = vmax.f32 %v833, 0.0
          %s843 = scalar_lea.vmem [#allocation4], 96
          %v844 = vld [vmem:[%s843] sm:$0xff]
          %v845 = vld [vmem:[%s843 + $0x8] sm:$0xff]
          %v846 = vld [vmem:[%s843 + $0x10] sm:$0xff]
          %v847 = vld [vmem:[%s843 + $0x18] sm:$0xff]
          %s848 = scalar_lea.vmem [#allocation6], 256
          %v849 = vld [vmem:[%s848] sm:$0xff]
          %v850 = vld [vmem:[%s848 + $0x8] sm:$0xff]
          %v851 = vld [vmem:[%s848 + $0x10] sm:$0xff]
          %v852 = vld [vmem:[%s848 + $0x18] sm:$0xff]
          %v853 = vld [vmem:[%s848 + $0x20] sm:$0xff]
          %v854 = vld [vmem:[%s848 + $0x28] sm:$0xff]
          %v855 = vld [vmem:[%s848 + $0x30] sm:$0xff]
          %v856 = vld [vmem:[%s848 + $0x38] sm:$0xff]
          %v858 = vsel %vm487, %v844, 0
          %v861 = vsel %vm487, %v845, 0
          %v864 = vsel %vm487, %v846, 0
          %v867 = vsel %vm487, %v847, 0
          %869 = vmatprep.subr.mxu0 %v836
          %870 = vmatpush1.msra.mxu0 %v835
          %871 = vmatprep.subr.mxu0 %v838
          %872 = vmatpush1.msra.mxu0 %v837
          %873 = vmatprep.subr.mxu0 %v840
          %874 = vmatpush1.msra.mxu0 %v839
          %875 = vmatprep.subr.mxu0 %v842
          %876 = vmatpush1.msra.mxu0 %v841
          %877 = vmatprep.subr.mxu0 0.0
          %878 = vmatpush1.msra.mxu0 0.0
          %879 = vmatprep.subr.mxu0 0.0
          %880 = vmatpush1.msra.mxu0 0.0
          %881 = vmatprep.subr.mxu0 0.0
          %882 = vmatpush1.msra.mxu0 0.0
          %883 = vmatprep.subr.mxu0 0.0
          %884 = vmatpush1.msra.mxu0 0.0
          %885 = vmatprep.subr.mxu0 0.0
          %886 = vmatpush1.msra.mxu0 0.0
          %887 = vmatprep.subr.mxu0 0.0
          %888 = vmatpush1.msra.mxu0 0.0
          %889 = vmatprep.subr.mxu0 0.0
          %890 = vmatpush1.msra.mxu0 0.0
          %891 = vmatprep.subr.mxu0 0.0
          %892 = vmatpush1.msra.mxu0 0.0
          %893 = vmatprep.subr.mxu0 0.0
          %894 = vmatpush1.msra.mxu0 0.0
          %895 = vmatprep.subr.mxu0 0.0
          %896 = vmatpush1.msra.mxu0 0.0
          %897 = vmatprep.subr.mxu0 0.0
          %898 = vmatpush1.msra.mxu0 0.0
          %899 = vmatprep.subr.mxu0 0.0
          %900 = vmatpush1.msra.mxu0 0.0
          %901 = vmatprep.subr.mxu0 0.0
          %902 = vmatpush1.msra.mxu0 0.0
          %903 = vmatprep.subr.mxu0 0.0
          %904 = vmatpush1.msra.mxu0 0.0
          %905 = vmatprep.subr.mxu0 0.0
          %906 = vmatpush1.msra.mxu0 0.0
          %907 = vmatprep.subr.mxu0 0.0
          %908 = vmatpush1.msra.mxu0 0.0
          %909 = vmatprep.subr.mxu0 0.0
          %910 = vmatpush1.msra.mxu0 0.0
          %911 = vmatprep.subr.mxu0 0.0
          %912 = vmatpush1.msra.mxu0 0.0
          %913 = vmatprep.subr.mxu0 0.0
          %914 = vmatpush1.msra.mxu0 0.0
          %915 = vmatprep.subr.mxu0 0.0
          %916 = vmatpush1.msra.mxu0 0.0
          %917 = vmatprep.subr.mxu0 0.0
          %918 = vmatpush1.msra.mxu0 0.0
          %919 = vmatprep.subr.mxu0 0.0
          %920 = vmatpush1.msra.mxu0 0.0
          %921 = vmatprep.subr.mxu0 0.0
          %922 = vmatpush1.msra.mxu0 0.0
          %923 = vmatprep.subr.mxu0 0.0
          %924 = vmatpush1.msra.mxu0 0.0
          %925 = vmatprep.subr.mxu0 0.0
          %926 = vmatpush1.msra.mxu0 0.0
          %927 = vmatprep.subr.mxu0 0.0
          %928 = vmatpush1.msra.mxu0 0.0
          %929 = vmatprep.subr.mxu0 0.0
          %930 = vmatpush1.msra.mxu0 0.0
          %931 = vmatprep.subr.mxu0 0.0
          %932 = vmatpush1.msra.mxu0 0.0
          %933 = vmatprep.mubr.f32.mxu0 0.0
          %934 = vmatmul.mubr.f32.gmra.mrb[0].mxu0 %v858
          %v935 = vpop.f32.mrb[0].mxu0
          %v936 = vadd.f32 %v849, %v935
          %v937 = vpop.f32.mrb[0].mxu0
          %v938 = vadd.f32 %v850, %v937
          %939 = vmatprep.mubr.f32.mxu0 0.0
          %940 = vmatmul.mubr.f32.gmra.mrb[0].mxu0 %v861
          %v941 = vpop.f32.mrb[0].mxu0
          %v942 = vadd.f32 %v851, %v941
          %v943 = vpop.f32.mrb[0].mxu0
          %v944 = vadd.f32 %v852, %v943
          %945 = vmatprep.mubr.f32.mxu0 0.0
          %946 = vmatmul.mubr.f32.gmra.mrb[0].mxu0 %v864
          %v947 = vpop.f32.mrb[0].mxu0
          %v948 = vadd.f32 %v853, %v947
          %v949 = vpop.f32.mrb[0].mxu0
          %v950 = vadd.f32 %v854, %v949
          %951 = vmatprep.mubr.f32.mxu0 0.0
          %952 = vmatmul.mubr.f32.gmra.mrb[0].mxu0 %v867
          %v953 = vpop.f32.mrb[0].mxu0
          %v954 = vadd.f32 %v855, %v953
          %v955 = vpop.f32.mrb[0].mxu0
          %v956 = vadd.f32 %v856, %v955
          %957 = vdwg.mxu0
          %v958 = vmax.f32 %v936, 0.0
          %v959 = vmax.f32 %v938, 0.0
          %v960 = vmax.f32 %v942, 0.0
          %v961 = vmax.f32 %v944, 0.0
          %v962 = vmax.f32 %v948, 0.0
          %v963 = vmax.f32 %v950, 0.0
          %v964 = vmax.f32 %v954, 0.0
          %v965 = vmax.f32 %v956, 0.0
          %s966 = scalar_lea.vmem [#allocation4], 128
          %v967 = vld [vmem:[%s966] sm:$0xff]
          %v968 = vld [vmem:[%s966 + $0x8] sm:$0xff]
          %v969 = vld [vmem:[%s966 + $0x10] sm:$0xff]
          %v970 = vld [vmem:[%s966 + $0x18] sm:$0xff]
          %s971 = scalar_lea.vmem [#allocation6], 320
          %v972 = vld [vmem:[%s971] sm:$0xff]
          %v973 = vld [vmem:[%s971 + $0x8] sm:$0xff]
          %v974 = vld [vmem:[%s971 + $0x10] sm:$0xff]
          %v975 = vld [vmem:[%s971 + $0x18] sm:$0xff]
          %v976 = vld [vmem:[%s971 + $0x20] sm:$0xff]
          %v977 = vld [vmem:[%s971 + $0x28] sm:$0xff]
          %v978 = vld [vmem:[%s971 + $0x30] sm:$0xff]
          %v979 = vld [vmem:[%s971 + $0x38] sm:$0xff]
          %v981 = vsel %vm487, %v967, 0
          %v984 = vsel %vm487, %v968, 0
          %v987 = vsel %vm487, %v969, 0
          %v990 = vsel %vm487, %v970, 0
          %992 = vmatprep.subr.mxu0 %v959
          %993 = vmatpush1.msra.mxu0 %v958
          %994 = vmatprep.subr.mxu0 %v961
          %995 = vmatpush1.msra.mxu0 %v960
          %996 = vmatprep.subr.mxu0 %v963
          %997 = vmatpush1.msra.mxu0 %v962
          %998 = vmatprep.subr.mxu0 %v965
          %999 = vmatpush1.msra.mxu0 %v964
          %1000 = vmatprep.subr.mxu0 0.0
          %1001 = vmatpush1.msra.mxu0 0.0
          %1002 = vmatprep.subr.mxu0 0.0
          %1003 = vmatpush1.msra.mxu0 0.0
          %1004 = vmatprep.subr.mxu0 0.0
          %1005 = vmatpush1.msra.mxu0 0.0
          %1006 = vmatprep.subr.mxu0 0.0
          %1007 = vmatpush1.msra.mxu0 0.0
          %1008 = vmatprep.subr.mxu0 0.0
          %1009 = vmatpush1.msra.mxu0 0.0
          %1010 = vmatprep.subr.mxu0 0.0
          %1011 = vmatpush1.msra.mxu0 0.0
          %1012 = vmatprep.subr.mxu0 0.0
          %1013 = vmatpush1.msra.mxu0 0.0
          %1014 = vmatprep.subr.mxu0 0.0
          %1015 = vmatpush1.msra.mxu0 0.0
          %1016 = vmatprep.subr.mxu0 0.0
          %1017 = vmatpush1.msra.mxu0 0.0
          %1018 = vmatprep.subr.mxu0 0.0
          %1019 = vmatpush1.msra.mxu0 0.0
          %1020 = vmatprep.subr.mxu0 0.0
          %1021 = vmatpush1.msra.mxu0 0.0
          %1022 = vmatprep.subr.mxu0 0.0
          %1023 = vmatpush1.msra.mxu0 0.0
          %1024 = vmatprep.subr.mxu0 0.0
          %1025 = vmatpush1.msra.mxu0 0.0
          %1026 = vmatprep.subr.mxu0 0.0
          %1027 = vmatpush1.msra.mxu0 0.0
          %1028 = vmatprep.subr.mxu0 0.0
          %1029 = vmatpush1.msra.mxu0 0.0
          %1030 = vmatprep.subr.mxu0 0.0
          %1031 = vmatpush1.msra.mxu0 0.0
          %1032 = vmatprep.subr.mxu0 0.0
          %1033 = vmatpush1.msra.mxu0 0.0
          %1034 = vmatprep.subr.mxu0 0.0
          %1035 = vmatpush1.msra.mxu0 0.0
          %1036 = vmatprep.subr.mxu0 0.0
          %1037 = vmatpush1.msra.mxu0 0.0
          %1038 = vmatprep.subr.mxu0 0.0
          %1039 = vmatpush1.msra.mxu0 0.0
          %1040 = vmatprep.subr.mxu0 0.0
          %1041 = vmatpush1.msra.mxu0 0.0
          %1042 = vmatprep.subr.mxu0 0.0
          %1043 = vmatpush1.msra.mxu0 0.0
          %1044 = vmatprep.subr.mxu0 0.0
          %1045 = vmatpush1.msra.mxu0 0.0
          %1046 = vmatprep.subr.mxu0 0.0
          %1047 = vmatpush1.msra.mxu0 0.0
          %1048 = vmatprep.subr.mxu0 0.0
          %1049 = vmatpush1.msra.mxu0 0.0
          %1050 = vmatprep.subr.mxu0 0.0
          %1051 = vmatpush1.msra.mxu0 0.0
          %1052 = vmatprep.subr.mxu0 0.0
          %1053 = vmatpush1.msra.mxu0 0.0
          %1054 = vmatprep.subr.mxu0 0.0
          %1055 = vmatpush1.msra.mxu0 0.0
          %1056 = vmatprep.mubr.f32.mxu0 0.0
          %1057 = vmatmul.mubr.f32.gmra.mrb[0].mxu0 %v981
          %v1058 = vpop.f32.mrb[0].mxu0
          %v1059 = vadd.f32 %v972, %v1058
          %v1060 = vpop.f32.mrb[0].mxu0
          %v1061 = vadd.f32 %v973, %v1060
          %1062 = vmatprep.mubr.f32.mxu0 0.0
          %1063 = vmatmul.mubr.f32.gmra.mrb[0].mxu0 %v984
          %v1064 = vpop.f32.mrb[0].mxu0
          %v1065 = vadd.f32 %v974, %v1064
          %v1066 = vpop.f32.mrb[0].mxu0
          %v1067 = vadd.f32 %v975, %v1066
          %1068 = vmatprep.mubr.f32.mxu0 0.0
          %1069 = vmatmul.mubr.f32.gmra.mrb[0].mxu0 %v987
          %v1070 = vpop.f32.mrb[0].mxu0
          %v1071 = vadd.f32 %v976, %v1070
          %v1072 = vpop.f32.mrb[0].mxu0
          %v1073 = vadd.f32 %v977, %v1072
          %1074 = vmatprep.mubr.f32.mxu0 0.0
          %1075 = vmatmul.mubr.f32.gmra.mrb[0].mxu0 %v990
          %v1076 = vpop.f32.mrb[0].mxu0
          %v1077 = vadd.f32 %v978, %v1076
          %v1078 = vpop.f32.mrb[0].mxu0
          %v1079 = vadd.f32 %v979, %v1078
          %1080 = vdwg.mxu0
          %v1081 = vadd.f32 %v1059, %v404
          %v1082 = vadd.f32 %v1061, %v406
          %v1083 = vadd.f32 %v1065, %v410
          %v1084 = vadd.f32 %v1067, %v412
          %v1085 = vadd.f32 %v1071, %v416
          %v1086 = vadd.f32 %v1073, %v418
          %v1087 = vadd.f32 %v1077, %v422
          %v1088 = vadd.f32 %v1079, %v424
          %v1089 = vmax.f32 %v1081, 0.0
          %v1090 = vmax.f32 %v1082, 0.0
          %v1091 = vmax.f32 %v1083, 0.0
          %v1092 = vmax.f32 %v1084, 0.0
          %v1093 = vmax.f32 %v1085, 0.0
          %v1094 = vmax.f32 %v1086, 0.0
          %v1095 = vmax.f32 %v1087, 0.0
          %v1096 = vmax.f32 %v1088, 0.0
          %s1097 = scalar_lea.vmem [#allocation4], 160
          %v1098 = vld [vmem:[%s1097] sm:$0xff]
          %v1099 = vld [vmem:[%s1097 + $0x8] sm:$0xff]
          %v1100 = vld [vmem:[%s1097 + $0x10] sm:$0xff]
          %v1101 = vld [vmem:[%s1097 + $0x18] sm:$0xff]
          %s1102 = scalar_lea.vmem [#allocation6], 384
          %v1103 = vld [vmem:[%s1102] sm:$0xff]
          %v1104 = vld [vmem:[%s1102 + $0x8] sm:$0xff]
          %v1105 = vld [vmem:[%s1102 + $0x10] sm:$0xff]
          %v1106 = vld [vmem:[%s1102 + $0x18] sm:$0xff]
          %v1107 = vld [vmem:[%s1102 + $0x20] sm:$0xff]
          %v1108 = vld [vmem:[%s1102 + $0x28] sm:$0xff]
          %v1109 = vld [vmem:[%s1102 + $0x30] sm:$0xff]
          %v1110 = vld [vmem:[%s1102 + $0x38] sm:$0xff]
          %v1112 = vsel %vm487, %v1098, 0
          %v1115 = vsel %vm487, %v1099, 0
          %v1118 = vsel %vm487, %v1100, 0
          %v1121 = vsel %vm487, %v1101, 0
          %1123 = vmatprep.subr.mxu0 %v1090
          %1124 = vmatpush1.msra.mxu0 %v1089
          %1125 = vmatprep.subr.mxu0 %v1092
          %1126 = vmatpush1.msra.mxu0 %v1091
          %1127 = vmatprep.subr.mxu0 %v1094
          %1128 = vmatpush1.msra.mxu0 %v1093
          %1129 = vmatprep.subr.mxu0 %v1096
          %1130 = vmatpush1.msra.mxu0 %v1095
          %1131 = vmatprep.subr.mxu0 0.0
          %1132 = vmatpush1.msra.mxu0 0.0
          %1133 = vmatprep.subr.mxu0 0.0
          %1134 = vmatpush1.msra.mxu0 0.0
          %1135 = vmatprep.subr.mxu0 0.0
          %1136 = vmatpush1.msra.mxu0 0.0
          %1137 = vmatprep.subr.mxu0 0.0
          %1138 = vmatpush1.msra.mxu0 0.0
          %1139 = vmatprep.subr.mxu0 0.0
          %1140 = vmatpush1.msra.mxu0 0.0
          %1141 = vmatprep.subr.mxu0 0.0
          %1142 = vmatpush1.msra.mxu0 0.0
          %1143 = vmatprep.subr.mxu0 0.0
          %1144 = vmatpush1.msra.mxu0 0.0
          %1145 = vmatprep.subr.mxu0 0.0
          %1146 = vmatpush1.msra.mxu0 0.0
          %1147 = vmatprep.subr.mxu0 0.0
          %1148 = vmatpush1.msra.mxu0 0.0
          %1149 = vmatprep.subr.mxu0 0.0
          %1150 = vmatpush1.msra.mxu0 0.0
          %1151 = vmatprep.subr.mxu0 0.0
          %1152 = vmatpush1.msra.mxu0 0.0
          %1153 = vmatprep.subr.mxu0 0.0
          %1154 = vmatpush1.msra.mxu0 0.0
          %1155 = vmatprep.subr.mxu0 0.0
          %1156 = vmatpush1.msra.mxu0 0.0
          %1157 = vmatprep.subr.mxu0 0.0
          %1158 = vmatpush1.msra.mxu0 0.0
          %1159 = vmatprep.subr.mxu0 0.0
          %1160 = vmatpush1.msra.mxu0 0.0
          %1161 = vmatprep.subr.mxu0 0.0
          %1162 = vmatpush1.msra.mxu0 0.0
          %1163 = vmatprep.subr.mxu0 0.0
          %1164 = vmatpush1.msra.mxu0 0.0
          %1165 = vmatprep.subr.mxu0 0.0
          %1166 = vmatpush1.msra.mxu0 0.0
          %1167 = vmatprep.subr.mxu0 0.0
          %1168 = vmatpush1.msra.mxu0 0.0
          %1169 = vmatprep.subr.mxu0 0.0
          %1170 = vmatpush1.msra.mxu0 0.0
          %1171 = vmatprep.subr.mxu0 0.0
          %1172 = vmatpush1.msra.mxu0 0.0
          %1173 = vmatprep.subr.mxu0 0.0
          %1174 = vmatpush1.msra.mxu0 0.0
          %1175 = vmatprep.subr.mxu0 0.0
          %1176 = vmatpush1.msra.mxu0 0.0
          %1177 = vmatprep.subr.mxu0 0.0
          %1178 = vmatpush1.msra.mxu0 0.0
          %1179 = vmatprep.subr.mxu0 0.0
          %1180 = vmatpush1.msra.mxu0 0.0
          %1181 = vmatprep.subr.mxu0 0.0
          %1182 = vmatpush1.msra.mxu0 0.0
          %1183 = vmatprep.subr.mxu0 0.0
          %1184 = vmatpush1.msra.mxu0 0.0
          %1185 = vmatprep.subr.mxu0 0.0
          %1186 = vmatpush1.msra.mxu0 0.0
          %1187 = vmatprep.mubr.f32.mxu0 0.0
          %1188 = vmatmul.mubr.f32.gmra.mrb[0].mxu0 %v1112
          %v1189 = vpop.f32.mrb[0].mxu0
          %v1190 = vadd.f32 %v1103, %v1189
          %v1191 = vpop.f32.mrb[0].mxu0
          %v1192 = vadd.f32 %v1104, %v1191
          %1193 = vmatprep.mubr.f32.mxu0 0.0
          %1194 = vmatmul.mubr.f32.gmra.mrb[0].mxu0 %v1115
          %v1195 = vpop.f32.mrb[0].mxu0
          %v1196 = vadd.f32 %v1105, %v1195
          %v1197 = vpop.f32.mrb[0].mxu0
          %v1198 = vadd.f32 %v1106, %v1197
          %1199 = vmatprep.mubr.f32.mxu0 0.0
          %1200 = vmatmul.mubr.f32.gmra.mrb[0].mxu0 %v1118
          %v1201 = vpop.f32.mrb[0].mxu0
          %v1202 = vadd.f32 %v1107, %v1201
          %v1203 = vpop.f32.mrb[0].mxu0
          %v1204 = vadd.f32 %v1108, %v1203
          %1205 = vmatprep.mubr.f32.mxu0 0.0
          %1206 = vmatmul.mubr.f32.gmra.mrb[0].mxu0 %v1121
          %v1207 = vpop.f32.mrb[0].mxu0
          %v1208 = vadd.f32 %v1109, %v1207
          %v1209 = vpop.f32.mrb[0].mxu0
          %v1210 = vadd.f32 %v1110, %v1209
          %1211 = vdwg.mxu0
          %v1212 = vmax.f32 %v1190, 0.0
          %v1213 = vmax.f32 %v1192, 0.0
          %v1214 = vmax.f32 %v1196, 0.0
          %v1215 = vmax.f32 %v1198, 0.0
          %v1216 = vmax.f32 %v1202, 0.0
          %v1217 = vmax.f32 %v1204, 0.0
          %v1218 = vmax.f32 %v1208, 0.0
          %v1219 = vmax.f32 %v1210, 0.0
          %s1220 = scalar_lea.vmem [#allocation4], 192
          %v1221 = vld [vmem:[%s1220] sm:$0xff]
          %v1222 = vld [vmem:[%s1220 + $0x8] sm:$0xff]
          %v1223 = vld [vmem:[%s1220 + $0x10] sm:$0xff]
          %v1224 = vld [vmem:[%s1220 + $0x18] sm:$0xff]
          %s1225 = scalar_lea.vmem [#allocation6], 448
          %v1226 = vld [vmem:[%s1225] sm:$0xff]
          %v1227 = vld [vmem:[%s1225 + $0x8] sm:$0xff]
          %v1228 = vld [vmem:[%s1225 + $0x10] sm:$0xff]
          %v1229 = vld [vmem:[%s1225 + $0x18] sm:$0xff]
          %v1230 = vld [vmem:[%s1225 + $0x20] sm:$0xff]
          %v1231 = vld [vmem:[%s1225 + $0x28] sm:$0xff]
          %v1232 = vld [vmem:[%s1225 + $0x30] sm:$0xff]
          %v1233 = vld [vmem:[%s1225 + $0x38] sm:$0xff]
          %v1235 = vsel %vm487, %v1221, 0
          %v1238 = vsel %vm487, %v1222, 0
          %v1241 = vsel %vm487, %v1223, 0
          %v1244 = vsel %vm487, %v1224, 0
          %1246 = vmatprep.subr.mxu0 %v1213
          %1247 = vmatpush1.msra.mxu0 %v1212
          %1248 = vmatprep.subr.mxu0 %v1215
          %1249 = vmatpush1.msra.mxu0 %v1214
          %1250 = vmatprep.subr.mxu0 %v1217
          %1251 = vmatpush1.msra.mxu0 %v1216
          %1252 = vmatprep.subr.mxu0 %v1219
          %1253 = vmatpush1.msra.mxu0 %v1218
          %1254 = vmatprep.subr.mxu0 0.0
          %1255 = vmatpush1.msra.mxu0 0.0
          %1256 = vmatprep.subr.mxu0 0.0
          %1257 = vmatpush1.msra.mxu0 0.0
          %1258 = vmatprep.subr.mxu0 0.0
          %1259 = vmatpush1.msra.mxu0 0.0
          %1260 = vmatprep.subr.mxu0 0.0
          %1261 = vmatpush1.msra.mxu0 0.0
          %1262 = vmatprep.subr.mxu0 0.0
          %1263 = vmatpush1.msra.mxu0 0.0
          %1264 = vmatprep.subr.mxu0 0.0
          %1265 = vmatpush1.msra.mxu0 0.0
          %1266 = vmatprep.subr.mxu0 0.0
          %1267 = vmatpush1.msra.mxu0 0.0
          %1268 = vmatprep.subr.mxu0 0.0
          %1269 = vmatpush1.msra.mxu0 0.0
          %1270 = vmatprep.subr.mxu0 0.0
          %1271 = vmatpush1.msra.mxu0 0.0
          %1272 = vmatprep.subr.mxu0 0.0
          %1273 = vmatpush1.msra.mxu0 0.0
          %1274 = vmatprep.subr.mxu0 0.0
          %1275 = vmatpush1.msra.mxu0 0.0
          %1276 = vmatprep.subr.mxu0 0.0
          %1277 = vmatpush1.msra.mxu0 0.0
          %1278 = vmatprep.subr.mxu0 0.0
          %1279 = vmatpush1.msra.mxu0 0.0
          %1280 = vmatprep.subr.mxu0 0.0
          %1281 = vmatpush1.msra.mxu0 0.0
          %1282 = vmatprep.subr.mxu0 0.0
          %1283 = vmatpush1.msra.mxu0 0.0
          %1284 = vmatprep.subr.mxu0 0.0
          %1285 = vmatpush1.msra.mxu0 0.0
          %1286 = vmatprep.subr.mxu0 0.0
          %1287 = vmatpush1.msra.mxu0 0.0
          %1288 = vmatprep.subr.mxu0 0.0
          %1289 = vmatpush1.msra.mxu0 0.0
          %1290 = vmatprep.subr.mxu0 0.0
          %1291 = vmatpush1.msra.mxu0 0.0
          %1292 = vmatprep.subr.mxu0 0.0
          %1293 = vmatpush1.msra.mxu0 0.0
          %1294 = vmatprep.subr.mxu0 0.0
          %1295 = vmatpush1.msra.mxu0 0.0
          %1296 = vmatprep.subr.mxu0 0.0
          %1297 = vmatpush1.msra.mxu0 0.0
          %1298 = vmatprep.subr.mxu0 0.0
          %1299 = vmatpush1.msra.mxu0 0.0
          %1300 = vmatprep.subr.mxu0 0.0
          %1301 = vmatpush1.msra.mxu0 0.0
          %1302 = vmatprep.subr.mxu0 0.0
          %1303 = vmatpush1.msra.mxu0 0.0
          %1304 = vmatprep.subr.mxu0 0.0
          %1305 = vmatpush1.msra.mxu0 0.0
          %1306 = vmatprep.subr.mxu0 0.0
          %1307 = vmatpush1.msra.mxu0 0.0
          %1308 = vmatprep.subr.mxu0 0.0
          %1309 = vmatpush1.msra.mxu0 0.0
          %1310 = vmatprep.mubr.f32.mxu0 0.0
          %1311 = vmatmul.mubr.f32.gmra.mrb[0].mxu0 %v1235
          %v1312 = vpop.f32.mrb[0].mxu0
          %v1313 = vadd.f32 %v1226, %v1312
          %v1314 = vpop.f32.mrb[0].mxu0
          %v1315 = vadd.f32 %v1227, %v1314
          %1316 = vmatprep.mubr.f32.mxu0 0.0
          %1317 = vmatmul.mubr.f32.gmra.mrb[0].mxu0 %v1238
          %v1318 = vpop.f32.mrb[0].mxu0
          %v1319 = vadd.f32 %v1228, %v1318
          %v1320 = vpop.f32.mrb[0].mxu0
          %v1321 = vadd.f32 %v1229, %v1320
          %1322 = vmatprep.mubr.f32.mxu0 0.0
          %1323 = vmatmul.mubr.f32.gmra.mrb[0].mxu0 %v1241
          %v1324 = vpop.f32.mrb[0].mxu0
          %v1325 = vadd.f32 %v1230, %v1324
          %v1326 = vpop.f32.mrb[0].mxu0
          %v1327 = vadd.f32 %v1231, %v1326
          %1328 = vmatprep.mubr.f32.mxu0 0.0
          %1329 = vmatmul.mubr.f32.gmra.mrb[0].mxu0 %v1244
          %v1330 = vpop.f32.mrb[0].mxu0
          %v1331 = vadd.f32 %v1232, %v1330
          %v1332 = vpop.f32.mrb[0].mxu0
          %v1333 = vadd.f32 %v1233, %v1332
          %1334 = vdwg.mxu0
          %v1335 = vmax.f32 %v1313, 0.0
          %v1336 = vmax.f32 %v1315, 0.0
          %v1337 = vmax.f32 %v1319, 0.0
          %v1338 = vmax.f32 %v1321, 0.0
          %v1339 = vmax.f32 %v1325, 0.0
          %v1340 = vmax.f32 %v1327, 0.0
          %v1341 = vmax.f32 %v1331, 0.0
          %v1342 = vmax.f32 %v1333, 0.0
          %s1343 = scalar_lea.vmem [#allocation4], 224
          %v1344 = vld [vmem:[%s1343] sm:$0xff]
          %v1345 = vld [vmem:[%s1343 + $0x8] sm:$0xff]
          %v1346 = vld [vmem:[%s1343 + $0x10] sm:$0xff]
          %v1347 = vld [vmem:[%s1343 + $0x18] sm:$0xff]
          %v1349 = vsel %vm487, %v1344, 0
          %v1352 = vsel %vm487, %v1345, 0
          %v1355 = vsel %vm487, %v1346, 0
          %v1358 = vsel %vm487, %v1347, 0
          %1360 = vmatprep.subr.mxu0 %v1336
          %1361 = vmatpush1.msra.mxu0 %v1335
          %1362 = vmatprep.subr.mxu0 %v1338
          %1363 = vmatpush1.msra.mxu0 %v1337
          %1364 = vmatprep.subr.mxu0 %v1340
          %1365 = vmatpush1.msra.mxu0 %v1339
          %1366 = vmatprep.subr.mxu0 %v1342
          %1367 = vmatpush1.msra.mxu0 %v1341
          %1368 = vmatprep.subr.mxu0 0.0
          %1369 = vmatpush1.msra.mxu0 0.0
          %1370 = vmatprep.subr.mxu0 0.0
          %1371 = vmatpush1.msra.mxu0 0.0
          %1372 = vmatprep.subr.mxu0 0.0
          %1373 = vmatpush1.msra.mxu0 0.0
          %1374 = vmatprep.subr.mxu0 0.0
          %1375 = vmatpush1.msra.mxu0 0.0
          %1376 = vmatprep.subr.mxu0 0.0
          %1377 = vmatpush1.msra.mxu0 0.0
          %1378 = vmatprep.subr.mxu0 0.0
          %1379 = vmatpush1.msra.mxu0 0.0
          %1380 = vmatprep.subr.mxu0 0.0
          %1381 = vmatpush1.msra.mxu0 0.0
          %1382 = vmatprep.subr.mxu0 0.0
          %1383 = vmatpush1.msra.mxu0 0.0
          %1384 = vmatprep.subr.mxu0 0.0
          %1385 = vmatpush1.msra.mxu0 0.0
          %1386 = vmatprep.subr.mxu0 0.0
          %1387 = vmatpush1.msra.mxu0 0.0
          %1388 = vmatprep.subr.mxu0 0.0
          %1389 = vmatpush1.msra.mxu0 0.0
          %1390 = vmatprep.subr.mxu0 0.0
          %1391 = vmatpush1.msra.mxu0 0.0
          %1392 = vmatprep.subr.mxu0 0.0
          %1393 = vmatpush1.msra.mxu0 0.0
          %1394 = vmatprep.subr.mxu0 0.0
          %1395 = vmatpush1.msra.mxu0 0.0
          %1396 = vmatprep.subr.mxu0 0.0
          %1397 = vmatpush1.msra.mxu0 0.0
          %1398 = vmatprep.subr.mxu0 0.0
          %1399 = vmatpush1.msra.mxu0 0.0
          %1400 = vmatprep.subr.mxu0 0.0
          %1401 = vmatpush1.msra.mxu0 0.0
          %1402 = vmatprep.subr.mxu0 0.0
          %1403 = vmatpush1.msra.mxu0 0.0
          %1404 = vmatprep.subr.mxu0 0.0
          %1405 = vmatpush1.msra.mxu0 0.0
          %1406 = vmatprep.subr.mxu0 0.0
          %1407 = vmatpush1.msra.mxu0 0.0
          %1408 = vmatprep.subr.mxu0 0.0
          %1409 = vmatpush1.msra.mxu0 0.0
          %1410 = vmatprep.subr.mxu0 0.0
          %1411 = vmatpush1.msra.mxu0 0.0
          %1412 = vmatprep.subr.mxu0 0.0
          %1413 = vmatpush1.msra.mxu0 0.0
          %1414 = vmatprep.subr.mxu0 0.0
          %1415 = vmatpush1.msra.mxu0 0.0
          %1416 = vmatprep.subr.mxu0 0.0
          %1417 = vmatpush1.msra.mxu0 0.0
          %1418 = vmatprep.subr.mxu0 0.0
          %1419 = vmatpush1.msra.mxu0 0.0
          %1420 = vmatprep.subr.mxu0 0.0
          %1421 = vmatpush1.msra.mxu0 0.0
          %1422 = vmatprep.subr.mxu0 0.0
          %1423 = vmatpush1.msra.mxu0 0.0
          %1424 = vmatprep.mubr.f32.mxu0 0.0
          %1425 = vmatmul.mubr.f32.gmra.mrb[0].mxu0 %v1349
          %v1426 = vpop.f32.mrb[0].mxu0
          %v1427 = vadd.f32 %v428, %v1426
          %v1428 = vpop.f32.mrb[0].mxu0
          %v1429 = vadd.f32 %v430, %v1428
          %1430 = vmatprep.mubr.f32.mxu0 0.0
          %1431 = vmatmul.mubr.f32.gmra.mrb[0].mxu0 %v1352
          %v1432 = vpop.f32.mrb[0].mxu0
          %v1433 = vadd.f32 %v434, %v1432
          %v1434 = vpop.f32.mrb[0].mxu0
          %v1435 = vadd.f32 %v436, %v1434
          %1436 = vmatprep.mubr.f32.mxu0 0.0
          %1437 = vmatmul.mubr.f32.gmra.mrb[0].mxu0 %v1355
          %v1438 = vpop.f32.mrb[0].mxu0
          %v1439 = vadd.f32 %v440, %v1438
          %v1440 = vpop.f32.mrb[0].mxu0
          %v1441 = vadd.f32 %v442, %v1440
          %1442 = vmatprep.mubr.f32.mxu0 0.0
          %1443 = vmatmul.mubr.f32.gmra.mrb[0].mxu0 %v1358
          %v1444 = vpop.f32.mrb[0].mxu0
          %v1445 = vadd.f32 %v446, %v1444
          %v1446 = vpop.f32.mrb[0].mxu0
          %v1447 = vadd.f32 %v448, %v1446
          %1448 = vdwg.mxu0
          %s1449 = scalar_lea.vmem [#allocation6], 512
          %v1450 = vld [vmem:[%s1449] sm:$0xff]
          %v1451 = vld [vmem:[%s1449 + $0x8] sm:$0xff]
          %v1452 = vld [vmem:[%s1449 + $0x10] sm:$0xff]
          %v1453 = vld [vmem:[%s1449 + $0x18] sm:$0xff]
          %v1454 = vld [vmem:[%s1449 + $0x20] sm:$0xff]
          %v1455 = vld [vmem:[%s1449 + $0x28] sm:$0xff]
          %v1456 = vld [vmem:[%s1449 + $0x30] sm:$0xff]
          %v1457 = vld [vmem:[%s1449 + $0x38] sm:$0xff]
          %v1458 = vadd.f32 %v1427, %v1450
          %v1459 = vadd.f32 %v1429, %v1451
          %v1460 = vadd.f32 %v1433, %v1452
          %v1461 = vadd.f32 %v1435, %v1453
          %v1462 = vadd.f32 %v1439, %v1454
          %v1463 = vadd.f32 %v1441, %v1455
          %v1464 = vadd.f32 %v1445, %v1456
          %v1465 = vadd.f32 %v1447, %v1457
          %v1466 = vmax.f32 %v1458, 0.0
          %v1467 = vmax.f32 %v1459, 0.0
          %v1468 = vmax.f32 %v1460, 0.0
          %v1469 = vmax.f32 %v1461, 0.0
          %v1470 = vmax.f32 %v1462, 0.0
          %v1471 = vmax.f32 %v1463, 0.0
          %v1472 = vmax.f32 %v1464, 0.0
          %v1473 = vmax.f32 %v1465, 0.0
          %s1474 = scalar_lea.vmem [#allocation4], 256
          %v1475 = vld [vmem:[%s1474] sm:$0xff]
          %v1476 = vld [vmem:[%s1474 + $0x8] sm:$0xff]
          %v1477 = vld [vmem:[%s1474 + $0x10] sm:$0xff]
          %v1478 = vld [vmem:[%s1474 + $0x18] sm:$0xff]
          %s1479 = scalar_lea.vmem [#allocation6], 576
          %v1480 = vld [vmem:[%s1479] sm:$0xff]
          %v1481 = vld [vmem:[%s1479 + $0x8] sm:$0xff]
          %v1482 = vld [vmem:[%s1479 + $0x10] sm:$0xff]
          %v1483 = vld [vmem:[%s1479 + $0x18] sm:$0xff]
          %v1484 = vld [vmem:[%s1479 + $0x20] sm:$0xff]
          %v1485 = vld [vmem:[%s1479 + $0x28] sm:$0xff]
          %v1486 = vld [vmem:[%s1479 + $0x30] sm:$0xff]
          %v1487 = vld [vmem:[%s1479 + $0x38] sm:$0xff]
          %v1489 = vsel %vm487, %v1475, 0
          %v1492 = vsel %vm487, %v1476, 0
          %v1495 = vsel %vm487, %v1477, 0
          %v1498 = vsel %vm487, %v1478, 0
          %1500 = vmatprep.subr.mxu0 %v1467
          %1501 = vmatpush1.msra.mxu0 %v1466
          %1502 = vmatprep.subr.mxu0 %v1469
          %1503 = vmatpush1.msra.mxu0 %v1468
          %1504 = vmatprep.subr.mxu0 %v1471
          %1505 = vmatpush1.msra.mxu0 %v1470
          %1506 = vmatprep.subr.mxu0 %v1473
          %1507 = vmatpush1.msra.mxu0 %v1472
          %1508 = vmatprep.subr.mxu0 0.0
          %1509 = vmatpush1.msra.mxu0 0.0
          %1510 = vmatprep.subr.mxu0 0.0
          %1511 = vmatpush1.msra.mxu0 0.0
          %1512 = vmatprep.subr.mxu0 0.0
          %1513 = vmatpush1.msra.mxu0 0.0
          %1514 = vmatprep.subr.mxu0 0.0
          %1515 = vmatpush1.msra.mxu0 0.0
          %1516 = vmatprep.subr.mxu0 0.0
          %1517 = vmatpush1.msra.mxu0 0.0
          %1518 = vmatprep.subr.mxu0 0.0
          %1519 = vmatpush1.msra.mxu0 0.0
          %1520 = vmatprep.subr.mxu0 0.0
          %1521 = vmatpush1.msra.mxu0 0.0
          %1522 = vmatprep.subr.mxu0 0.0
          %1523 = vmatpush1.msra.mxu0 0.0
          %1524 = vmatprep.subr.mxu0 0.0
          %1525 = vmatpush1.msra.mxu0 0.0
          %1526 = vmatprep.subr.mxu0 0.0
          %1527 = vmatpush1.msra.mxu0 0.0
          %1528 = vmatprep.subr.mxu0 0.0
          %1529 = vmatpush1.msra.mxu0 0.0
          %1530 = vmatprep.subr.mxu0 0.0
          %1531 = vmatpush1.msra.mxu0 0.0
          %1532 = vmatprep.subr.mxu0 0.0
          %1533 = vmatpush1.msra.mxu0 0.0
          %1534 = vmatprep.subr.mxu0 0.0
          %1535 = vmatpush1.msra.mxu0 0.0
          %1536 = vmatprep.subr.mxu0 0.0
          %1537 = vmatpush1.msra.mxu0 0.0
          %1538 = vmatprep.subr.mxu0 0.0
          %1539 = vmatpush1.msra.mxu0 0.0
          %1540 = vmatprep.subr.mxu0 0.0
          %1541 = vmatpush1.msra.mxu0 0.0
          %1542 = vmatprep.subr.mxu0 0.0
          %1543 = vmatpush1.msra.mxu0 0.0
          %1544 = vmatprep.subr.mxu0 0.0
          %1545 = vmatpush1.msra.mxu0 0.0
          %1546 = vmatprep.subr.mxu0 0.0
          %1547 = vmatpush1.msra.mxu0 0.0
          %1548 = vmatprep.subr.mxu0 0.0
          %1549 = vmatpush1.msra.mxu0 0.0
          %1550 = vmatprep.subr.mxu0 0.0
          %1551 = vmatpush1.msra.mxu0 0.0
          %1552 = vmatprep.subr.mxu0 0.0
          %1553 = vmatpush1.msra.mxu0 0.0
          %1554 = vmatprep.subr.mxu0 0.0
          %1555 = vmatpush1.msra.mxu0 0.0
          %1556 = vmatprep.subr.mxu0 0.0
          %1557 = vmatpush1.msra.mxu0 0.0
          %1558 = vmatprep.subr.mxu0 0.0
          %1559 = vmatpush1.msra.mxu0 0.0
          %1560 = vmatprep.subr.mxu0 0.0
          %1561 = vmatpush1.msra.mxu0 0.0
          %1562 = vmatprep.subr.mxu0 0.0
          %1563 = vmatpush1.msra.mxu0 0.0
          %1564 = vmatprep.mubr.f32.mxu0 0.0
          %1565 = vmatmul.mubr.f32.gmra.mrb[0].mxu0 %v1489
          %v1566 = vpop.f32.mrb[0].mxu0
          %v1567 = vadd.f32 %v1480, %v1566
          %v1568 = vpop.f32.mrb[0].mxu0
          %v1569 = vadd.f32 %v1481, %v1568
          %1570 = vmatprep.mubr.f32.mxu0 0.0
          %1571 = vmatmul.mubr.f32.gmra.mrb[0].mxu0 %v1492
          %v1572 = vpop.f32.mrb[0].mxu0
          %v1573 = vadd.f32 %v1482, %v1572
          %v1574 = vpop.f32.mrb[0].mxu0
          %v1575 = vadd.f32 %v1483, %v1574
          %1576 = vmatprep.mubr.f32.mxu0 0.0
          %1577 = vmatmul.mubr.f32.gmra.mrb[0].mxu0 %v1495
          %v1578 = vpop.f32.mrb[0].mxu0
          %v1579 = vadd.f32 %v1484, %v1578
          %v1580 = vpop.f32.mrb[0].mxu0
          %v1581 = vadd.f32 %v1485, %v1580
          %1582 = vmatprep.mubr.f32.mxu0 0.0
          %1583 = vmatmul.mubr.f32.gmra.mrb[0].mxu0 %v1498
          %v1584 = vpop.f32.mrb[0].mxu0
          %v1585 = vadd.f32 %v1486, %v1584
          %v1586 = vpop.f32.mrb[0].mxu0
          %v1587 = vadd.f32 %v1487, %v1586
          %1588 = vdwg.mxu0
          %v1589 = vmax.f32 %v1567, 0.0
          %v1590 = vmax.f32 %v1569, 0.0
          %v1591 = vmax.f32 %v1573, 0.0
          %v1592 = vmax.f32 %v1575, 0.0
          %v1593 = vmax.f32 %v1579, 0.0
          %v1594 = vmax.f32 %v1581, 0.0
          %v1595 = vmax.f32 %v1585, 0.0
          %v1596 = vmax.f32 %v1587, 0.0
          %s1597 = scalar_lea.vmem [#allocation4], 288
          %v1598 = vld [vmem:[%s1597] sm:$0xff]
          %v1599 = vld [vmem:[%s1597 + $0x8] sm:$0xff]
          %v1600 = vld [vmem:[%s1597 + $0x10] sm:$0xff]
          %v1601 = vld [vmem:[%s1597 + $0x18] sm:$0xff]
          %s1602 = scalar_lea.vmem [#allocation6], 640
          %v1603 = vld [vmem:[%s1602] sm:$0xff]
          %v1604 = vld [vmem:[%s1602 + $0x8] sm:$0xff]
          %v1605 = vld [vmem:[%s1602 + $0x10] sm:$0xff]
          %v1606 = vld [vmem:[%s1602 + $0x18] sm:$0xff]
          %v1607 = vld [vmem:[%s1602 + $0x20] sm:$0xff]
          %v1608 = vld [vmem:[%s1602 + $0x28] sm:$0xff]
          %v1609 = vld [vmem:[%s1602 + $0x30] sm:$0xff]
          %v1610 = vld [vmem:[%s1602 + $0x38] sm:$0xff]
          %v1612 = vsel %vm487, %v1598, 0
          %v1615 = vsel %vm487, %v1599, 0
          %v1618 = vsel %vm487, %v1600, 0
          %v1621 = vsel %vm487, %v1601, 0
          %1623 = vmatprep.subr.mxu0 %v1590
          %1624 = vmatpush1.msra.mxu0 %v1589
          %1625 = vmatprep.subr.mxu0 %v1592
          %1626 = vmatpush1.msra.mxu0 %v1591
          %1627 = vmatprep.subr.mxu0 %v1594
          %1628 = vmatpush1.msra.mxu0 %v1593
          %1629 = vmatprep.subr.mxu0 %v1596
          %1630 = vmatpush1.msra.mxu0 %v1595
          %1631 = vmatprep.subr.mxu0 0.0
          %1632 = vmatpush1.msra.mxu0 0.0
          %1633 = vmatprep.subr.mxu0 0.0
          %1634 = vmatpush1.msra.mxu0 0.0
          %1635 = vmatprep.subr.mxu0 0.0
          %1636 = vmatpush1.msra.mxu0 0.0
          %1637 = vmatprep.subr.mxu0 0.0
          %1638 = vmatpush1.msra.mxu0 0.0
          %1639 = vmatprep.subr.mxu0 0.0
          %1640 = vmatpush1.msra.mxu0 0.0
          %1641 = vmatprep.subr.mxu0 0.0
          %1642 = vmatpush1.msra.mxu0 0.0
          %1643 = vmatprep.subr.mxu0 0.0
          %1644 = vmatpush1.msra.mxu0 0.0
          %1645 = vmatprep.subr.mxu0 0.0
          %1646 = vmatpush1.msra.mxu0 0.0
          %1647 = vmatprep.subr.mxu0 0.0
          %1648 = vmatpush1.msra.mxu0 0.0
          %1649 = vmatprep.subr.mxu0 0.0
          %1650 = vmatpush1.msra.mxu0 0.0
          %1651 = vmatprep.subr.mxu0 0.0
          %1652 = vmatpush1.msra.mxu0 0.0
          %1653 = vmatprep.subr.mxu0 0.0
          %1654 = vmatpush1.msra.mxu0 0.0
          %1655 = vmatprep.subr.mxu0 0.0
          %1656 = vmatpush1.msra.mxu0 0.0
          %1657 = vmatprep.subr.mxu0 0.0
          %1658 = vmatpush1.msra.mxu0 0.0
          %1659 = vmatprep.subr.mxu0 0.0
          %1660 = vmatpush1.msra.mxu0 0.0
          %1661 = vmatprep.subr.mxu0 0.0
          %1662 = vmatpush1.msra.mxu0 0.0
          %1663 = vmatprep.subr.mxu0 0.0
          %1664 = vmatpush1.msra.mxu0 0.0
          %1665 = vmatprep.subr.mxu0 0.0
          %1666 = vmatpush1.msra.mxu0 0.0
          %1667 = vmatprep.subr.mxu0 0.0
          %1668 = vmatpush1.msra.mxu0 0.0
          %1669 = vmatprep.subr.mxu0 0.0
          %1670 = vmatpush1.msra.mxu0 0.0
          %1671 = vmatprep.subr.mxu0 0.0
          %1672 = vmatpush1.msra.mxu0 0.0
          %1673 = vmatprep.subr.mxu0 0.0
          %1674 = vmatpush1.msra.mxu0 0.0
          %1675 = vmatprep.subr.mxu0 0.0
          %1676 = vmatpush1.msra.mxu0 0.0
          %1677 = vmatprep.subr.mxu0 0.0
          %1678 = vmatpush1.msra.mxu0 0.0
          %1679 = vmatprep.subr.mxu0 0.0
          %1680 = vmatpush1.msra.mxu0 0.0
          %1681 = vmatprep.subr.mxu0 0.0
          %1682 = vmatpush1.msra.mxu0 0.0
          %1683 = vmatprep.subr.mxu0 0.0
          %1684 = vmatpush1.msra.mxu0 0.0
          %1685 = vmatprep.subr.mxu0 0.0
          %1686 = vmatpush1.msra.mxu0 0.0
          %1687 = vmatprep.mubr.f32.mxu0 0.0
          %1688 = vmatmul.mubr.f32.gmra.mrb[0].mxu0 %v1612
          %v1689 = vpop.f32.mrb[0].mxu0
          %v1690 = vadd.f32 %v1603, %v1689
          %v1691 = vpop.f32.mrb[0].mxu0
          %v1692 = vadd.f32 %v1604, %v1691
          %1693 = vmatprep.mubr.f32.mxu0 0.0
          %1694 = vmatmul.mubr.f32.gmra.mrb[0].mxu0 %v1615
          %v1695 = vpop.f32.mrb[0].mxu0
          %v1696 = vadd.f32 %v1605, %v1695
          %v1697 = vpop.f32.mrb[0].mxu0
          %v1698 = vadd.f32 %v1606, %v1697
          %1699 = vmatprep.mubr.f32.mxu0 0.0
          %1700 = vmatmul.mubr.f32.gmra.mrb[0].mxu0 %v1618
          %v1701 = vpop.f32.mrb[0].mxu0
          %v1702 = vadd.f32 %v1607, %v1701
          %v1703 = vpop.f32.mrb[0].mxu0
          %v1704 = vadd.f32 %v1608, %v1703
          %1705 = vmatprep.mubr.f32.mxu0 0.0
          %1706 = vmatmul.mubr.f32.gmra.mrb[0].mxu0 %v1621
          %v1707 = vpop.f32.mrb[0].mxu0
          %v1708 = vadd.f32 %v1609, %v1707
          %v1709 = vpop.f32.mrb[0].mxu0
          %v1710 = vadd.f32 %v1610, %v1709
          %1711 = vdwg.mxu0
          %v1712 = vmax.f32 %v1690, 0.0
          %v1713 = vmax.f32 %v1692, 0.0
          %v1714 = vmax.f32 %v1696, 0.0
          %v1715 = vmax.f32 %v1698, 0.0
          %v1716 = vmax.f32 %v1702, 0.0
          %v1717 = vmax.f32 %v1704, 0.0
          %v1718 = vmax.f32 %v1708, 0.0
          %v1719 = vmax.f32 %v1710, 0.0
          %s1720 = scalar_lea.vmem [#allocation4], 320
          %v1721 = vld [vmem:[%s1720] sm:$0xff]
          %v1722 = vld [vmem:[%s1720 + $0x8] sm:$0xff]
          %v1723 = vld [vmem:[%s1720 + $0x10] sm:$0xff]
          %v1724 = vld [vmem:[%s1720 + $0x18] sm:$0xff]
          %s1725 = scalar_lea.vmem [#allocation6], 704
          %v1726 = vld [vmem:[%s1725] sm:$0xff]
          %v1727 = vld [vmem:[%s1725 + $0x8] sm:$0xff]
          %v1729 = vsel %vm487, %v1721, 0
          %v1732 = vsel %vm487, %v1722, 0
          %v1735 = vsel %vm487, %v1723, 0
          %v1738 = vsel %vm487, %v1724, 0
          %1740 = vmatprep.subr.mxu0 %v1713
          %1741 = vmatpush1.msra.mxu0 %v1712
          %1742 = vmatprep.subr.mxu0 %v1715
          %1743 = vmatpush1.msra.mxu0 %v1714
          %1744 = vmatprep.subr.mxu0 %v1717
          %1745 = vmatpush1.msra.mxu0 %v1716
          %1746 = vmatprep.subr.mxu0 %v1719
          %1747 = vmatpush1.msra.mxu0 %v1718
          %1748 = vmatprep.subr.mxu0 0.0
          %1749 = vmatpush1.msra.mxu0 0.0
          %1750 = vmatprep.subr.mxu0 0.0
          %1751 = vmatpush1.msra.mxu0 0.0
          %1752 = vmatprep.subr.mxu0 0.0
          %1753 = vmatpush1.msra.mxu0 0.0
          %1754 = vmatprep.subr.mxu0 0.0
          %1755 = vmatpush1.msra.mxu0 0.0
          %1756 = vmatprep.subr.mxu0 0.0
          %1757 = vmatpush1.msra.mxu0 0.0
          %1758 = vmatprep.subr.mxu0 0.0
          %1759 = vmatpush1.msra.mxu0 0.0
          %1760 = vmatprep.subr.mxu0 0.0
          %1761 = vmatpush1.msra.mxu0 0.0
          %1762 = vmatprep.subr.mxu0 0.0
          %1763 = vmatpush1.msra.mxu0 0.0
          %1764 = vmatprep.subr.mxu0 0.0
          %1765 = vmatpush1.msra.mxu0 0.0
          %1766 = vmatprep.subr.mxu0 0.0
          %1767 = vmatpush1.msra.mxu0 0.0
          %1768 = vmatprep.subr.mxu0 0.0
          %1769 = vmatpush1.msra.mxu0 0.0
          %1770 = vmatprep.subr.mxu0 0.0
          %1771 = vmatpush1.msra.mxu0 0.0
          %1772 = vmatprep.subr.mxu0 0.0
          %1773 = vmatpush1.msra.mxu0 0.0
          %1774 = vmatprep.subr.mxu0 0.0
          %1775 = vmatpush1.msra.mxu0 0.0
          %1776 = vmatprep.subr.mxu0 0.0
          %1777 = vmatpush1.msra.mxu0 0.0
          %1778 = vmatprep.subr.mxu0 0.0
          %1779 = vmatpush1.msra.mxu0 0.0
          %1780 = vmatprep.subr.mxu0 0.0
          %1781 = vmatpush1.msra.mxu0 0.0
          %1782 = vmatprep.subr.mxu0 0.0
          %1783 = vmatpush1.msra.mxu0 0.0
          %1784 = vmatprep.subr.mxu0 0.0
          %1785 = vmatpush1.msra.mxu0 0.0
          %1786 = vmatprep.subr.mxu0 0.0
          %1787 = vmatpush1.msra.mxu0 0.0
          %1788 = vmatprep.subr.mxu0 0.0
          %1789 = vmatpush1.msra.mxu0 0.0
          %1790 = vmatprep.subr.mxu0 0.0
          %1791 = vmatpush1.msra.mxu0 0.0
          %1792 = vmatprep.subr.mxu0 0.0
          %1793 = vmatpush1.msra.mxu0 0.0
          %1794 = vmatprep.subr.mxu0 0.0
          %1795 = vmatpush1.msra.mxu0 0.0
          %1796 = vmatprep.subr.mxu0 0.0
          %1797 = vmatpush1.msra.mxu0 0.0
          %1798 = vmatprep.subr.mxu0 0.0
          %1799 = vmatpush1.msra.mxu0 0.0
          %1800 = vmatprep.subr.mxu0 0.0
          %1801 = vmatpush1.msra.mxu0 0.0
          %1802 = vmatprep.subr.mxu0 0.0
          %1803 = vmatpush1.msra.mxu0 0.0
          %1804 = vmatprep.mubr.f32.mxu0 0.0
          %1805 = vmatmul.mubr.f32.gmra.mrb[0].mxu0 %v1729
          %v1806 = vpop.f32.mrb[0].mxu0
          %v1807 = vadd.f32 %v1726, %v1806
          %v1808 = vpop.f32.mrb[0].mxu0
          %v1809 = vadd.f32 %v1727, %v1808
          %1810 = vmatprep.mubr.f32.mxu0 0.0
          %1811 = vmatmul.mubr.f32.gmra.mrb[0].mxu0 %v1732
          %v1812 = vpop.f32.mrb[0].mxu0
          %v1813 = vpop.f32.mrb[0].mxu0
          %1814 = vmatprep.mubr.f32.mxu0 0.0
          %1815 = vmatmul.mubr.f32.gmra.mrb[0].mxu0 %v1735
          %v1816 = vpop.f32.mrb[0].mxu0
          %v1817 = vpop.f32.mrb[0].mxu0
          %1818 = vmatprep.mubr.f32.mxu0 0.0
          %1819 = vmatmul.mubr.f32.gmra.mrb[0].mxu0 %v1738
          %v1820 = vpop.f32.mrb[0].mxu0
          %v1821 = vpop.f32.mrb[0].mxu0
          %1822 = vdwg.mxu0
          %s1823 = smul.addr %s259, 8
          %s1824 = scalar_lea.vmem %s250, %s1823
          %1825 = vst [vmem:[%s1824] sm:$0xff] %v1807
          %1826 = vst [vmem:[%s1824 + $0x8] sm:$0xff] %v1809
          %s1827 = sadd.s32 %s258, 1
          %s1828 = smul.u32 %s1827, 2
          %s1829 = smul.addr %s1828, 8
          %s1830 = scalar_lea.vmem %s210, %s1829 [#allocation2]
          %v1831 = vld [vmem:[%s1830] sm:$0xff]
          %v1832 = vld [vmem:[%s1830 + $0x8] sm:$0xff]
          %v1833 = vld [vmem:[%s1] sm:$0xff]
          %v1834 = vld [vmem:[%s1 + $0x8] sm:$0xff]
          %v1835 = vld [vmem:[%s1 + $0x10] sm:$0xff]
          %v1836 = vld [vmem:[%s1 + $0x18] sm:$0xff]
          %v1837 = vld [vmem:[%s1 + $0x20] sm:$0xff]
          %v1838 = vld [vmem:[%s1 + $0x28] sm:$0xff]
          %v1839 = vld [vmem:[%s1 + $0x30] sm:$0xff]
          %v1840 = vld [vmem:[%s1 + $0x38] sm:$0xff]
          %v1841 = vld [vmem:[%s1 + $0x40] sm:$0xff]
          %v1842 = vld [vmem:[%s1 + $0x48] sm:$0xff]
          %v1843 = vld [vmem:[%s1 + $0x50] sm:$0xff]
          %v1844 = vld [vmem:[%s1 + $0x58] sm:$0xff]
          %v1846 = vsel %vm276, %v1833, 0
          %v1849 = vsel %vm276, %v1834, 0
          %v1852 = vsel %vm276, %v1835, 0
          %v1855 = vsel %vm276, %v1836, 0
          %v1858 = vsel %vm276, %v1837, 0
          %v1861 = vsel %vm276, %v1838, 0
          %v1864 = vsel %vm276, %v1839, 0
          %v1867 = vsel %vm276, %v1840, 0
          %v1870 = vsel %vm276, %v1841, 0
          %v1873 = vsel %vm276, %v1842, 0
          %v1876 = vsel %vm276, %v1843, 0
          %v1879 = vsel %vm276, %v1844, 0
          %1881 = vmatprep.subr.mxu0 %v1832
          %1882 = vmatpush1.msra.mxu0 %v1831
          %1883 = vmatprep.subr.mxu0 0.0
          %1884 = vmatpush1.msra.mxu0 0.0
          %1885 = vmatprep.subr.mxu0 0.0
          %1886 = vmatpush1.msra.mxu0 0.0
          %1887 = vmatprep.subr.mxu0 0.0
          %1888 = vmatpush1.msra.mxu0 0.0
          %1889 = vmatprep.subr.mxu0 0.0
          %1890 = vmatpush1.msra.mxu0 0.0
          %1891 = vmatprep.subr.mxu0 0.0
          %1892 = vmatpush1.msra.mxu0 0.0
          %1893 = vmatprep.subr.mxu0 0.0
          %1894 = vmatpush1.msra.mxu0 0.0
          %1895 = vmatprep.subr.mxu0 0.0
          %1896 = vmatpush1.msra.mxu0 0.0
          %1897 = vmatprep.subr.mxu0 0.0
          %1898 = vmatpush1.msra.mxu0 0.0
          %1899 = vmatprep.subr.mxu0 0.0
          %1900 = vmatpush1.msra.mxu0 0.0
          %1901 = vmatprep.subr.mxu0 0.0
          %1902 = vmatpush1.msra.mxu0 0.0
          %1903 = vmatprep.subr.mxu0 0.0
          %1904 = vmatpush1.msra.mxu0 0.0
          %1905 = vmatprep.subr.mxu0 0.0
          %1906 = vmatpush1.msra.mxu0 0.0
          %1907 = vmatprep.subr.mxu0 0.0
          %1908 = vmatpush1.msra.mxu0 0.0
          %1909 = vmatprep.subr.mxu0 0.0
          %1910 = vmatpush1.msra.mxu0 0.0
          %1911 = vmatprep.subr.mxu0 0.0
          %1912 = vmatpush1.msra.mxu0 0.0
          %1913 = vmatprep.subr.mxu0 0.0
          %1914 = vmatpush1.msra.mxu0 0.0
          %1915 = vmatprep.subr.mxu0 0.0
          %1916 = vmatpush1.msra.mxu0 0.0
          %1917 = vmatprep.subr.mxu0 0.0
          %1918 = vmatpush1.msra.mxu0 0.0
          %1919 = vmatprep.subr.mxu0 0.0
          %1920 = vmatpush1.msra.mxu0 0.0
          %1921 = vmatprep.subr.mxu0 0.0
          %1922 = vmatpush1.msra.mxu0 0.0
          %1923 = vmatprep.subr.mxu0 0.0
          %1924 = vmatpush1.msra.mxu0 0.0
          %1925 = vmatprep.subr.mxu0 0.0
          %1926 = vmatpush1.msra.mxu0 0.0
          %1927 = vmatprep.subr.mxu0 0.0
          %1928 = vmatpush1.msra.mxu0 0.0
          %1929 = vmatprep.subr.mxu0 0.0
          %1930 = vmatpush1.msra.mxu0 0.0
          %1931 = vmatprep.subr.mxu0 0.0
          %1932 = vmatpush1.msra.mxu0 0.0
          %1933 = vmatprep.subr.mxu0 0.0
          %1934 = vmatpush1.msra.mxu0 0.0
          %1935 = vmatprep.subr.mxu0 0.0
          %1936 = vmatpush1.msra.mxu0 0.0
          %1937 = vmatprep.subr.mxu0 0.0
          %1938 = vmatpush1.msra.mxu0 0.0
          %1939 = vmatprep.subr.mxu0 0.0
          %1940 = vmatpush1.msra.mxu0 0.0
          %1941 = vmatprep.subr.mxu0 0.0
          %1942 = vmatpush1.msra.mxu0 0.0
          %1943 = vmatprep.subr.mxu0 0.0
          %1944 = vmatpush1.msra.mxu0 0.0
          %1945 = vmatprep.mubr.f32.mxu0 0.0
          %1946 = vmatmul.mubr.f32.gmra.mrb[0].mxu0 %v1846
          %v1947 = vpop.f32.mrb[0].mxu0
          %v1948 = vadd.f32 0.0, %v1947
          %v1949 = vpop.f32.mrb[0].mxu0
          %v1950 = vadd.f32 0.0, %v1949
          %1951 = vmatprep.mubr.f32.mxu0 0.0
          %1952 = vmatmul.mubr.f32.gmra.mrb[0].mxu0 %v1849
          %v1953 = vpop.f32.mrb[0].mxu0
          %v1954 = vadd.f32 0.0, %v1953
          %v1955 = vpop.f32.mrb[0].mxu0
          %v1956 = vadd.f32 0.0, %v1955
          %1957 = vmatprep.mubr.f32.mxu0 0.0
          %1958 = vmatmul.mubr.f32.gmra.mrb[0].mxu0 %v1852
          %v1959 = vpop.f32.mrb[0].mxu0
          %v1960 = vadd.f32 0.0, %v1959
          %v1961 = vpop.f32.mrb[0].mxu0
          %v1962 = vadd.f32 0.0, %v1961
          %1963 = vmatprep.mubr.f32.mxu0 0.0
          %1964 = vmatmul.mubr.f32.gmra.mrb[0].mxu0 %v1855
          %v1965 = vpop.f32.mrb[0].mxu0
          %v1966 = vadd.f32 0.0, %v1965
          %v1967 = vpop.f32.mrb[0].mxu0
          %v1968 = vadd.f32 0.0, %v1967
          %1969 = vmatprep.mubr.f32.mxu0 0.0
          %1970 = vmatmul.mubr.f32.gmra.mrb[0].mxu0 %v1858
          %v1971 = vpop.f32.mrb[0].mxu0
          %v1972 = vadd.f32 0.0, %v1971
          %v1973 = vpop.f32.mrb[0].mxu0
          %v1974 = vadd.f32 0.0, %v1973
          %1975 = vmatprep.mubr.f32.mxu0 0.0
          %1976 = vmatmul.mubr.f32.gmra.mrb[0].mxu0 %v1861
          %v1977 = vpop.f32.mrb[0].mxu0
          %v1978 = vadd.f32 0.0, %v1977
          %v1979 = vpop.f32.mrb[0].mxu0
          %v1980 = vadd.f32 0.0, %v1979
          %1981 = vmatprep.mubr.f32.mxu0 0.0
          %1982 = vmatmul.mubr.f32.gmra.mrb[0].mxu0 %v1864
          %v1983 = vpop.f32.mrb[0].mxu0
          %v1984 = vadd.f32 0.0, %v1983
          %v1985 = vpop.f32.mrb[0].mxu0
          %v1986 = vadd.f32 0.0, %v1985
          %1987 = vmatprep.mubr.f32.mxu0 0.0
          %1988 = vmatmul.mubr.f32.gmra.mrb[0].mxu0 %v1867
          %v1989 = vpop.f32.mrb[0].mxu0
          %v1990 = vadd.f32 0.0, %v1989
          %v1991 = vpop.f32.mrb[0].mxu0
          %v1992 = vadd.f32 0.0, %v1991
          %1993 = vmatprep.mubr.f32.mxu0 0.0
          %1994 = vmatmul.mubr.f32.gmra.mrb[0].mxu0 %v1870
          %v1995 = vpop.f32.mrb[0].mxu0
          %v1996 = vadd.f32 0.0, %v1995
          %v1997 = vpop.f32.mrb[0].mxu0
          %v1998 = vadd.f32 0.0, %v1997
          %1999 = vmatprep.mubr.f32.mxu0 0.0
          %2000 = vmatmul.mubr.f32.gmra.mrb[0].mxu0 %v1873
          %v2001 = vpop.f32.mrb[0].mxu0
          %v2002 = vadd.f32 0.0, %v2001
          %v2003 = vpop.f32.mrb[0].mxu0
          %v2004 = vadd.f32 0.0, %v2003
          %2005 = vmatprep.mubr.f32.mxu0 0.0
          %2006 = vmatmul.mubr.f32.gmra.mrb[0].mxu0 %v1876
          %v2007 = vpop.f32.mrb[0].mxu0
          %v2008 = vadd.f32 0.0, %v2007
          %v2009 = vpop.f32.mrb[0].mxu0
          %v2010 = vadd.f32 0.0, %v2009
          %2011 = vmatprep.mubr.f32.mxu0 0.0
          %2012 = vmatmul.mubr.f32.gmra.mrb[0].mxu0 %v1879
          %v2013 = vpop.f32.mrb[0].mxu0
          %v2014 = vadd.f32 0.0, %v2013
          %v2015 = vpop.f32.mrb[0].mxu0
          %v2016 = vadd.f32 0.0, %v2015
          %2017 = vdwg.mxu0
          %v2018 = vld [vmem:[#allocation6] sm:$0xff]
          %v2019 = vld [vmem:[#allocation6 + $0x8] sm:$0xff]
          %v2020 = vld [vmem:[#allocation6 + $0x10] sm:$0xff]
          %v2021 = vld [vmem:[#allocation6 + $0x18] sm:$0xff]
          %v2022 = vld [vmem:[#allocation6 + $0x20] sm:$0xff]
          %v2023 = vld [vmem:[#allocation6 + $0x28] sm:$0xff]
          %v2024 = vld [vmem:[#allocation6 + $0x30] sm:$0xff]
          %v2025 = vld [vmem:[#allocation6 + $0x38] sm:$0xff]
          %v2026 = vadd.f32 %v1948, %v2018
          %v2027 = vadd.f32 %v1950, %v2019
          %v2028 = vadd.f32 %v1954, %v2020
          %v2029 = vadd.f32 %v1956, %v2021
          %v2030 = vadd.f32 %v1960, %v2022
          %v2031 = vadd.f32 %v1962, %v2023
          %v2032 = vadd.f32 %v1966, %v2024
          %v2033 = vadd.f32 %v1968, %v2025
          %v2034 = vmax.f32 %v2026, 0.0
          %v2035 = vmax.f32 %v2027, 0.0
          %v2036 = vmax.f32 %v2028, 0.0
          %v2037 = vmax.f32 %v2029, 0.0
          %v2038 = vmax.f32 %v2030, 0.0
          %v2039 = vmax.f32 %v2031, 0.0
          %v2040 = vmax.f32 %v2032, 0.0
          %v2041 = vmax.f32 %v2033, 0.0
          %v2042 = vld [vmem:[#allocation4] sm:$0xff]
          %v2043 = vld [vmem:[#allocation4 + $0x8] sm:$0xff]
          %v2044 = vld [vmem:[#allocation4 + $0x10] sm:$0xff]
          %v2045 = vld [vmem:[#allocation4 + $0x18] sm:$0xff]
          %v2046 = vld [vmem:[%s478] sm:$0xff]
          %v2047 = vld [vmem:[%s478 + $0x8] sm:$0xff]
          %v2048 = vld [vmem:[%s478 + $0x10] sm:$0xff]
          %v2049 = vld [vmem:[%s478 + $0x18] sm:$0xff]
          %v2050 = vld [vmem:[%s478 + $0x20] sm:$0xff]
          %v2051 = vld [vmem:[%s478 + $0x28] sm:$0xff]
          %v2052 = vld [vmem:[%s478 + $0x30] sm:$0xff]
          %v2053 = vld [vmem:[%s478 + $0x38] sm:$0xff]
          %v2055 = vsel %vm487, %v2042, 0
          %v2058 = vsel %vm487, %v2043, 0
          %v2061 = vsel %vm487, %v2044, 0
          %v2064 = vsel %vm487, %v2045, 0
          %2066 = vmatprep.subr.mxu0 %v2035
          %2067 = vmatpush1.msra.mxu0 %v2034
          %2068 = vmatprep.subr.mxu0 %v2037
          %2069 = vmatpush1.msra.mxu0 %v2036
          %2070 = vmatprep.subr.mxu0 %v2039
          %2071 = vmatpush1.msra.mxu0 %v2038
          %2072 = vmatprep.subr.mxu0 %v2041
          %2073 = vmatpush1.msra.mxu0 %v2040
          %2074 = vmatprep.subr.mxu0 0.0
          %2075 = vmatpush1.msra.mxu0 0.0
          %2076 = vmatprep.subr.mxu0 0.0
          %2077 = vmatpush1.msra.mxu0 0.0
          %2078 = vmatprep.subr.mxu0 0.0
          %2079 = vmatpush1.msra.mxu0 0.0
          %2080 = vmatprep.subr.mxu0 0.0
          %2081 = vmatpush1.msra.mxu0 0.0
          %2082 = vmatprep.subr.mxu0 0.0
          %2083 = vmatpush1.msra.mxu0 0.0
          %2084 = vmatprep.subr.mxu0 0.0
          %2085 = vmatpush1.msra.mxu0 0.0
          %2086 = vmatprep.subr.mxu0 0.0
          %2087 = vmatpush1.msra.mxu0 0.0
          %2088 = vmatprep.subr.mxu0 0.0
          %2089 = vmatpush1.msra.mxu0 0.0
          %2090 = vmatprep.subr.mxu0 0.0
          %2091 = vmatpush1.msra.mxu0 0.0
          %2092 = vmatprep.subr.mxu0 0.0
          %2093 = vmatpush1.msra.mxu0 0.0
          %2094 = vmatprep.subr.mxu0 0.0
          %2095 = vmatpush1.msra.mxu0 0.0
          %2096 = vmatprep.subr.mxu0 0.0
          %2097 = vmatpush1.msra.mxu0 0.0
          %2098 = vmatprep.subr.mxu0 0.0
          %2099 = vmatpush1.msra.mxu0 0.0
          %2100 = vmatprep.subr.mxu0 0.0
          %2101 = vmatpush1.msra.mxu0 0.0
          %2102 = vmatprep.subr.mxu0 0.0
          %2103 = vmatpush1.msra.mxu0 0.0
          %2104 = vmatprep.subr.mxu0 0.0
          %2105 = vmatpush1.msra.mxu0 0.0
          %2106 = vmatprep.subr.mxu0 0.0
          %2107 = vmatpush1.msra.mxu0 0.0
          %2108 = vmatprep.subr.mxu0 0.0
          %2109 = vmatpush1.msra.mxu0 0.0
          %2110 = vmatprep.subr.mxu0 0.0
          %2111 = vmatpush1.msra.mxu0 0.0
          %2112 = vmatprep.subr.mxu0 0.0
          %2113 = vmatpush1.msra.mxu0 0.0
          %2114 = vmatprep.subr.mxu0 0.0
          %2115 = vmatpush1.msra.mxu0 0.0
          %2116 = vmatprep.subr.mxu0 0.0
          %2117 = vmatpush1.msra.mxu0 0.0
          %2118 = vmatprep.subr.mxu0 0.0
          %2119 = vmatpush1.msra.mxu0 0.0
          %2120 = vmatprep.subr.mxu0 0.0
          %2121 = vmatpush1.msra.mxu0 0.0
          %2122 = vmatprep.subr.mxu0 0.0
          %2123 = vmatpush1.msra.mxu0 0.0
          %2124 = vmatprep.subr.mxu0 0.0
          %2125 = vmatpush1.msra.mxu0 0.0
          %2126 = vmatprep.subr.mxu0 0.0
          %2127 = vmatpush1.msra.mxu0 0.0
          %2128 = vmatprep.subr.mxu0 0.0
          %2129 = vmatpush1.msra.mxu0 0.0
          %2130 = vmatprep.mubr.f32.mxu0 0.0
          %2131 = vmatmul.mubr.f32.gmra.mrb[0].mxu0 %v2055
          %v2132 = vpop.f32.mrb[0].mxu0
          %v2133 = vadd.f32 %v2046, %v2132
          %v2134 = vpop.f32.mrb[0].mxu0
          %v2135 = vadd.f32 %v2047, %v2134
          %2136 = vmatprep.mubr.f32.mxu0 0.0
          %2137 = vmatmul.mubr.f32.gmra.mrb[0].mxu0 %v2058
          %v2138 = vpop.f32.mrb[0].mxu0
          %v2139 = vadd.f32 %v2048, %v2138
          %v2140 = vpop.f32.mrb[0].mxu0
          %v2141 = vadd.f32 %v2049, %v2140
          %2142 = vmatprep.mubr.f32.mxu0 0.0
          %2143 = vmatmul.mubr.f32.gmra.mrb[0].mxu0 %v2061
          %v2144 = vpop.f32.mrb[0].mxu0
          %v2145 = vadd.f32 %v2050, %v2144
          %v2146 = vpop.f32.mrb[0].mxu0
          %v2147 = vadd.f32 %v2051, %v2146
          %2148 = vmatprep.mubr.f32.mxu0 0.0
          %2149 = vmatmul.mubr.f32.gmra.mrb[0].mxu0 %v2064
          %v2150 = vpop.f32.mrb[0].mxu0
          %v2151 = vadd.f32 %v2052, %v2150
          %v2152 = vpop.f32.mrb[0].mxu0
          %v2153 = vadd.f32 %v2053, %v2152
          %2154 = vdwg.mxu0
          %v2155 = vmax.f32 %v2133, 0.0
          %v2156 = vmax.f32 %v2135, 0.0
          %v2157 = vmax.f32 %v2139, 0.0
          %v2158 = vmax.f32 %v2141, 0.0
          %v2159 = vmax.f32 %v2145, 0.0
          %v2160 = vmax.f32 %v2147, 0.0
          %v2161 = vmax.f32 %v2151, 0.0
          %v2162 = vmax.f32 %v2153, 0.0
          %v2163 = vld [vmem:[%s597] sm:$0xff]
          %v2164 = vld [vmem:[%s597 + $0x8] sm:$0xff]
          %v2165 = vld [vmem:[%s597 + $0x10] sm:$0xff]
          %v2166 = vld [vmem:[%s597 + $0x18] sm:$0xff]
          %v2167 = vld [vmem:[%s602] sm:$0xff]
          %v2168 = vld [vmem:[%s602 + $0x8] sm:$0xff]
          %v2169 = vld [vmem:[%s602 + $0x10] sm:$0xff]
          %v2170 = vld [vmem:[%s602 + $0x18] sm:$0xff]
          %v2171 = vld [vmem:[%s602 + $0x20] sm:$0xff]
          %v2172 = vld [vmem:[%s602 + $0x28] sm:$0xff]
          %v2173 = vld [vmem:[%s602 + $0x30] sm:$0xff]
          %v2174 = vld [vmem:[%s602 + $0x38] sm:$0xff]
          %v2176 = vsel %vm487, %v2163, 0
          %v2179 = vsel %vm487, %v2164, 0
          %v2182 = vsel %vm487, %v2165, 0
          %v2185 = vsel %vm487, %v2166, 0
          %2187 = vmatprep.subr.mxu0 %v2156
          %2188 = vmatpush1.msra.mxu0 %v2155
          %2189 = vmatprep.subr.mxu0 %v2158
          %2190 = vmatpush1.msra.mxu0 %v2157
          %2191 = vmatprep.subr.mxu0 %v2160
          %2192 = vmatpush1.msra.mxu0 %v2159
          %2193 = vmatprep.subr.mxu0 %v2162
          %2194 = vmatpush1.msra.mxu0 %v2161
          %2195 = vmatprep.subr.mxu0 0.0
          %2196 = vmatpush1.msra.mxu0 0.0
          %2197 = vmatprep.subr.mxu0 0.0
          %2198 = vmatpush1.msra.mxu0 0.0
          %2199 = vmatprep.subr.mxu0 0.0
          %2200 = vmatpush1.msra.mxu0 0.0
          %2201 = vmatprep.subr.mxu0 0.0
          %2202 = vmatpush1.msra.mxu0 0.0
          %2203 = vmatprep.subr.mxu0 0.0
          %2204 = vmatpush1.msra.mxu0 0.0
          %2205 = vmatprep.subr.mxu0 0.0
          %2206 = vmatpush1.msra.mxu0 0.0
          %2207 = vmatprep.subr.mxu0 0.0
          %2208 = vmatpush1.msra.mxu0 0.0
          %2209 = vmatprep.subr.mxu0 0.0
          %2210 = vmatpush1.msra.mxu0 0.0
          %2211 = vmatprep.subr.mxu0 0.0
          %2212 = vmatpush1.msra.mxu0 0.0
          %2213 = vmatprep.subr.mxu0 0.0
          %2214 = vmatpush1.msra.mxu0 0.0
          %2215 = vmatprep.subr.mxu0 0.0
          %2216 = vmatpush1.msra.mxu0 0.0
          %2217 = vmatprep.subr.mxu0 0.0
          %2218 = vmatpush1.msra.mxu0 0.0
          %2219 = vmatprep.subr.mxu0 0.0
          %2220 = vmatpush1.msra.mxu0 0.0
          %2221 = vmatprep.subr.mxu0 0.0
          %2222 = vmatpush1.msra.mxu0 0.0
          %2223 = vmatprep.subr.mxu0 0.0
          %2224 = vmatpush1.msra.mxu0 0.0
          %2225 = vmatprep.subr.mxu0 0.0
          %2226 = vmatpush1.msra.mxu0 0.0
          %2227 = vmatprep.subr.mxu0 0.0
          %2228 = vmatpush1.msra.mxu0 0.0
          %2229 = vmatprep.subr.mxu0 0.0
          %2230 = vmatpush1.msra.mxu0 0.0
          %2231 = vmatprep.subr.mxu0 0.0
          %2232 = vmatpush1.msra.mxu0 0.0
          %2233 = vmatprep.subr.mxu0 0.0
          %2234 = vmatpush1.msra.mxu0 0.0
          %2235 = vmatprep.subr.mxu0 0.0
          %2236 = vmatpush1.msra.mxu0 0.0
          %2237 = vmatprep.subr.mxu0 0.0
          %2238 = vmatpush1.msra.mxu0 0.0
          %2239 = vmatprep.subr.mxu0 0.0
          %2240 = vmatpush1.msra.mxu0 0.0
          %2241 = vmatprep.subr.mxu0 0.0
          %2242 = vmatpush1.msra.mxu0 0.0
          %2243 = vmatprep.subr.mxu0 0.0
          %2244 = vmatpush1.msra.mxu0 0.0
          %2245 = vmatprep.subr.mxu0 0.0
          %2246 = vmatpush1.msra.mxu0 0.0
          %2247 = vmatprep.subr.mxu0 0.0
          %2248 = vmatpush1.msra.mxu0 0.0
          %2249 = vmatprep.subr.mxu0 0.0
          %2250 = vmatpush1.msra.mxu0 0.0
          %2251 = vmatprep.mubr.f32.mxu0 0.0
          %2252 = vmatmul.mubr.f32.gmra.mrb[0].mxu0 %v2176
          %v2253 = vpop.f32.mrb[0].mxu0
          %v2254 = vadd.f32 %v2167, %v2253
          %v2255 = vpop.f32.mrb[0].mxu0
          %v2256 = vadd.f32 %v2168, %v2255
          %2257 = vmatprep.mubr.f32.mxu0 0.0
          %2258 = vmatmul.mubr.f32.gmra.mrb[0].mxu0 %v2179
          %v2259 = vpop.f32.mrb[0].mxu0
          %v2260 = vadd.f32 %v2169, %v2259
          %v2261 = vpop.f32.mrb[0].mxu0
          %v2262 = vadd.f32 %v2170, %v2261
          %2263 = vmatprep.mubr.f32.mxu0 0.0
          %2264 = vmatmul.mubr.f32.gmra.mrb[0].mxu0 %v2182
          %v2265 = vpop.f32.mrb[0].mxu0
          %v2266 = vadd.f32 %v2171, %v2265
          %v2267 = vpop.f32.mrb[0].mxu0
          %v2268 = vadd.f32 %v2172, %v2267
          %2269 = vmatprep.mubr.f32.mxu0 0.0
          %2270 = vmatmul.mubr.f32.gmra.mrb[0].mxu0 %v2185
          %v2271 = vpop.f32.mrb[0].mxu0
          %v2272 = vadd.f32 %v2173, %v2271
          %v2273 = vpop.f32.mrb[0].mxu0
          %v2274 = vadd.f32 %v2174, %v2273
          %2275 = vdwg.mxu0
          %v2276 = vmax.f32 %v2254, 0.0
          %v2277 = vmax.f32 %v2256, 0.0
          %v2278 = vmax.f32 %v2260, 0.0
          %v2279 = vmax.f32 %v2262, 0.0
          %v2280 = vmax.f32 %v2266, 0.0
          %v2281 = vmax.f32 %v2268, 0.0
          %v2282 = vmax.f32 %v2272, 0.0
          %v2283 = vmax.f32 %v2274, 0.0
          %v2284 = vld [vmem:[%s720] sm:$0xff]
          %v2285 = vld [vmem:[%s720 + $0x8] sm:$0xff]
          %v2286 = vld [vmem:[%s720 + $0x10] sm:$0xff]
          %v2287 = vld [vmem:[%s720 + $0x18] sm:$0xff]
          %v2288 = vld [vmem:[%s725] sm:$0xff]
          %v2289 = vld [vmem:[%s725 + $0x8] sm:$0xff]
          %v2290 = vld [vmem:[%s725 + $0x10] sm:$0xff]
          %v2291 = vld [vmem:[%s725 + $0x18] sm:$0xff]
          %v2292 = vld [vmem:[%s725 + $0x20] sm:$0xff]
          %v2293 = vld [vmem:[%s725 + $0x28] sm:$0xff]
          %v2294 = vld [vmem:[%s725 + $0x30] sm:$0xff]
          %v2295 = vld [vmem:[%s725 + $0x38] sm:$0xff]
          %v2297 = vsel %vm487, %v2284, 0
          %v2300 = vsel %vm487, %v2285, 0
          %v2303 = vsel %vm487, %v2286, 0
          %v2306 = vsel %vm487, %v2287, 0
          %2308 = vmatprep.subr.mxu0 %v2277
          %2309 = vmatpush1.msra.mxu0 %v2276
          %2310 = vmatprep.subr.mxu0 %v2279
          %2311 = vmatpush1.msra.mxu0 %v2278
          %2312 = vmatprep.subr.mxu0 %v2281
          %2313 = vmatpush1.msra.mxu0 %v2280
          %2314 = vmatprep.subr.mxu0 %v2283
          %2315 = vmatpush1.msra.mxu0 %v2282
          %2316 = vmatprep.subr.mxu0 0.0
          %2317 = vmatpush1.msra.mxu0 0.0
          %2318 = vmatprep.subr.mxu0 0.0
          %2319 = vmatpush1.msra.mxu0 0.0
          %2320 = vmatprep.subr.mxu0 0.0
          %2321 = vmatpush1.msra.mxu0 0.0
          %2322 = vmatprep.subr.mxu0 0.0
          %2323 = vmatpush1.msra.mxu0 0.0
          %2324 = vmatprep.subr.mxu0 0.0
          %2325 = vmatpush1.msra.mxu0 0.0
          %2326 = vmatprep.subr.mxu0 0.0
          %2327 = vmatpush1.msra.mxu0 0.0
          %2328 = vmatprep.subr.mxu0 0.0
          %2329 = vmatpush1.msra.mxu0 0.0
          %2330 = vmatprep.subr.mxu0 0.0
          %2331 = vmatpush1.msra.mxu0 0.0
          %2332 = vmatprep.subr.mxu0 0.0
          %2333 = vmatpush1.msra.mxu0 0.0
          %2334 = vmatprep.subr.mxu0 0.0
          %2335 = vmatpush1.msra.mxu0 0.0
          %2336 = vmatprep.subr.mxu0 0.0
          %2337 = vmatpush1.msra.mxu0 0.0
          %2338 = vmatprep.subr.mxu0 0.0
          %2339 = vmatpush1.msra.mxu0 0.0
          %2340 = vmatprep.subr.mxu0 0.0
          %2341 = vmatpush1.msra.mxu0 0.0
          %2342 = vmatprep.subr.mxu0 0.0
          %2343 = vmatpush1.msra.mxu0 0.0
          %2344 = vmatprep.subr.mxu0 0.0
          %2345 = vmatpush1.msra.mxu0 0.0
          %2346 = vmatprep.subr.mxu0 0.0
          %2347 = vmatpush1.msra.mxu0 0.0
          %2348 = vmatprep.subr.mxu0 0.0
          %2349 = vmatpush1.msra.mxu0 0.0
          %2350 = vmatprep.subr.mxu0 0.0
          %2351 = vmatpush1.msra.mxu0 0.0
          %2352 = vmatprep.subr.mxu0 0.0
          %2353 = vmatpush1.msra.mxu0 0.0
          %2354 = vmatprep.subr.mxu0 0.0
          %2355 = vmatpush1.msra.mxu0 0.0
          %2356 = vmatprep.subr.mxu0 0.0
          %2357 = vmatpush1.msra.mxu0 0.0
          %2358 = vmatprep.subr.mxu0 0.0
          %2359 = vmatpush1.msra.mxu0 0.0
          %2360 = vmatprep.subr.mxu0 0.0
          %2361 = vmatpush1.msra.mxu0 0.0
          %2362 = vmatprep.subr.mxu0 0.0
          %2363 = vmatpush1.msra.mxu0 0.0
          %2364 = vmatprep.subr.mxu0 0.0
          %2365 = vmatpush1.msra.mxu0 0.0
          %2366 = vmatprep.subr.mxu0 0.0
          %2367 = vmatpush1.msra.mxu0 0.0
          %2368 = vmatprep.subr.mxu0 0.0
          %2369 = vmatpush1.msra.mxu0 0.0
          %2370 = vmatprep.subr.mxu0 0.0
          %2371 = vmatpush1.msra.mxu0 0.0
          %2372 = vmatprep.mubr.f32.mxu0 0.0
          %2373 = vmatmul.mubr.f32.gmra.mrb[0].mxu0 %v2297
          %v2374 = vpop.f32.mrb[0].mxu0
          %v2375 = vadd.f32 %v2288, %v2374
          %v2376 = vpop.f32.mrb[0].mxu0
          %v2377 = vadd.f32 %v2289, %v2376
          %2378 = vmatprep.mubr.f32.mxu0 0.0
          %2379 = vmatmul.mubr.f32.gmra.mrb[0].mxu0 %v2300
          %v2380 = vpop.f32.mrb[0].mxu0
          %v2381 = vadd.f32 %v2290, %v2380
          %v2382 = vpop.f32.mrb[0].mxu0
          %v2383 = vadd.f32 %v2291, %v2382
          %2384 = vmatprep.mubr.f32.mxu0 0.0
          %2385 = vmatmul.mubr.f32.gmra.mrb[0].mxu0 %v2303
          %v2386 = vpop.f32.mrb[0].mxu0
          %v2387 = vadd.f32 %v2292, %v2386
          %v2388 = vpop.f32.mrb[0].mxu0
          %v2389 = vadd.f32 %v2293, %v2388
          %2390 = vmatprep.mubr.f32.mxu0 0.0
          %2391 = vmatmul.mubr.f32.gmra.mrb[0].mxu0 %v2306
          %v2392 = vpop.f32.mrb[0].mxu0
          %v2393 = vadd.f32 %v2294, %v2392
          %v2394 = vpop.f32.mrb[0].mxu0
          %v2395 = vadd.f32 %v2295, %v2394
          %2396 = vdwg.mxu0
          %v2397 = vmax.f32 %v2375, 0.0
          %v2398 = vmax.f32 %v2377, 0.0
          %v2399 = vmax.f32 %v2381, 0.0
          %v2400 = vmax.f32 %v2383, 0.0
          %v2401 = vmax.f32 %v2387, 0.0
          %v2402 = vmax.f32 %v2389, 0.0
          %v2403 = vmax.f32 %v2393, 0.0
          %v2404 = vmax.f32 %v2395, 0.0
          %v2405 = vld [vmem:[%s843] sm:$0xff]
          %v2406 = vld [vmem:[%s843 + $0x8] sm:$0xff]
          %v2407 = vld [vmem:[%s843 + $0x10] sm:$0xff]
          %v2408 = vld [vmem:[%s843 + $0x18] sm:$0xff]
          %v2409 = vld [vmem:[%s848] sm:$0xff]
          %v2410 = vld [vmem:[%s848 + $0x8] sm:$0xff]
          %v2411 = vld [vmem:[%s848 + $0x10] sm:$0xff]
          %v2412 = vld [vmem:[%s848 + $0x18] sm:$0xff]
          %v2413 = vld [vmem:[%s848 + $0x20] sm:$0xff]
          %v2414 = vld [vmem:[%s848 + $0x28] sm:$0xff]
          %v2415 = vld [vmem:[%s848 + $0x30] sm:$0xff]
          %v2416 = vld [vmem:[%s848 + $0x38] sm:$0xff]
          %v2418 = vsel %vm487, %v2405, 0
          %v2421 = vsel %vm487, %v2406, 0
          %v2424 = vsel %vm487, %v2407, 0
          %v2427 = vsel %vm487, %v2408, 0
          %2429 = vmatprep.subr.mxu0 %v2398
          %2430 = vmatpush1.msra.mxu0 %v2397
          %2431 = vmatprep.subr.mxu0 %v2400
          %2432 = vmatpush1.msra.mxu0 %v2399
          %2433 = vmatprep.subr.mxu0 %v2402
          %2434 = vmatpush1.msra.mxu0 %v2401
          %2435 = vmatprep.subr.mxu0 %v2404
          %2436 = vmatpush1.msra.mxu0 %v2403
          %2437 = vmatprep.subr.mxu0 0.0
          %2438 = vmatpush1.msra.mxu0 0.0
          %2439 = vmatprep.subr.mxu0 0.0
          %2440 = vmatpush1.msra.mxu0 0.0
          %2441 = vmatprep.subr.mxu0 0.0
          %2442 = vmatpush1.msra.mxu0 0.0
          %2443 = vmatprep.subr.mxu0 0.0
          %2444 = vmatpush1.msra.mxu0 0.0
          %2445 = vmatprep.subr.mxu0 0.0
          %2446 = vmatpush1.msra.mxu0 0.0
          %2447 = vmatprep.subr.mxu0 0.0
          %2448 = vmatpush1.msra.mxu0 0.0
          %2449 = vmatprep.subr.mxu0 0.0
          %2450 = vmatpush1.msra.mxu0 0.0
          %2451 = vmatprep.subr.mxu0 0.0
          %2452 = vmatpush1.msra.mxu0 0.0
          %2453 = vmatprep.subr.mxu0 0.0
          %2454 = vmatpush1.msra.mxu0 0.0
          %2455 = vmatprep.subr.mxu0 0.0
          %2456 = vmatpush1.msra.mxu0 0.0
          %2457 = vmatprep.subr.mxu0 0.0
          %2458 = vmatpush1.msra.mxu0 0.0
          %2459 = vmatprep.subr.mxu0 0.0
          %2460 = vmatpush1.msra.mxu0 0.0
          %2461 = vmatprep.subr.mxu0 0.0
          %2462 = vmatpush1.msra.mxu0 0.0
          %2463 = vmatprep.subr.mxu0 0.0
          %2464 = vmatpush1.msra.mxu0 0.0
          %2465 = vmatprep.subr.mxu0 0.0
          %2466 = vmatpush1.msra.mxu0 0.0
          %2467 = vmatprep.subr.mxu0 0.0
          %2468 = vmatpush1.msra.mxu0 0.0
          %2469 = vmatprep.subr.mxu0 0.0
          %2470 = vmatpush1.msra.mxu0 0.0
          %2471 = vmatprep.subr.mxu0 0.0
          %2472 = vmatpush1.msra.mxu0 0.0
          %2473 = vmatprep.subr.mxu0 0.0
          %2474 = vmatpush1.msra.mxu0 0.0
          %2475 = vmatprep.subr.mxu0 0.0
          %2476 = vmatpush1.msra.mxu0 0.0
          %2477 = vmatprep.subr.mxu0 0.0
          %2478 = vmatpush1.msra.mxu0 0.0
          %2479 = vmatprep.subr.mxu0 0.0
          %2480 = vmatpush1.msra.mxu0 0.0
          %2481 = vmatprep.subr.mxu0 0.0
          %2482 = vmatpush1.msra.mxu0 0.0
          %2483 = vmatprep.subr.mxu0 0.0
          %2484 = vmatpush1.msra.mxu0 0.0
          %2485 = vmatprep.subr.mxu0 0.0
          %2486 = vmatpush1.msra.mxu0 0.0
          %2487 = vmatprep.subr.mxu0 0.0
          %2488 = vmatpush1.msra.mxu0 0.0
          %2489 = vmatprep.subr.mxu0 0.0
          %2490 = vmatpush1.msra.mxu0 0.0
          %2491 = vmatprep.subr.mxu0 0.0
          %2492 = vmatpush1.msra.mxu0 0.0
          %2493 = vmatprep.mubr.f32.mxu0 0.0
          %2494 = vmatmul.mubr.f32.gmra.mrb[0].mxu0 %v2418
          %v2495 = vpop.f32.mrb[0].mxu0
          %v2496 = vadd.f32 %v2409, %v2495
          %v2497 = vpop.f32.mrb[0].mxu0
          %v2498 = vadd.f32 %v2410, %v2497
          %2499 = vmatprep.mubr.f32.mxu0 0.0
          %2500 = vmatmul.mubr.f32.gmra.mrb[0].mxu0 %v2421
          %v2501 = vpop.f32.mrb[0].mxu0
          %v2502 = vadd.f32 %v2411, %v2501
          %v2503 = vpop.f32.mrb[0].mxu0
          %v2504 = vadd.f32 %v2412, %v2503
          %2505 = vmatprep.mubr.f32.mxu0 0.0
          %2506 = vmatmul.mubr.f32.gmra.mrb[0].mxu0 %v2424
          %v2507 = vpop.f32.mrb[0].mxu0
          %v2508 = vadd.f32 %v2413, %v2507
          %v2509 = vpop.f32.mrb[0].mxu0
          %v2510 = vadd.f32 %v2414, %v2509
          %2511 = vmatprep.mubr.f32.mxu0 0.0
          %2512 = vmatmul.mubr.f32.gmra.mrb[0].mxu0 %v2427
          %v2513 = vpop.f32.mrb[0].mxu0
          %v2514 = vadd.f32 %v2415, %v2513
          %v2515 = vpop.f32.mrb[0].mxu0
          %v2516 = vadd.f32 %v2416, %v2515
          %2517 = vdwg.mxu0
          %v2518 = vmax.f32 %v2496, 0.0
          %v2519 = vmax.f32 %v2498, 0.0
          %v2520 = vmax.f32 %v2502, 0.0
          %v2521 = vmax.f32 %v2504, 0.0
          %v2522 = vmax.f32 %v2508, 0.0
          %v2523 = vmax.f32 %v2510, 0.0
          %v2524 = vmax.f32 %v2514, 0.0
          %v2525 = vmax.f32 %v2516, 0.0
          %v2526 = vld [vmem:[%s966] sm:$0xff]
          %v2527 = vld [vmem:[%s966 + $0x8] sm:$0xff]
          %v2528 = vld [vmem:[%s966 + $0x10] sm:$0xff]
          %v2529 = vld [vmem:[%s966 + $0x18] sm:$0xff]
          %v2530 = vld [vmem:[%s971] sm:$0xff]
          %v2531 = vld [vmem:[%s971 + $0x8] sm:$0xff]
          %v2532 = vld [vmem:[%s971 + $0x10] sm:$0xff]
          %v2533 = vld [vmem:[%s971 + $0x18] sm:$0xff]
          %v2534 = vld [vmem:[%s971 + $0x20] sm:$0xff]
          %v2535 = vld [vmem:[%s971 + $0x28] sm:$0xff]
          %v2536 = vld [vmem:[%s971 + $0x30] sm:$0xff]
          %v2537 = vld [vmem:[%s971 + $0x38] sm:$0xff]
          %v2539 = vsel %vm487, %v2526, 0
          %v2542 = vsel %vm487, %v2527, 0
          %v2545 = vsel %vm487, %v2528, 0
          %v2548 = vsel %vm487, %v2529, 0
          %2550 = vmatprep.subr.mxu0 %v2519
          %2551 = vmatpush1.msra.mxu0 %v2518
          %2552 = vmatprep.subr.mxu0 %v2521
          %2553 = vmatpush1.msra.mxu0 %v2520
          %2554 = vmatprep.subr.mxu0 %v2523
          %2555 = vmatpush1.msra.mxu0 %v2522
          %2556 = vmatprep.subr.mxu0 %v2525
          %2557 = vmatpush1.msra.mxu0 %v2524
          %2558 = vmatprep.subr.mxu0 0.0
          %2559 = vmatpush1.msra.mxu0 0.0
          %2560 = vmatprep.subr.mxu0 0.0
          %2561 = vmatpush1.msra.mxu0 0.0
          %2562 = vmatprep.subr.mxu0 0.0
          %2563 = vmatpush1.msra.mxu0 0.0
          %2564 = vmatprep.subr.mxu0 0.0
          %2565 = vmatpush1.msra.mxu0 0.0
          %2566 = vmatprep.subr.mxu0 0.0
          %2567 = vmatpush1.msra.mxu0 0.0
          %2568 = vmatprep.subr.mxu0 0.0
          %2569 = vmatpush1.msra.mxu0 0.0
          %2570 = vmatprep.subr.mxu0 0.0
          %2571 = vmatpush1.msra.mxu0 0.0
          %2572 = vmatprep.subr.mxu0 0.0
          %2573 = vmatpush1.msra.mxu0 0.0
          %2574 = vmatprep.subr.mxu0 0.0
          %2575 = vmatpush1.msra.mxu0 0.0
          %2576 = vmatprep.subr.mxu0 0.0
          %2577 = vmatpush1.msra.mxu0 0.0
          %2578 = vmatprep.subr.mxu0 0.0
          %2579 = vmatpush1.msra.mxu0 0.0
          %2580 = vmatprep.subr.mxu0 0.0
          %2581 = vmatpush1.msra.mxu0 0.0
          %2582 = vmatprep.subr.mxu0 0.0
          %2583 = vmatpush1.msra.mxu0 0.0
          %2584 = vmatprep.subr.mxu0 0.0
          %2585 = vmatpush1.msra.mxu0 0.0
          %2586 = vmatprep.subr.mxu0 0.0
          %2587 = vmatpush1.msra.mxu0 0.0
          %2588 = vmatprep.subr.mxu0 0.0
          %2589 = vmatpush1.msra.mxu0 0.0
          %2590 = vmatprep.subr.mxu0 0.0
          %2591 = vmatpush1.msra.mxu0 0.0
          %2592 = vmatprep.subr.mxu0 0.0
          %2593 = vmatpush1.msra.mxu0 0.0
          %2594 = vmatprep.subr.mxu0 0.0
          %2595 = vmatpush1.msra.mxu0 0.0
          %2596 = vmatprep.subr.mxu0 0.0
          %2597 = vmatpush1.msra.mxu0 0.0
          %2598 = vmatprep.subr.mxu0 0.0
          %2599 = vmatpush1.msra.mxu0 0.0
          %2600 = vmatprep.subr.mxu0 0.0
          %2601 = vmatpush1.msra.mxu0 0.0
          %2602 = vmatprep.subr.mxu0 0.0
          %2603 = vmatpush1.msra.mxu0 0.0
          %2604 = vmatprep.subr.mxu0 0.0
          %2605 = vmatpush1.msra.mxu0 0.0
          %2606 = vmatprep.subr.mxu0 0.0
          %2607 = vmatpush1.msra.mxu0 0.0
          %2608 = vmatprep.subr.mxu0 0.0
          %2609 = vmatpush1.msra.mxu0 0.0
          %2610 = vmatprep.subr.mxu0 0.0
          %2611 = vmatpush1.msra.mxu0 0.0
          %2612 = vmatprep.subr.mxu0 0.0
          %2613 = vmatpush1.msra.mxu0 0.0
          %2614 = vmatprep.mubr.f32.mxu0 0.0
          %2615 = vmatmul.mubr.f32.gmra.mrb[0].mxu0 %v2539
          %v2616 = vpop.f32.mrb[0].mxu0
          %v2617 = vadd.f32 %v2530, %v2616
          %v2618 = vpop.f32.mrb[0].mxu0
          %v2619 = vadd.f32 %v2531, %v2618
          %2620 = vmatprep.mubr.f32.mxu0 0.0
          %2621 = vmatmul.mubr.f32.gmra.mrb[0].mxu0 %v2542
          %v2622 = vpop.f32.mrb[0].mxu0
          %v2623 = vadd.f32 %v2532, %v2622
          %v2624 = vpop.f32.mrb[0].mxu0
          %v2625 = vadd.f32 %v2533, %v2624
          %2626 = vmatprep.mubr.f32.mxu0 0.0
          %2627 = vmatmul.mubr.f32.gmra.mrb[0].mxu0 %v2545
          %v2628 = vpop.f32.mrb[0].mxu0
          %v2629 = vadd.f32 %v2534, %v2628
          %v2630 = vpop.f32.mrb[0].mxu0
          %v2631 = vadd.f32 %v2535, %v2630
          %2632 = vmatprep.mubr.f32.mxu0 0.0
          %2633 = vmatmul.mubr.f32.gmra.mrb[0].mxu0 %v2548
          %v2634 = vpop.f32.mrb[0].mxu0
          %v2635 = vadd.f32 %v2536, %v2634
          %v2636 = vpop.f32.mrb[0].mxu0
          %v2637 = vadd.f32 %v2537, %v2636
          %2638 = vdwg.mxu0
          %v2639 = vadd.f32 %v2617, %v1972
          %v2640 = vadd.f32 %v2619, %v1974
          %v2641 = vadd.f32 %v2623, %v1978
          %v2642 = vadd.f32 %v2625, %v1980
          %v2643 = vadd.f32 %v2629, %v1984
          %v2644 = vadd.f32 %v2631, %v1986
          %v2645 = vadd.f32 %v2635, %v1990
          %v2646 = vadd.f32 %v2637, %v1992
          %v2647 = vmax.f32 %v2639, 0.0
          %v2648 = vmax.f32 %v2640, 0.0
          %v2649 = vmax.f32 %v2641, 0.0
          %v2650 = vmax.f32 %v2642, 0.0
          %v2651 = vmax.f32 %v2643, 0.0
          %v2652 = vmax.f32 %v2644, 0.0
          %v2653 = vmax.f32 %v2645, 0.0
          %v2654 = vmax.f32 %v2646, 0.0
          %v2655 = vld [vmem:[%s1097] sm:$0xff]
          %v2656 = vld [vmem:[%s1097 + $0x8] sm:$0xff]
          %v2657 = vld [vmem:[%s1097 + $0x10] sm:$0xff]
          %v2658 = vld [vmem:[%s1097 + $0x18] sm:$0xff]
          %v2659 = vld [vmem:[%s1102] sm:$0xff]
          %v2660 = vld [vmem:[%s1102 + $0x8] sm:$0xff]
          %v2661 = vld [vmem:[%s1102 + $0x10] sm:$0xff]
          %v2662 = vld [vmem:[%s1102 + $0x18] sm:$0xff]
          %v2663 = vld [vmem:[%s1102 + $0x20] sm:$0xff]
          %v2664 = vld [vmem:[%s1102 + $0x28] sm:$0xff]
          %v2665 = vld [vmem:[%s1102 + $0x30] sm:$0xff]
          %v2666 = vld [vmem:[%s1102 + $0x38] sm:$0xff]
          %v2668 = vsel %vm487, %v2655, 0
          %v2671 = vsel %vm487, %v2656, 0
          %v2674 = vsel %vm487, %v2657, 0
          %v2677 = vsel %vm487, %v2658, 0
          %2679 = vmatprep.subr.mxu0 %v2648
          %2680 = vmatpush1.msra.mxu0 %v2647
          %2681 = vmatprep.subr.mxu0 %v2650
          %2682 = vmatpush1.msra.mxu0 %v2649
          %2683 = vmatprep.subr.mxu0 %v2652
          %2684 = vmatpush1.msra.mxu0 %v2651
          %2685 = vmatprep.subr.mxu0 %v2654
          %2686 = vmatpush1.msra.mxu0 %v2653
          %2687 = vmatprep.subr.mxu0 0.0
          %2688 = vmatpush1.msra.mxu0 0.0
          %2689 = vmatprep.subr.mxu0 0.0
          %2690 = vmatpush1.msra.mxu0 0.0
          %2691 = vmatprep.subr.mxu0 0.0
          %2692 = vmatpush1.msra.mxu0 0.0
          %2693 = vmatprep.subr.mxu0 0.0
          %2694 = vmatpush1.msra.mxu0 0.0
          %2695 = vmatprep.subr.mxu0 0.0
          %2696 = vmatpush1.msra.mxu0 0.0
          %2697 = vmatprep.subr.mxu0 0.0
          %2698 = vmatpush1.msra.mxu0 0.0
          %2699 = vmatprep.subr.mxu0 0.0
          %2700 = vmatpush1.msra.mxu0 0.0
          %2701 = vmatprep.subr.mxu0 0.0
          %2702 = vmatpush1.msra.mxu0 0.0
          %2703 = vmatprep.subr.mxu0 0.0
          %2704 = vmatpush1.msra.mxu0 0.0
          %2705 = vmatprep.subr.mxu0 0.0
          %2706 = vmatpush1.msra.mxu0 0.0
          %2707 = vmatprep.subr.mxu0 0.0
          %2708 = vmatpush1.msra.mxu0 0.0
          %2709 = vmatprep.subr.mxu0 0.0
          %2710 = vmatpush1.msra.mxu0 0.0
          %2711 = vmatprep.subr.mxu0 0.0
          %2712 = vmatpush1.msra.mxu0 0.0
          %2713 = vmatprep.subr.mxu0 0.0
          %2714 = vmatpush1.msra.mxu0 0.0
          %2715 = vmatprep.subr.mxu0 0.0
          %2716 = vmatpush1.msra.mxu0 0.0
          %2717 = vmatprep.subr.mxu0 0.0
          %2718 = vmatpush1.msra.mxu0 0.0
          %2719 = vmatprep.subr.mxu0 0.0
          %2720 = vmatpush1.msra.mxu0 0.0
          %2721 = vmatprep.subr.mxu0 0.0
          %2722 = vmatpush1.msra.mxu0 0.0
          %2723 = vmatprep.subr.mxu0 0.0
          %2724 = vmatpush1.msra.mxu0 0.0
          %2725 = vmatprep.subr.mxu0 0.0
          %2726 = vmatpush1.msra.mxu0 0.0
          %2727 = vmatprep.subr.mxu0 0.0
          %2728 = vmatpush1.msra.mxu0 0.0
          %2729 = vmatprep.subr.mxu0 0.0
          %2730 = vmatpush1.msra.mxu0 0.0
          %2731 = vmatprep.subr.mxu0 0.0
          %2732 = vmatpush1.msra.mxu0 0.0
          %2733 = vmatprep.subr.mxu0 0.0
          %2734 = vmatpush1.msra.mxu0 0.0
          %2735 = vmatprep.subr.mxu0 0.0
          %2736 = vmatpush1.msra.mxu0 0.0
          %2737 = vmatprep.subr.mxu0 0.0
          %2738 = vmatpush1.msra.mxu0 0.0
          %2739 = vmatprep.subr.mxu0 0.0
          %2740 = vmatpush1.msra.mxu0 0.0
          %2741 = vmatprep.subr.mxu0 0.0
          %2742 = vmatpush1.msra.mxu0 0.0
          %2743 = vmatprep.mubr.f32.mxu0 0.0
          %2744 = vmatmul.mubr.f32.gmra.mrb[0].mxu0 %v2668
          %v2745 = vpop.f32.mrb[0].mxu0
          %v2746 = vadd.f32 %v2659, %v2745
          %v2747 = vpop.f32.mrb[0].mxu0
          %v2748 = vadd.f32 %v2660, %v2747
          %2749 = vmatprep.mubr.f32.mxu0 0.0
          %2750 = vmatmul.mubr.f32.gmra.mrb[0].mxu0 %v2671
          %v2751 = vpop.f32.mrb[0].mxu0
          %v2752 = vadd.f32 %v2661, %v2751
          %v2753 = vpop.f32.mrb[0].mxu0
          %v2754 = vadd.f32 %v2662, %v2753
          %2755 = vmatprep.mubr.f32.mxu0 0.0
          %2756 = vmatmul.mubr.f32.gmra.mrb[0].mxu0 %v2674
          %v2757 = vpop.f32.mrb[0].mxu0
          %v2758 = vadd.f32 %v2663, %v2757
          %v2759 = vpop.f32.mrb[0].mxu0
          %v2760 = vadd.f32 %v2664, %v2759
          %2761 = vmatprep.mubr.f32.mxu0 0.0
          %2762 = vmatmul.mubr.f32.gmra.mrb[0].mxu0 %v2677
          %v2763 = vpop.f32.mrb[0].mxu0
          %v2764 = vadd.f32 %v2665, %v2763
          %v2765 = vpop.f32.mrb[0].mxu0
          %v2766 = vadd.f32 %v2666, %v2765
          %2767 = vdwg.mxu0
          %v2768 = vmax.f32 %v2746, 0.0
          %v2769 = vmax.f32 %v2748, 0.0
          %v2770 = vmax.f32 %v2752, 0.0
          %v2771 = vmax.f32 %v2754, 0.0
          %v2772 = vmax.f32 %v2758, 0.0
          %v2773 = vmax.f32 %v2760, 0.0
          %v2774 = vmax.f32 %v2764, 0.0
          %v2775 = vmax.f32 %v2766, 0.0
          %v2776 = vld [vmem:[%s1220] sm:$0xff]
          %v2777 = vld [vmem:[%s1220 + $0x8] sm:$0xff]
          %v2778 = vld [vmem:[%s1220 + $0x10] sm:$0xff]
          %v2779 = vld [vmem:[%s1220 + $0x18] sm:$0xff]
          %v2780 = vld [vmem:[%s1225] sm:$0xff]
          %v2781 = vld [vmem:[%s1225 + $0x8] sm:$0xff]
          %v2782 = vld [vmem:[%s1225 + $0x10] sm:$0xff]
          %v2783 = vld [vmem:[%s1225 + $0x18] sm:$0xff]
          %v2784 = vld [vmem:[%s1225 + $0x20] sm:$0xff]
          %v2785 = vld [vmem:[%s1225 + $0x28] sm:$0xff]
          %v2786 = vld [vmem:[%s1225 + $0x30] sm:$0xff]
          %v2787 = vld [vmem:[%s1225 + $0x38] sm:$0xff]
          %v2789 = vsel %vm487, %v2776, 0
          %v2792 = vsel %vm487, %v2777, 0
          %v2795 = vsel %vm487, %v2778, 0
          %v2798 = vsel %vm487, %v2779, 0
          %2800 = vmatprep.subr.mxu0 %v2769
          %2801 = vmatpush1.msra.mxu0 %v2768
          %2802 = vmatprep.subr.mxu0 %v2771
          %2803 = vmatpush1.msra.mxu0 %v2770
          %2804 = vmatprep.subr.mxu0 %v2773
          %2805 = vmatpush1.msra.mxu0 %v2772
          %2806 = vmatprep.subr.mxu0 %v2775
          %2807 = vmatpush1.msra.mxu0 %v2774
          %2808 = vmatprep.subr.mxu0 0.0
          %2809 = vmatpush1.msra.mxu0 0.0
          %2810 = vmatprep.subr.mxu0 0.0
          %2811 = vmatpush1.msra.mxu0 0.0
          %2812 = vmatprep.subr.mxu0 0.0
          %2813 = vmatpush1.msra.mxu0 0.0
          %2814 = vmatprep.subr.mxu0 0.0
          %2815 = vmatpush1.msra.mxu0 0.0
          %2816 = vmatprep.subr.mxu0 0.0
          %2817 = vmatpush1.msra.mxu0 0.0
          %2818 = vmatprep.subr.mxu0 0.0
          %2819 = vmatpush1.msra.mxu0 0.0
          %2820 = vmatprep.subr.mxu0 0.0
          %2821 = vmatpush1.msra.mxu0 0.0
          %2822 = vmatprep.subr.mxu0 0.0
          %2823 = vmatpush1.msra.mxu0 0.0
          %2824 = vmatprep.subr.mxu0 0.0
          %2825 = vmatpush1.msra.mxu0 0.0
          %2826 = vmatprep.subr.mxu0 0.0
          %2827 = vmatpush1.msra.mxu0 0.0
          %2828 = vmatprep.subr.mxu0 0.0
          %2829 = vmatpush1.msra.mxu0 0.0
          %2830 = vmatprep.subr.mxu0 0.0
          %2831 = vmatpush1.msra.mxu0 0.0
          %2832 = vmatprep.subr.mxu0 0.0
          %2833 = vmatpush1.msra.mxu0 0.0
          %2834 = vmatprep.subr.mxu0 0.0
          %2835 = vmatpush1.msra.mxu0 0.0
          %2836 = vmatprep.subr.mxu0 0.0
          %2837 = vmatpush1.msra.mxu0 0.0
          %2838 = vmatprep.subr.mxu0 0.0
          %2839 = vmatpush1.msra.mxu0 0.0
          %2840 = vmatprep.subr.mxu0 0.0
          %2841 = vmatpush1.msra.mxu0 0.0
          %2842 = vmatprep.subr.mxu0 0.0
          %2843 = vmatpush1.msra.mxu0 0.0
          %2844 = vmatprep.subr.mxu0 0.0
          %2845 = vmatpush1.msra.mxu0 0.0
          %2846 = vmatprep.subr.mxu0 0.0
          %2847 = vmatpush1.msra.mxu0 0.0
          %2848 = vmatprep.subr.mxu0 0.0
          %2849 = vmatpush1.msra.mxu0 0.0
          %2850 = vmatprep.subr.mxu0 0.0
          %2851 = vmatpush1.msra.mxu0 0.0
          %2852 = vmatprep.subr.mxu0 0.0
          %2853 = vmatpush1.msra.mxu0 0.0
          %2854 = vmatprep.subr.mxu0 0.0
          %2855 = vmatpush1.msra.mxu0 0.0
          %2856 = vmatprep.subr.mxu0 0.0
          %2857 = vmatpush1.msra.mxu0 0.0
          %2858 = vmatprep.subr.mxu0 0.0
          %2859 = vmatpush1.msra.mxu0 0.0
          %2860 = vmatprep.subr.mxu0 0.0
          %2861 = vmatpush1.msra.mxu0 0.0
          %2862 = vmatprep.subr.mxu0 0.0
          %2863 = vmatpush1.msra.mxu0 0.0
          %2864 = vmatprep.mubr.f32.mxu0 0.0
          %2865 = vmatmul.mubr.f32.gmra.mrb[0].mxu0 %v2789
          %v2866 = vpop.f32.mrb[0].mxu0
          %v2867 = vadd.f32 %v2780, %v2866
          %v2868 = vpop.f32.mrb[0].mxu0
          %v2869 = vadd.f32 %v2781, %v2868
          %2870 = vmatprep.mubr.f32.mxu0 0.0
          %2871 = vmatmul.mubr.f32.gmra.mrb[0].mxu0 %v2792
          %v2872 = vpop.f32.mrb[0].mxu0
          %v2873 = vadd.f32 %v2782, %v2872
          %v2874 = vpop.f32.mrb[0].mxu0
          %v2875 = vadd.f32 %v2783, %v2874
          %2876 = vmatprep.mubr.f32.mxu0 0.0
          %2877 = vmatmul.mubr.f32.gmra.mrb[0].mxu0 %v2795
          %v2878 = vpop.f32.mrb[0].mxu0
          %v2879 = vadd.f32 %v2784, %v2878
          %v2880 = vpop.f32.mrb[0].mxu0
          %v2881 = vadd.f32 %v2785, %v2880
          %2882 = vmatprep.mubr.f32.mxu0 0.0
          %2883 = vmatmul.mubr.f32.gmra.mrb[0].mxu0 %v2798
          %v2884 = vpop.f32.mrb[0].mxu0
          %v2885 = vadd.f32 %v2786, %v2884
          %v2886 = vpop.f32.mrb[0].mxu0
          %v2887 = vadd.f32 %v2787, %v2886
          %2888 = vdwg.mxu0
          %v2889 = vmax.f32 %v2867, 0.0
          %v2890 = vmax.f32 %v2869, 0.0
          %v2891 = vmax.f32 %v2873, 0.0
          %v2892 = vmax.f32 %v2875, 0.0
          %v2893 = vmax.f32 %v2879, 0.0
          %v2894 = vmax.f32 %v2881, 0.0
          %v2895 = vmax.f32 %v2885, 0.0
          %v2896 = vmax.f32 %v2887, 0.0
          %v2897 = vld [vmem:[%s1343] sm:$0xff]
          %v2898 = vld [vmem:[%s1343 + $0x8] sm:$0xff]
          %v2899 = vld [vmem:[%s1343 + $0x10] sm:$0xff]
          %v2900 = vld [vmem:[%s1343 + $0x18] sm:$0xff]
          %v2902 = vsel %vm487, %v2897, 0
          %v2905 = vsel %vm487, %v2898, 0
          %v2908 = vsel %vm487, %v2899, 0
          %v2911 = vsel %vm487, %v2900, 0
          %2913 = vmatprep.subr.mxu0 %v2890
          %2914 = vmatpush1.msra.mxu0 %v2889
          %2915 = vmatprep.subr.mxu0 %v2892
          %2916 = vmatpush1.msra.mxu0 %v2891
          %2917 = vmatprep.subr.mxu0 %v2894
          %2918 = vmatpush1.msra.mxu0 %v2893
          %2919 = vmatprep.subr.mxu0 %v2896
          %2920 = vmatpush1.msra.mxu0 %v2895
          %2921 = vmatprep.subr.mxu0 0.0
          %2922 = vmatpush1.msra.mxu0 0.0
          %2923 = vmatprep.subr.mxu0 0.0
          %2924 = vmatpush1.msra.mxu0 0.0
          %2925 = vmatprep.subr.mxu0 0.0
          %2926 = vmatpush1.msra.mxu0 0.0
          %2927 = vmatprep.subr.mxu0 0.0
          %2928 = vmatpush1.msra.mxu0 0.0
          %2929 = vmatprep.subr.mxu0 0.0
          %2930 = vmatpush1.msra.mxu0 0.0
          %2931 = vmatprep.subr.mxu0 0.0
          %2932 = vmatpush1.msra.mxu0 0.0
          %2933 = vmatprep.subr.mxu0 0.0
          %2934 = vmatpush1.msra.mxu0 0.0
          %2935 = vmatprep.subr.mxu0 0.0
          %2936 = vmatpush1.msra.mxu0 0.0
          %2937 = vmatprep.subr.mxu0 0.0
          %2938 = vmatpush1.msra.mxu0 0.0
          %2939 = vmatprep.subr.mxu0 0.0
          %2940 = vmatpush1.msra.mxu0 0.0
          %2941 = vmatprep.subr.mxu0 0.0
          %2942 = vmatpush1.msra.mxu0 0.0
          %2943 = vmatprep.subr.mxu0 0.0
          %2944 = vmatpush1.msra.mxu0 0.0
          %2945 = vmatprep.subr.mxu0 0.0
          %2946 = vmatpush1.msra.mxu0 0.0
          %2947 = vmatprep.subr.mxu0 0.0
          %2948 = vmatpush1.msra.mxu0 0.0
          %2949 = vmatprep.subr.mxu0 0.0
          %2950 = vmatpush1.msra.mxu0 0.0
          %2951 = vmatprep.subr.mxu0 0.0
          %2952 = vmatpush1.msra.mxu0 0.0
          %2953 = vmatprep.subr.mxu0 0.0
          %2954 = vmatpush1.msra.mxu0 0.0
          %2955 = vmatprep.subr.mxu0 0.0
          %2956 = vmatpush1.msra.mxu0 0.0
          %2957 = vmatprep.subr.mxu0 0.0
          %2958 = vmatpush1.msra.mxu0 0.0
          %2959 = vmatprep.subr.mxu0 0.0
          %2960 = vmatpush1.msra.mxu0 0.0
          %2961 = vmatprep.subr.mxu0 0.0
          %2962 = vmatpush1.msra.mxu0 0.0
          %2963 = vmatprep.subr.mxu0 0.0
          %2964 = vmatpush1.msra.mxu0 0.0
          %2965 = vmatprep.subr.mxu0 0.0
          %2966 = vmatpush1.msra.mxu0 0.0
          %2967 = vmatprep.subr.mxu0 0.0
          %2968 = vmatpush1.msra.mxu0 0.0
          %2969 = vmatprep.subr.mxu0 0.0
          %2970 = vmatpush1.msra.mxu0 0.0
          %2971 = vmatprep.subr.mxu0 0.0
          %2972 = vmatpush1.msra.mxu0 0.0
          %2973 = vmatprep.subr.mxu0 0.0
          %2974 = vmatpush1.msra.mxu0 0.0
          %2975 = vmatprep.subr.mxu0 0.0
          %2976 = vmatpush1.msra.mxu0 0.0
          %2977 = vmatprep.mubr.f32.mxu0 0.0
          %2978 = vmatmul.mubr.f32.gmra.mrb[0].mxu0 %v2902
          %v2979 = vpop.f32.mrb[0].mxu0
          %v2980 = vadd.f32 %v1996, %v2979
          %v2981 = vpop.f32.mrb[0].mxu0
          %v2982 = vadd.f32 %v1998, %v2981
          %2983 = vmatprep.mubr.f32.mxu0 0.0
          %2984 = vmatmul.mubr.f32.gmra.mrb[0].mxu0 %v2905
          %v2985 = vpop.f32.mrb[0].mxu0
          %v2986 = vadd.f32 %v2002, %v2985
          %v2987 = vpop.f32.mrb[0].mxu0
          %v2988 = vadd.f32 %v2004, %v2987
          %2989 = vmatprep.mubr.f32.mxu0 0.0
          %2990 = vmatmul.mubr.f32.gmra.mrb[0].mxu0 %v2908
          %v2991 = vpop.f32.mrb[0].mxu0
          %v2992 = vadd.f32 %v2008, %v2991
          %v2993 = vpop.f32.mrb[0].mxu0
          %v2994 = vadd.f32 %v2010, %v2993
          %2995 = vmatprep.mubr.f32.mxu0 0.0
          %2996 = vmatmul.mubr.f32.gmra.mrb[0].mxu0 %v2911
          %v2997 = vpop.f32.mrb[0].mxu0
          %v2998 = vadd.f32 %v2014, %v2997
          %v2999 = vpop.f32.mrb[0].mxu0
          %v3000 = vadd.f32 %v2016, %v2999
          %3001 = vdwg.mxu0
          %v3002 = vld [vmem:[%s1449] sm:$0xff]
          %v3003 = vld [vmem:[%s1449 + $0x8] sm:$0xff]
          %v3004 = vld [vmem:[%s1449 + $0x10] sm:$0xff]
          %v3005 = vld [vmem:[%s1449 + $0x18] sm:$0xff]
          %v3006 = vld [vmem:[%s1449 + $0x20] sm:$0xff]
          %v3007 = vld [vmem:[%s1449 + $0x28] sm:$0xff]
          %v3008 = vld [vmem:[%s1449 + $0x30] sm:$0xff]
          %v3009 = vld [vmem:[%s1449 + $0x38] sm:$0xff]
          %v3010 = vadd.f32 %v2980, %v3002
          %v3011 = vadd.f32 %v2982, %v3003
          %v3012 = vadd.f32 %v2986, %v3004
          %v3013 = vadd.f32 %v2988, %v3005
          %v3014 = vadd.f32 %v2992, %v3006
          %v3015 = vadd.f32 %v2994, %v3007
          %v3016 = vadd.f32 %v2998, %v3008
          %v3017 = vadd.f32 %v3000, %v3009
          %v3018 = vmax.f32 %v3010, 0.0
          %v3019 = vmax.f32 %v3011, 0.0
          %v3020 = vmax.f32 %v3012, 0.0
          %v3021 = vmax.f32 %v3013, 0.0
          %v3022 = vmax.f32 %v3014, 0.0
          %v3023 = vmax.f32 %v3015, 0.0
          %v3024 = vmax.f32 %v3016, 0.0
          %v3025 = vmax.f32 %v3017, 0.0
          %v3026 = vld [vmem:[%s1474] sm:$0xff]
          %v3027 = vld [vmem:[%s1474 + $0x8] sm:$0xff]
          %v3028 = vld [vmem:[%s1474 + $0x10] sm:$0xff]
          %v3029 = vld [vmem:[%s1474 + $0x18] sm:$0xff]
          %v3030 = vld [vmem:[%s1479] sm:$0xff]
          %v3031 = vld [vmem:[%s1479 + $0x8] sm:$0xff]
          %v3032 = vld [vmem:[%s1479 + $0x10] sm:$0xff]
          %v3033 = vld [vmem:[%s1479 + $0x18] sm:$0xff]
          %v3034 = vld [vmem:[%s1479 + $0x20] sm:$0xff]
          %v3035 = vld [vmem:[%s1479 + $0x28] sm:$0xff]
          %v3036 = vld [vmem:[%s1479 + $0x30] sm:$0xff]
          %v3037 = vld [vmem:[%s1479 + $0x38] sm:$0xff]
          %v3039 = vsel %vm487, %v3026, 0
          %v3042 = vsel %vm487, %v3027, 0
          %v3045 = vsel %vm487, %v3028, 0
          %v3048 = vsel %vm487, %v3029, 0
          %3050 = vmatprep.subr.mxu0 %v3019
          %3051 = vmatpush1.msra.mxu0 %v3018
          %3052 = vmatprep.subr.mxu0 %v3021
          %3053 = vmatpush1.msra.mxu0 %v3020
          %3054 = vmatprep.subr.mxu0 %v3023
          %3055 = vmatpush1.msra.mxu0 %v3022
          %3056 = vmatprep.subr.mxu0 %v3025
          %3057 = vmatpush1.msra.mxu0 %v3024
          %3058 = vmatprep.subr.mxu0 0.0
          %3059 = vmatpush1.msra.mxu0 0.0
          %3060 = vmatprep.subr.mxu0 0.0
          %3061 = vmatpush1.msra.mxu0 0.0
          %3062 = vmatprep.subr.mxu0 0.0
          %3063 = vmatpush1.msra.mxu0 0.0
          %3064 = vmatprep.subr.mxu0 0.0
          %3065 = vmatpush1.msra.mxu0 0.0
          %3066 = vmatprep.subr.mxu0 0.0
          %3067 = vmatpush1.msra.mxu0 0.0
          %3068 = vmatprep.subr.mxu0 0.0
          %3069 = vmatpush1.msra.mxu0 0.0
          %3070 = vmatprep.subr.mxu0 0.0
          %3071 = vmatpush1.msra.mxu0 0.0
          %3072 = vmatprep.subr.mxu0 0.0
          %3073 = vmatpush1.msra.mxu0 0.0
          %3074 = vmatprep.subr.mxu0 0.0
          %3075 = vmatpush1.msra.mxu0 0.0
          %3076 = vmatprep.subr.mxu0 0.0
          %3077 = vmatpush1.msra.mxu0 0.0
          %3078 = vmatprep.subr.mxu0 0.0
          %3079 = vmatpush1.msra.mxu0 0.0
          %3080 = vmatprep.subr.mxu0 0.0
          %3081 = vmatpush1.msra.mxu0 0.0
          %3082 = vmatprep.subr.mxu0 0.0
          %3083 = vmatpush1.msra.mxu0 0.0
          %3084 = vmatprep.subr.mxu0 0.0
          %3085 = vmatpush1.msra.mxu0 0.0
          %3086 = vmatprep.subr.mxu0 0.0
          %3087 = vmatpush1.msra.mxu0 0.0
          %3088 = vmatprep.subr.mxu0 0.0
          %3089 = vmatpush1.msra.mxu0 0.0
          %3090 = vmatprep.subr.mxu0 0.0
          %3091 = vmatpush1.msra.mxu0 0.0
          %3092 = vmatprep.subr.mxu0 0.0
          %3093 = vmatpush1.msra.mxu0 0.0
          %3094 = vmatprep.subr.mxu0 0.0
          %3095 = vmatpush1.msra.mxu0 0.0
          %3096 = vmatprep.subr.mxu0 0.0
          %3097 = vmatpush1.msra.mxu0 0.0
          %3098 = vmatprep.subr.mxu0 0.0
          %3099 = vmatpush1.msra.mxu0 0.0
          %3100 = vmatprep.subr.mxu0 0.0
          %3101 = vmatpush1.msra.mxu0 0.0
          %3102 = vmatprep.subr.mxu0 0.0
          %3103 = vmatpush1.msra.mxu0 0.0
          %3104 = vmatprep.subr.mxu0 0.0
          %3105 = vmatpush1.msra.mxu0 0.0
          %3106 = vmatprep.subr.mxu0 0.0
          %3107 = vmatpush1.msra.mxu0 0.0
          %3108 = vmatprep.subr.mxu0 0.0
          %3109 = vmatpush1.msra.mxu0 0.0
          %3110 = vmatprep.subr.mxu0 0.0
          %3111 = vmatpush1.msra.mxu0 0.0
          %3112 = vmatprep.subr.mxu0 0.0
          %3113 = vmatpush1.msra.mxu0 0.0
          %3114 = vmatprep.mubr.f32.mxu0 0.0
          %3115 = vmatmul.mubr.f32.gmra.mrb[0].mxu0 %v3039
          %v3116 = vpop.f32.mrb[0].mxu0
          %v3117 = vadd.f32 %v3030, %v3116
          %v3118 = vpop.f32.mrb[0].mxu0
          %v3119 = vadd.f32 %v3031, %v3118
          %3120 = vmatprep.mubr.f32.mxu0 0.0
          %3121 = vmatmul.mubr.f32.gmra.mrb[0].mxu0 %v3042
          %v3122 = vpop.f32.mrb[0].mxu0
          %v3123 = vadd.f32 %v3032, %v3122
          %v3124 = vpop.f32.mrb[0].mxu0
          %v3125 = vadd.f32 %v3033, %v3124
          %3126 = vmatprep.mubr.f32.mxu0 0.0
          %3127 = vmatmul.mubr.f32.gmra.mrb[0].mxu0 %v3045
          %v3128 = vpop.f32.mrb[0].mxu0
          %v3129 = vadd.f32 %v3034, %v3128
          %v3130 = vpop.f32.mrb[0].mxu0
          %v3131 = vadd.f32 %v3035, %v3130
          %3132 = vmatprep.mubr.f32.mxu0 0.0
          %3133 = vmatmul.mubr.f32.gmra.mrb[0].mxu0 %v3048
          %v3134 = vpop.f32.mrb[0].mxu0
          %v3135 = vadd.f32 %v3036, %v3134
          %v3136 = vpop.f32.mrb[0].mxu0
          %v3137 = vadd.f32 %v3037, %v3136
          %3138 = vdwg.mxu0
          %v3139 = vmax.f32 %v3117, 0.0
          %v3140 = vmax.f32 %v3119, 0.0
          %v3141 = vmax.f32 %v3123, 0.0
          %v3142 = vmax.f32 %v3125, 0.0
          %v3143 = vmax.f32 %v3129, 0.0
          %v3144 = vmax.f32 %v3131, 0.0
          %v3145 = vmax.f32 %v3135, 0.0
          %v3146 = vmax.f32 %v3137, 0.0
          %v3147 = vld [vmem:[%s1597] sm:$0xff]
          %v3148 = vld [vmem:[%s1597 + $0x8] sm:$0xff]
          %v3149 = vld [vmem:[%s1597 + $0x10] sm:$0xff]
          %v3150 = vld [vmem:[%s1597 + $0x18] sm:$0xff]
          %v3151 = vld [vmem:[%s1602] sm:$0xff]
          %v3152 = vld [vmem:[%s1602 + $0x8] sm:$0xff]
          %v3153 = vld [vmem:[%s1602 + $0x10] sm:$0xff]
          %v3154 = vld [vmem:[%s1602 + $0x18] sm:$0xff]
          %v3155 = vld [vmem:[%s1602 + $0x20] sm:$0xff]
          %v3156 = vld [vmem:[%s1602 + $0x28] sm:$0xff]
          %v3157 = vld [vmem:[%s1602 + $0x30] sm:$0xff]
          %v3158 = vld [vmem:[%s1602 + $0x38] sm:$0xff]
          %v3160 = vsel %vm487, %v3147, 0
          %v3163 = vsel %vm487, %v3148, 0
          %v3166 = vsel %vm487, %v3149, 0
          %v3169 = vsel %vm487, %v3150, 0
          %3171 = vmatprep.subr.mxu0 %v3140
          %3172 = vmatpush1.msra.mxu0 %v3139
          %3173 = vmatprep.subr.mxu0 %v3142
          %3174 = vmatpush1.msra.mxu0 %v3141
          %3175 = vmatprep.subr.mxu0 %v3144
          %3176 = vmatpush1.msra.mxu0 %v3143
          %3177 = vmatprep.subr.mxu0 %v3146
          %3178 = vmatpush1.msra.mxu0 %v3145
          %3179 = vmatprep.subr.mxu0 0.0
          %3180 = vmatpush1.msra.mxu0 0.0
          %3181 = vmatprep.subr.mxu0 0.0
          %3182 = vmatpush1.msra.mxu0 0.0
          %3183 = vmatprep.subr.mxu0 0.0
          %3184 = vmatpush1.msra.mxu0 0.0
          %3185 = vmatprep.subr.mxu0 0.0
          %3186 = vmatpush1.msra.mxu0 0.0
          %3187 = vmatprep.subr.mxu0 0.0
          %3188 = vmatpush1.msra.mxu0 0.0
          %3189 = vmatprep.subr.mxu0 0.0
          %3190 = vmatpush1.msra.mxu0 0.0
          %3191 = vmatprep.subr.mxu0 0.0
          %3192 = vmatpush1.msra.mxu0 0.0
          %3193 = vmatprep.subr.mxu0 0.0
          %3194 = vmatpush1.msra.mxu0 0.0
          %3195 = vmatprep.subr.mxu0 0.0
          %3196 = vmatpush1.msra.mxu0 0.0
          %3197 = vmatprep.subr.mxu0 0.0
          %3198 = vmatpush1.msra.mxu0 0.0
          %3199 = vmatprep.subr.mxu0 0.0
          %3200 = vmatpush1.msra.mxu0 0.0
          %3201 = vmatprep.subr.mxu0 0.0
          %3202 = vmatpush1.msra.mxu0 0.0
          %3203 = vmatprep.subr.mxu0 0.0
          %3204 = vmatpush1.msra.mxu0 0.0
          %3205 = vmatprep.subr.mxu0 0.0
          %3206 = vmatpush1.msra.mxu0 0.0
          %3207 = vmatprep.subr.mxu0 0.0
          %3208 = vmatpush1.msra.mxu0 0.0
          %3209 = vmatprep.subr.mxu0 0.0
          %3210 = vmatpush1.msra.mxu0 0.0
          %3211 = vmatprep.subr.mxu0 0.0
          %3212 = vmatpush1.msra.mxu0 0.0
          %3213 = vmatprep.subr.mxu0 0.0
          %3214 = vmatpush1.msra.mxu0 0.0
          %3215 = vmatprep.subr.mxu0 0.0
          %3216 = vmatpush1.msra.mxu0 0.0
          %3217 = vmatprep.subr.mxu0 0.0
          %3218 = vmatpush1.msra.mxu0 0.0
          %3219 = vmatprep.subr.mxu0 0.0
          %3220 = vmatpush1.msra.mxu0 0.0
          %3221 = vmatprep.subr.mxu0 0.0
          %3222 = vmatpush1.msra.mxu0 0.0
          %3223 = vmatprep.subr.mxu0 0.0
          %3224 = vmatpush1.msra.mxu0 0.0
          %3225 = vmatprep.subr.mxu0 0.0
          %3226 = vmatpush1.msra.mxu0 0.0
          %3227 = vmatprep.subr.mxu0 0.0
          %3228 = vmatpush1.msra.mxu0 0.0
          %3229 = vmatprep.subr.mxu0 0.0
          %3230 = vmatpush1.msra.mxu0 0.0
          %3231 = vmatprep.subr.mxu0 0.0
          %3232 = vmatpush1.msra.mxu0 0.0
          %3233 = vmatprep.subr.mxu0 0.0
          %3234 = vmatpush1.msra.mxu0 0.0
          %3235 = vmatprep.mubr.f32.mxu0 0.0
          %3236 = vmatmul.mubr.f32.gmra.mrb[0].mxu0 %v3160
          %v3237 = vpop.f32.mrb[0].mxu0
          %v3238 = vadd.f32 %v3151, %v3237
          %v3239 = vpop.f32.mrb[0].mxu0
          %v3240 = vadd.f32 %v3152, %v3239
          %3241 = vmatprep.mubr.f32.mxu0 0.0
          %3242 = vmatmul.mubr.f32.gmra.mrb[0].mxu0 %v3163
          %v3243 = vpop.f32.mrb[0].mxu0
          %v3244 = vadd.f32 %v3153, %v3243
          %v3245 = vpop.f32.mrb[0].mxu0
          %v3246 = vadd.f32 %v3154, %v3245
          %3247 = vmatprep.mubr.f32.mxu0 0.0
          %3248 = vmatmul.mubr.f32.gmra.mrb[0].mxu0 %v3166
          %v3249 = vpop.f32.mrb[0].mxu0
          %v3250 = vadd.f32 %v3155, %v3249
          %v3251 = vpop.f32.mrb[0].mxu0
          %v3252 = vadd.f32 %v3156, %v3251
          %3253 = vmatprep.mubr.f32.mxu0 0.0
          %3254 = vmatmul.mubr.f32.gmra.mrb[0].mxu0 %v3169
          %v3255 = vpop.f32.mrb[0].mxu0
          %v3256 = vadd.f32 %v3157, %v3255
          %v3257 = vpop.f32.mrb[0].mxu0
          %v3258 = vadd.f32 %v3158, %v3257
          %3259 = vdwg.mxu0
          %v3260 = vmax.f32 %v3238, 0.0
          %v3261 = vmax.f32 %v3240, 0.0
          %v3262 = vmax.f32 %v3244, 0.0
          %v3263 = vmax.f32 %v3246, 0.0
          %v3264 = vmax.f32 %v3250, 0.0
          %v3265 = vmax.f32 %v3252, 0.0
          %v3266 = vmax.f32 %v3256, 0.0
          %v3267 = vmax.f32 %v3258, 0.0
          %v3268 = vld [vmem:[%s1720] sm:$0xff]
          %v3269 = vld [vmem:[%s1720 + $0x8] sm:$0xff]
          %v3270 = vld [vmem:[%s1720 + $0x10] sm:$0xff]
          %v3271 = vld [vmem:[%s1720 + $0x18] sm:$0xff]
          %v3272 = vld [vmem:[%s1725] sm:$0xff]
          %v3273 = vld [vmem:[%s1725 + $0x8] sm:$0xff]
          %v3275 = vsel %vm487, %v3268, 0
          %v3278 = vsel %vm487, %v3269, 0
          %v3281 = vsel %vm487, %v3270, 0
          %v3284 = vsel %vm487, %v3271, 0
          %3286 = vmatprep.subr.mxu0 %v3261
          %3287 = vmatpush1.msra.mxu0 %v3260
          %3288 = vmatprep.subr.mxu0 %v3263
          %3289 = vmatpush1.msra.mxu0 %v3262
          %3290 = vmatprep.subr.mxu0 %v3265
          %3291 = vmatpush1.msra.mxu0 %v3264
          %3292 = vmatprep.subr.mxu0 %v3267
          %3293 = vmatpush1.msra.mxu0 %v3266
          %3294 = vmatprep.subr.mxu0 0.0
          %3295 = vmatpush1.msra.mxu0 0.0
          %3296 = vmatprep.subr.mxu0 0.0
          %3297 = vmatpush1.msra.mxu0 0.0
          %3298 = vmatprep.subr.mxu0 0.0
          %3299 = vmatpush1.msra.mxu0 0.0
          %3300 = vmatprep.subr.mxu0 0.0
          %3301 = vmatpush1.msra.mxu0 0.0
          %3302 = vmatprep.subr.mxu0 0.0
          %3303 = vmatpush1.msra.mxu0 0.0
          %3304 = vmatprep.subr.mxu0 0.0
          %3305 = vmatpush1.msra.mxu0 0.0
          %3306 = vmatprep.subr.mxu0 0.0
          %3307 = vmatpush1.msra.mxu0 0.0
          %3308 = vmatprep.subr.mxu0 0.0
          %3309 = vmatpush1.msra.mxu0 0.0
          %3310 = vmatprep.subr.mxu0 0.0
          %3311 = vmatpush1.msra.mxu0 0.0
          %3312 = vmatprep.subr.mxu0 0.0
          %3313 = vmatpush1.msra.mxu0 0.0
          %3314 = vmatprep.subr.mxu0 0.0
          %3315 = vmatpush1.msra.mxu0 0.0
          %3316 = vmatprep.subr.mxu0 0.0
          %3317 = vmatpush1.msra.mxu0 0.0
          %3318 = vmatprep.subr.mxu0 0.0
          %3319 = vmatpush1.msra.mxu0 0.0
          %3320 = vmatprep.subr.mxu0 0.0
          %3321 = vmatpush1.msra.mxu0 0.0
          %3322 = vmatprep.subr.mxu0 0.0
          %3323 = vmatpush1.msra.mxu0 0.0
          %3324 = vmatprep.subr.mxu0 0.0
          %3325 = vmatpush1.msra.mxu0 0.0
          %3326 = vmatprep.subr.mxu0 0.0
          %3327 = vmatpush1.msra.mxu0 0.0
          %3328 = vmatprep.subr.mxu0 0.0
          %3329 = vmatpush1.msra.mxu0 0.0
          %3330 = vmatprep.subr.mxu0 0.0
          %3331 = vmatpush1.msra.mxu0 0.0
          %3332 = vmatprep.subr.mxu0 0.0
          %3333 = vmatpush1.msra.mxu0 0.0
          %3334 = vmatprep.subr.mxu0 0.0
          %3335 = vmatpush1.msra.mxu0 0.0
          %3336 = vmatprep.subr.mxu0 0.0
          %3337 = vmatpush1.msra.mxu0 0.0
          %3338 = vmatprep.subr.mxu0 0.0
          %3339 = vmatpush1.msra.mxu0 0.0
          %3340 = vmatprep.subr.mxu0 0.0
          %3341 = vmatpush1.msra.mxu0 0.0
          %3342 = vmatprep.subr.mxu0 0.0
          %3343 = vmatpush1.msra.mxu0 0.0
          %3344 = vmatprep.subr.mxu0 0.0
          %3345 = vmatpush1.msra.mxu0 0.0
          %3346 = vmatprep.subr.mxu0 0.0
          %3347 = vmatpush1.msra.mxu0 0.0
          %3348 = vmatprep.subr.mxu0 0.0
          %3349 = vmatpush1.msra.mxu0 0.0
          %3350 = vmatprep.mubr.f32.mxu0 0.0
          %3351 = vmatmul.mubr.f32.gmra.mrb[0].mxu0 %v3275
          %v3352 = vpop.f32.mrb[0].mxu0
          %v3353 = vadd.f32 %v3272, %v3352
          %v3354 = vpop.f32.mrb[0].mxu0
          %v3355 = vadd.f32 %v3273, %v3354
          %3356 = vmatprep.mubr.f32.mxu0 0.0
          %3357 = vmatmul.mubr.f32.gmra.mrb[0].mxu0 %v3278
          %v3358 = vpop.f32.mrb[0].mxu0
          %v3359 = vpop.f32.mrb[0].mxu0
          %3360 = vmatprep.mubr.f32.mxu0 0.0
          %3361 = vmatmul.mubr.f32.gmra.mrb[0].mxu0 %v3281
          %v3362 = vpop.f32.mrb[0].mxu0
          %v3363 = vpop.f32.mrb[0].mxu0
          %3364 = vmatprep.mubr.f32.mxu0 0.0
          %3365 = vmatmul.mubr.f32.gmra.mrb[0].mxu0 %v3284
          %v3366 = vpop.f32.mrb[0].mxu0
          %v3367 = vpop.f32.mrb[0].mxu0
          %3368 = vdwg.mxu0
          %s3369 = smul.addr %s1828, 8
          %s3370 = scalar_lea.vmem %s250, %s3369
          %3371 = vst [vmem:[%s3370] sm:$0xff] %v3353
          %3372 = vst [vmem:[%s3370 + $0x8] sm:$0xff] %v3355
        $region53: #{texture_mlp_pallas.1} parent=35 // loop_footer
          %s257 = sadd.s32 1, %s253
        $region54: #{texture_mlp_pallas.1} parent=35 // loop_footer_branch
          %252 = sbr.rel target = $region50
        $region55: #{texture_mlp_pallas.1} parent=35 // loop_exit
          _
        %s3373 = smul.u32 32, %s19
        %p3374 = scmp.lt.s32.totalorder %s3373, 255
        %s3375 = scalar_select %p3374, %s3373, 255
        %s3376 = smul.addr %s3375, 2
        %s3377 = smul.addr %s3376, 8
        %s3378 = scalar_lea.vmem %s4, %s3377
        // Predicated region
        $region56: #{texture_mlp_pallas.1} parent=35 // pred_check
          %p3379 = pneg %p126
        $region57: #{texture_mlp_pallas.1} parent=35 // pred_check_branch
          %3381 = sbr.rel (%p3379) target = $region59
        $region58: #{texture_mlp_pallas.1} parent=35 // pred_region
          %s3382 = smul.u32 32, %s19
        $region59: #{texture_mlp_pallas.1} parent=35 // pred_fallthru
          _
      $region36: #{texture_mlp_pallas.1} parent=5 // pred_fallthru
        _
      %p3383 = scmp.le.s32.totalorder 2, %s14
      // Predicated region
      $region60: #{texture_mlp_pallas.1} parent=5 // pred_check
        %p3384 = pneg %p3383
      $region61: #{texture_mlp_pallas.1} parent=5 // pred_check_branch
        %3386 = sbr.rel (%p3384) target = $region63
      $region62: #{texture_mlp_pallas.1} parent=5 // pred_region
        %s3387 = ssub.s32 %s14, 2
        // Predicated region
        $region64: #{texture_mlp_pallas.1} parent=62 // pred_check
          %p3388 = pneg %p132
        $region65: #{texture_mlp_pallas.1} parent=62 // pred_check_branch
          %3390 = sbr.rel (%p3388) target = $region67
        $region66: #{texture_mlp_pallas.1} parent=62 // pred_region
          %s3391 = smul.u32 32, %s20
          %p3392 = scmp.lt.s32.totalorder %s3391, 255
          %s3393 = scalar_select %p3392, %s3391, 255
          %s3394 = smul.addr %s3393, 2
          %s3395 = smul.addr %s3394, 8
          %s3396 = scalar_lea.vmem %s4, %s3395
        $region67: #{texture_mlp_pallas.1} parent=62 // pred_fallthru
          _
      $region63: #{texture_mlp_pallas.1} parent=5 // pred_fallthru
        _
    $region6: #{texture_mlp_pallas.1} parent=1 // loop_footer
      %s18 = sadd.s32 1, %s14
    $region7: #{texture_mlp_pallas.1} parent=1 // loop_footer_branch
      %13 = sbr.rel target = $region3
    $region8: #{texture_mlp_pallas.1} parent=1 // loop_exit
      _
    %3397 = vsyncpa [#allocation3], 1
    %s3398 = scalar_lea.sflag [#allocation3], 1
    %3399 = vsyncpa %s3398, 1
    %3400 = vsyncpa [#allocation5], 1

</llo_original>
